<compile_context>
chip_gen: v7x
topology: tpu7x:2x2x1
jax: 0.10.0
libtpu: 0.0.40
codegen_flags: <defaults>
</compile_context>

<pallas_src>
import functools

import jax
import jax.numpy as jnp
from jax.experimental import pallas as pl
from jax.experimental.pallas import tpu as pltpu


def _conv_im2col(x_ref, w_ref, xpad_ref, patches_ref, *, kh, kw, stride, pad):
    """Stage padded input in VMEM, build the im2col slab, run one MXU matmul.

    x_ref:       (Bt, H, W, Cin)        input block (caller dtype)
    w_ref:       (KH*KW*Cin, Cp)        bf16 weights, Cout zero-padded to Cp
    xpad_ref:    (Bt, Hp, Wp, Cin)      bf16 VMEM scratch (zero-padded input)
    patches_ref: (Bt*Ho*Wo, KH*KW*Cin)  bf16 VMEM scratch (im2col slab)
    returns:     (Bt*Ho*Wo, Cp) f32 conv activation (bias-free).
    """
    bt, h, w_in, cin = x_ref.shape
    _, hp, wp, _ = xpad_ref.shape
    m, _ = patches_ref.shape
    ho = (hp - kh) // stride + 1
    wo = (wp - kw) // stride + 1

    # Padding folded into the kernel (pure VMEM work, no wrapper jnp.pad HBM
    # round trip). Operands are staged in bf16 for the MXU.
    if pad > 0:
        xpad_ref[...] = jnp.zeros_like(xpad_ref)
        xpad_ref[:, pad:pad + h, pad:pad + w_in, :] = (
            x_ref[...].astype(xpad_ref.dtype))
    else:
        xpad_ref[...] = x_ref[...].astype(xpad_ref.dtype)

    xp = xpad_ref[...]
    # im2col: one lane-slice store per tap into the VMEM slab (replaces the
    # previous 9-way concat + reshape relayout). stride=1 taps are plain
    # contiguous slices; stride>1 uses strided value slices.
    for i in range(kh):
        for j in range(kw):
            t = i * kw + j
            tap = xp[:, i:i + stride * ho:stride, j:j + stride * wo:stride, :]
            patches_ref[:, t * cin:(t + 1) * cin] = tap.reshape(m, cin)

    # Single MXU matmul: bf16 x bf16 -> f32 accumulation, K = KH*KW*Cin.
    return jnp.dot(patches_ref[...], w_ref[...],
                   preferred_element_type=jnp.float32)


def conv_stats_kernel(x_ref, w_ref, stats_ref, xpad_ref, patches_ref, *,
                      kh, kw, stride, pad):
    """Stats-only pass: per-grid-step partial [sum, sum_sq] over channels."""
    acc = _conv_im2col(x_ref, w_ref, xpad_ref, patches_ref,
                       kh=kh, kw=kw, stride=stride, pad=pad)
    s = jnp.sum(acc, axis=0, keepdims=True)           # (1, Cp)  f32
    ss = jnp.sum(acc * acc, axis=0, keepdims=True)    # (1, Cp)  f32
    # Own output slot per grid step -> no revisits, no accumulation race,
    # batch axis can be "parallel" (v7x megacore). Reduced in the wrapper.
    stats_ref[...] = jnp.concatenate([s, ss], axis=0)


def conv_bn_relu_kernel(x_ref, w_ref, scale_ref, shift_ref, o_ref,
                        xpad_ref, patches_ref, *, kh, kw, stride, pad):
    """Conv recompute + BN affine (one FMA, precomputed scale/shift) + ReLU."""
    bt, ho, wo, cout = o_ref.shape
    acc = _conv_im2col(x_ref, w_ref, xpad_ref, patches_ref,
                       kh=kh, kw=kw, stride=stride, pad=pad)     # (m, Cp) f32
    y = acc[:, :cout] * scale_ref[...] + shift_ref[...]          # (m, Cout)
    y = jnp.maximum(y, 0.0)
    o_ref[...] = y.reshape(bt, ho, wo, cout).astype(o_ref.dtype)


def _pick_batch_tile(n, per_image_vmem_bytes, m_per_image,
                     budget_bytes=8 << 20, target_m=1024):
    """Largest divisor of n fitting the VMEM budget (stop once m is big enough)."""
    bt = 1
    for cand in range(1, n + 1):
        if n % cand != 0:
            continue
        if cand * per_image_vmem_bytes > budget_bytes:
            break
        bt = cand
        if cand * m_per_image >= target_m:
            break
    return bt


def conv_block(x_nchw, weight_oihw, bias, gamma, beta, *,
               stride=1, padding=0, eps=1e-5):
    """PyTorch-semantics ConvBlock forward (training-mode BN). Returns NCHW."""
    N, Cin, H, W = x_nchw.shape
    Cout, Cin_w, KH, KW = weight_oihw.shape
    assert Cin == Cin_w
    Ho = (H + 2 * padding - KH) // stride + 1
    Wo = (W + 2 * padding - KW) // stride + 1
    Hp, Wp = H + 2 * padding, W + 2 * padding
    K = KH * KW * Cin
    Cp = ((Cout + 127) // 128) * 128        # lane-dense padded channel count

    # Conv bias cancels exactly under training-mode BN mean subtraction.
    del bias

    # Boundary glue kept minimal: NCHW<->NHWC transposes only (padding and the
    # channel un-pad are handled inside the kernels).
    # TODO(synk): keep NHWC end-to-end if the caller allows, removing these
    # two boundary transposes entirely.
    x = jnp.transpose(x_nchw, (0, 2, 3, 1))                       # (N,H,W,Cin)
    w = jnp.transpose(weight_oihw, (2, 3, 1, 0)).reshape(K, Cout)
    w = jnp.pad(w, ((0, 0), (0, Cp - Cout))).astype(jnp.bfloat16)  # (K, Cp)

    in_bytes = x.dtype.itemsize
    m_per_image = Ho * Wo
    per_image_vmem = (2 * H * W * Cin * in_bytes        # x block (double-buffered)
                      + Hp * Wp * Cin * 2               # xpad scratch (bf16)
                      + m_per_image * K * 2             # patches scratch (bf16)
                      + m_per_image * Cp * 4            # f32 matmul accumulator
                      + 2 * m_per_image * Cout * in_bytes)  # output block (pass 2)
    Bt = _pick_batch_tile(N, per_image_vmem, m_per_image)
    G = N // Bt
    M = Bt * m_per_image

    est_vmem = Bt * per_image_vmem + 2 * K * Cp * 2 + (1 << 20)
    vmem_limit = int(min(96 << 20, max(32 << 20, 2 * est_vmem)))
    # TODO(synk): for very large per-image Hp*Wp (where one Bt=1 block no longer
    # fits v7x's 64 MiB / v5e's scoped VMEM) add an Ho-tile grid axis with a
    # KH-1 halo via overlapping index_map or manual DMA (memory_space=pl.ANY).

    scratch = [
        pltpu.VMEM((Bt, Hp, Wp, Cin), jnp.bfloat16),   # zero-padded input stage
        pltpu.VMEM((M, K), jnp.bfloat16),              # im2col slab
    ]
    compiler_params = pltpu.CompilerParams(
        dimension_semantics=("parallel",), vmem_limit_bytes=vmem_limit)

    # ---------------- Pass 1: batch statistics only (tiny HBM output). -------
    kernel1 = functools.partial(conv_stats_kernel,
                                kh=KH, kw=KW, stride=stride, pad=padding)
    partial_stats = pl.pallas_call(
        kernel1,
        grid=(G,),
        in_specs=[
            pl.BlockSpec((Bt, H, W, Cin), lambda g: (g, 0, 0, 0)),
            pl.BlockSpec((K, Cp), lambda g: (0, 0)),
        ],
        out_specs=pl.BlockSpec((None, 2, Cp), lambda g: (g, 0, 0)),
        out_shape=jax.ShapeDtypeStruct((G, 2, Cp), jnp.float32),
        scratch_shapes=scratch,
        compiler_params=compiler_params,
        cost_estimate=pl.CostEstimate(
            flops=2 * N * Ho * Wo * K * Cp,
            transcendentals=0,
            bytes_accessed=(N * H * W * Cin * in_bytes + K * Cp * 2
                            + G * 2 * Cp * 4)),
    )(x, w)

    # BN scale/shift derived ONCE from the reduced batch stats (tiny XLA op).
    # Variance via E[x^2]-E[x]^2 in f32 with a clamp; acceptable for BN-scale
    # activations (stats are accumulated from the f32 MXU accumulator).
    count = float(N * Ho * Wo)
    stats = jnp.sum(partial_stats, axis=0)                     # (2, Cp)
    mean = stats[0, :Cout] / count                             # (Cout,)
    var = jnp.maximum(stats[1, :Cout] / count - mean * mean, 0.0)
    inv = jax.lax.rsqrt(var + eps)
    scale = (gamma.astype(jnp.float32) * inv).reshape(1, Cout)
    shift = (beta.astype(jnp.float32) - mean * scale[0]).reshape(1, Cout)

    # ---------------- Pass 2: conv recompute + BN FMA + ReLU, Cout-wide out. --
    kernel2 = functools.partial(conv_bn_relu_kernel,
                                kh=KH, kw=KW, stride=stride, pad=padding)
    out_nhwc = pl.pallas_call(
        kernel2,
        grid=(G,),
        in_specs=[
            pl.BlockSpec((Bt, H, W, Cin), lambda g: (g, 0, 0, 0)),
            pl.BlockSpec((K, Cp), lambda g: (0, 0)),
            pl.BlockSpec((1, Cout), lambda g: (0, 0)),
            pl.BlockSpec((1, Cout), lambda g: (0, 0)),
        ],
        out_specs=pl.BlockSpec((Bt, Ho, Wo, Cout), lambda g: (g, 0, 0, 0)),
        out_shape=jax.ShapeDtypeStruct((N, Ho, Wo, Cout), x_nchw.dtype),
        scratch_shapes=scratch,
        compiler_params=compiler_params,
        cost_estimate=pl.CostEstimate(
            flops=2 * N * Ho * Wo * K * Cp + 3 * N * Ho * Wo * Cout,
            transcendentals=0,
            bytes_accessed=(N * H * W * Cin * in_bytes + K * Cp * 2
                            + 2 * Cout * 4 + N * Ho * Wo * Cout * in_bytes)),
    )(x, w, scale, shift)

    # Back to NCHW for PyTorch parity (small, Cout-wide copy).
    return jnp.transpose(out_nhwc, (0, 3, 1, 2))


def conv_block_ref(x_nchw, weight_oihw, bias, gamma, beta, *,
                   stride=1, padding=0, eps=1e-5):
    """Pure-JAX reference (PyTorch semantics, includes the conv bias)."""
    y = jax.lax.conv_general_dilated(
        x_nchw.astype(jnp.float32), weight_oihw.astype(jnp.float32),
        window_strides=(stride, stride),
        padding=[(padding, padding), (padding, padding)],
        dimension_numbers=("NCHW", "OIHW", "NCHW"))
    y = y + bias.reshape(1, -1, 1, 1)
    mean = jnp.mean(y, axis=(0, 2, 3), keepdims=True)
    var = jnp.mean((y - mean) ** 2, axis=(0, 2, 3), keepdims=True)
    y = (y - mean) * jax.lax.rsqrt(var + eps)
    y = y * gamma.reshape(1, -1, 1, 1) + beta.reshape(1, -1, 1, 1)
    return jnp.maximum(y, 0.0)


if __name__ == "__main__":
    # ConvBlock(in_channels=4, out_channels=8, kernel_size=3, stride=1,
    #           padding=1, bias=True)
    in_channels, out_channels, kernel_size, stride, padding = 4, 8, 3, 1, 1
    N, H, W = 2, 16, 16

    key = jax.random.PRNGKey(0)
    kx, kw, kb = jax.random.split(key, 3)

    x = jax.random.normal(kx, (N, in_channels, H, W), dtype=jnp.float32)
    fan_in = in_channels * kernel_size * kernel_size
    bound = 1.0 / (fan_in ** 0.5)
    weight = jax.random.uniform(
        kw, (out_channels, in_channels, kernel_size, kernel_size),
        minval=-bound, maxval=bound, dtype=jnp.float32)
    bias = jax.random.uniform(kb, (out_channels,), minval=-bound, maxval=bound,
                              dtype=jnp.float32)
    gamma = jnp.ones((out_channels,), jnp.float32)   # BN weight default init
    beta = jnp.zeros((out_channels,), jnp.float32)   # BN bias default init

    out = conv_block(x, weight, bias, gamma, beta,
                     stride=stride, padding=padding)
    out = jax.block_until_ready(out)

    ref = conv_block_ref(x, weight, bias, gamma, beta,
                         stride=stride, padding=padding)
    assert out.shape == (N, out_channels, H, W)
    # bf16 MXU operands (per perf review) -> slightly looser tolerance than f32.
    assert jnp.allclose(out, ref, atol=2e-2, rtol=2e-2)

    print("KERNEL_OK")
</pallas_src>

<mosaic_0001>
module attributes {stable_mosaic.version = 11 : i64} {
  func.func @conv_stats_kernel(%arg0: i32, %arg1: memref<2x16x16x4xf32, #tpu.memory_space<vmem>>, %arg2: memref<36x128xbf16, #tpu.memory_space<vmem>>, %arg3: memref<1x2x128xf32, #tpu.memory_space<vmem>>, %arg4: memref<2x18x18x4xbf16, #tpu.memory_space<vmem>>, %arg5: memref<512x36xbf16, #tpu.memory_space<vmem>>) attributes {dimension_semantics = [#tpu.dimension_semantics<parallel>], iteration_bounds = array<i64: 1>, scalar_prefetch = 0 : i64, scratch_operands = 2 : i64, tpu.core_type = #tpu.core_type<tc>, window_params = [{transform_indices = @transform_0, window_bounds = array<i64: 2, 16, 16, 4>}, {pipeline_mode = #tpu.pipeline_mode<synchronous>, transform_indices = @transform_1, window_bounds = array<i64: 36, 128>}, {transform_indices = @transform_2, window_bounds = array<i64: 1, 2, 128>}]} {
    %cst = arith.constant 0.000000e+00 : bf16
    %0 = vector.broadcast %cst : bf16 to vector<2x18x18x4xbf16>
    %c0 = arith.constant 0 : index
    %c0_0 = arith.constant 0 : index
    %c0_1 = arith.constant 0 : index
    %c0_2 = arith.constant 0 : index
    %1 = vector.load %arg4[%c0, %c0_0, %c0_1, %c0_2] : memref<2x18x18x4xbf16, #tpu.memory_space<vmem>>, vector<2x18x18x4xbf16>
    tpu.vector_store %arg4[%c0, %c0_0, %c0_1, %c0_2], %0 {strides = array<i32>} : memref<2x18x18x4xbf16, #tpu.memory_space<vmem>>, vector<2x18x18x4xbf16>,
    %c0_3 = arith.constant 0 : index
    %c0_4 = arith.constant 0 : index
    %c0_5 = arith.constant 0 : index
    %c0_6 = arith.constant 0 : index
    %2 = vector.load %arg1[%c0_3, %c0_4, %c0_5, %c0_6] : memref<2x16x16x4xf32, #tpu.memory_space<vmem>>, vector<2x16x16x4xf32>
    %3 = arith.truncf %2 : vector<2x16x16x4xf32> to vector<2x16x16x4xbf16>
    %c0_7 = arith.constant 0 : index
    %c1 = arith.constant 1 : index
    %c1_8 = arith.constant 1 : index
    %c0_9 = arith.constant 0 : index
    %4 = vector.load %arg4[%c0_7, %c1, %c1_8, %c0_9] : memref<2x18x18x4xbf16, #tpu.memory_space<vmem>>, vector<2x16x16x4xbf16>
    tpu.vector_store %arg4[%c0_7, %c1, %c1_8, %c0_9], %3 {strides = array<i32>} : memref<2x18x18x4xbf16, #tpu.memory_space<vmem>>, vector<2x16x16x4xbf16>,
    %c0_10 = arith.constant 0 : index
    %c0_11 = arith.constant 0 : index
    %c0_12 = arith.constant 0 : index
    %c0_13 = arith.constant 0 : index
    %5 = vector.load %arg4[%c0_10, %c0_11, %c0_12, %c0_13] : memref<2x18x18x4xbf16, #tpu.memory_space<vmem>>, vector<2x18x18x4xbf16>
    %6 = vector.extract_strided_slice %5 {offsets = [0, 0, 0, 0], sizes = [2, 16, 16, 4], strides = [1, 1, 1, 1]} : vector<2x18x18x4xbf16> to vector<2x16x16x4xbf16>
    %7 = vector.shape_cast %6 : vector<2x16x16x4xbf16> to vector<512x4xbf16>
    %c0_14 = arith.constant 0 : index
    %c0_15 = arith.constant 0 : index
    %8 = vector.load %arg5[%c0_14, %c0_15] : memref<512x36xbf16, #tpu.memory_space<vmem>>, vector<512x4xbf16>
    tpu.vector_store %arg5[%c0_14, %c0_15], %7 {strides = array<i32>} : memref<512x36xbf16, #tpu.memory_space<vmem>>, vector<512x4xbf16>,
    %9 = vector.extract_strided_slice %5 {offsets = [0, 0, 1, 0], sizes = [2, 16, 16, 4], strides = [1, 1, 1, 1]} : vector<2x18x18x4xbf16> to vector<2x16x16x4xbf16>
    %10 = vector.shape_cast %9 : vector<2x16x16x4xbf16> to vector<512x4xbf16>
    %c0_16 = arith.constant 0 : index
    %c4 = arith.constant 4 : index
    %11 = vector.load %arg5[%c0_16, %c4] : memref<512x36xbf16, #tpu.memory_space<vmem>>, vector<512x4xbf16>
    tpu.vector_store %arg5[%c0_16, %c4], %10 {strides = array<i32>} : memref<512x36xbf16, #tpu.memory_space<vmem>>, vector<512x4xbf16>,
    %12 = vector.extract_strided_slice %5 {offsets = [0, 0, 2, 0], sizes = [2, 16, 16, 4], strides = [1, 1, 1, 1]} : vector<2x18x18x4xbf16> to vector<2x16x16x4xbf16>
    %13 = vector.shape_cast %12 : vector<2x16x16x4xbf16> to vector<512x4xbf16>
    %c0_17 = arith.constant 0 : index
    %c8 = arith.constant 8 : index
    %14 = vector.load %arg5[%c0_17, %c8] : memref<512x36xbf16, #tpu.memory_space<vmem>>, vector<512x4xbf16>
    tpu.vector_store %arg5[%c0_17, %c8], %13 {strides = array<i32>} : memref<512x36xbf16, #tpu.memory_space<vmem>>, vector<512x4xbf16>,
    %15 = vector.extract_strided_slice %5 {offsets = [0, 1, 0, 0], sizes = [2, 16, 16, 4], strides = [1, 1, 1, 1]} : vector<2x18x18x4xbf16> to vector<2x16x16x4xbf16>
    %16 = vector.shape_cast %15 : vector<2x16x16x4xbf16> to vector<512x4xbf16>
    %c0_18 = arith.constant 0 : index
    %c12 = arith.constant 12 : index
    %17 = vector.load %arg5[%c0_18, %c12] : memref<512x36xbf16, #tpu.memory_space<vmem>>, vector<512x4xbf16>
    tpu.vector_store %arg5[%c0_18, %c12], %16 {strides = array<i32>} : memref<512x36xbf16, #tpu.memory_space<vmem>>, vector<512x4xbf16>,
    %18 = vector.extract_strided_slice %5 {offsets = [0, 1, 1, 0], sizes = [2, 16, 16, 4], strides = [1, 1, 1, 1]} : vector<2x18x18x4xbf16> to vector<2x16x16x4xbf16>
    %19 = vector.shape_cast %18 : vector<2x16x16x4xbf16> to vector<512x4xbf16>
    %c0_19 = arith.constant 0 : index
    %c16 = arith.constant 16 : index
    %20 = vector.load %arg5[%c0_19, %c16] : memref<512x36xbf16, #tpu.memory_space<vmem>>, vector<512x4xbf16>
    tpu.vector_store %arg5[%c0_19, %c16], %19 {strides = array<i32>} : memref<512x36xbf16, #tpu.memory_space<vmem>>, vector<512x4xbf16>,
    %21 = vector.extract_strided_slice %5 {offsets = [0, 1, 2, 0], sizes = [2, 16, 16, 4], strides = [1, 1, 1, 1]} : vector<2x18x18x4xbf16> to vector<2x16x16x4xbf16>
    %22 = vector.shape_cast %21 : vector<2x16x16x4xbf16> to vector<512x4xbf16>
    %c0_20 = arith.constant 0 : index
    %c20 = arith.constant 20 : index
    %23 = vector.load %arg5[%c0_20, %c20] : memref<512x36xbf16, #tpu.memory_space<vmem>>, vector<512x4xbf16>
    tpu.vector_store %arg5[%c0_20, %c20], %22 {strides = array<i32>} : memref<512x36xbf16, #tpu.memory_space<vmem>>, vector<512x4xbf16>,
    %24 = vector.extract_strided_slice %5 {offsets = [0, 2, 0, 0], sizes = [2, 16, 16, 4], strides = [1, 1, 1, 1]} : vector<2x18x18x4xbf16> to vector<2x16x16x4xbf16>
    %25 = vector.shape_cast %24 : vector<2x16x16x4xbf16> to vector<512x4xbf16>
    %c0_21 = arith.constant 0 : index
    %c24 = arith.constant 24 : index
    %26 = vector.load %arg5[%c0_21, %c24] : memref<512x36xbf16, #tpu.memory_space<vmem>>, vector<512x4xbf16>
    tpu.vector_store %arg5[%c0_21, %c24], %25 {strides = array<i32>} : memref<512x36xbf16, #tpu.memory_space<vmem>>, vector<512x4xbf16>,
    %27 = vector.extract_strided_slice %5 {offsets = [0, 2, 1, 0], sizes = [2, 16, 16, 4], strides = [1, 1, 1, 1]} : vector<2x18x18x4xbf16> to vector<2x16x16x4xbf16>
    %28 = vector.shape_cast %27 : vector<2x16x16x4xbf16> to vector<512x4xbf16>
    %c0_22 = arith.constant 0 : index
    %c28 = arith.constant 28 : index
    %29 = vector.load %arg5[%c0_22, %c28] : memref<512x36xbf16, #tpu.memory_space<vmem>>, vector<512x4xbf16>
    tpu.vector_store %arg5[%c0_22, %c28], %28 {strides = array<i32>} : memref<512x36xbf16, #tpu.memory_space<vmem>>, vector<512x4xbf16>,
    %30 = vector.extract_strided_slice %5 {offsets = [0, 2, 2, 0], sizes = [2, 16, 16, 4], strides = [1, 1, 1, 1]} : vector<2x18x18x4xbf16> to vector<2x16x16x4xbf16>
    %31 = vector.shape_cast %30 : vector<2x16x16x4xbf16> to vector<512x4xbf16>
    %c0_23 = arith.constant 0 : index
    %c32 = arith.constant 32 : index
    %32 = vector.load %arg5[%c0_23, %c32] : memref<512x36xbf16, #tpu.memory_space<vmem>>, vector<512x4xbf16>
    tpu.vector_store %arg5[%c0_23, %c32], %31 {strides = array<i32>} : memref<512x36xbf16, #tpu.memory_space<vmem>>, vector<512x4xbf16>,
    %c0_24 = arith.constant 0 : index
    %c0_25 = arith.constant 0 : index
    %33 = vector.load %arg5[%c0_24, %c0_25] : memref<512x36xbf16, #tpu.memory_space<vmem>>, vector<512x36xbf16>
    %c0_26 = arith.constant 0 : index
    %c0_27 = arith.constant 0 : index
    %34 = vector.load %arg2[%c0_26, %c0_27] : memref<36x128xbf16, #tpu.memory_space<vmem>>, vector<36x128xbf16>
    %cst_28 = arith.constant dense<0.000000e+00> : vector<512x128xf32>
    %35 = tpu.matmul %33, %34, %cst_28 {dimension_numbers = #tpu.dot_dimension_numbers<[1], [0], [0], [1], [0, 0, 1, 1], [], []>} : vector<512x36xbf16>, vector<36x128xbf16>, vector<512x128xf32> -> vector<512x128xf32>
    %cst_29 = arith.constant dense<0.000000e+00> : vector<128xf32>
    %36 = vector.multi_reduction <add>, %35, %cst_29 [0] : vector<512x128xf32> to vector<128xf32>
    %37 = vector.shape_cast %36 : vector<128xf32> to vector<1x128xf32>
    %38 = arith.mulf %35, %35 : vector<512x128xf32>
    %cst_30 = arith.constant dense<0.000000e+00> : vector<128xf32>
    %39 = vector.multi_reduction <add>, %38, %cst_30 [0] : vector<512x128xf32> to vector<128xf32>
    %40 = vector.shape_cast %39 : vector<128xf32> to vector<1x128xf32>
    %41 = tpu.concatenate %37, %40 in 0 : vector<1x128xf32>, vector<1x128xf32> -> vector<2x128xf32>
    %c0_31 = arith.constant 0 : index
    %c0_32 = arith.constant 0 : index
    %c0_33 = arith.constant 0 : index
    %42 = vector.load %arg3[%c0_31, %c0_32, %c0_33] : memref<1x2x128xf32, #tpu.memory_space<vmem>>, vector<1x2x128xf32>
    %43 = vector.shape_cast %42 : vector<1x2x128xf32> to vector<2x128xf32>
    %44 = vector.shape_cast %41 : vector<2x128xf32> to vector<1x2x128xf32>
    tpu.vector_store %arg3[%c0_31, %c0_32, %c0_33], %44 {strides = array<i32>} : memref<1x2x128xf32, #tpu.memory_space<vmem>>, vector<1x2x128xf32>,
    return
  }
  func.func @transform_0(%arg0: i32) -> (i32, i32, i32, i32) {
    %c0_i32 = arith.constant 0 : i32
    %c0_i32_0 = arith.constant 0 : i32
    %c0_i32_1 = arith.constant 0 : i32
    %c0_i32_2 = arith.constant 0 : i32
    return %arg0, %c0_i32, %c0_i32_0, %c0_i32_1 : i32, i32, i32, i32
  }
  func.func @transform_1(%arg0: i32) -> (i32, i32) {
    %c0_i32 = arith.constant 0 : i32
    %c0_i32_0 = arith.constant 0 : i32
    %c0_i32_1 = arith.constant 0 : i32
    return %c0_i32, %c0_i32_0 : i32, i32
  }
  func.func @transform_2(%arg0: i32) -> (i32, i32, i32) {
    %c0_i32 = arith.constant 0 : i32
    %c0_i32_0 = arith.constant 0 : i32
    %c0_i32_1 = arith.constant 0 : i32
    return %arg0, %c0_i32, %c0_i32_0 : i32, i32, i32
  }
}

</mosaic_0001>

<llo_original>
// kernel: tpu_custom_call.1
$region0: #{tpu_custom_call.1}
  #allocation0 [shape = 'u32[]', space=smem, size = 0x4, offset = 0x4, fixed_abs, tag = 'smem constant byte address 0x4 - core index']
  #allocation1 [shape = 'u32[144,128]{1,0:T(1,128)}', space=vmem, size = 0x12000, scoped, tag = 'internal scratch']
  #allocation2 [shape = 'bf16[2,18,18,4]{3,2,1,0:T(8,128)(2,1)}', space=vmem, size = 0x36000, scoped, tag = 'scratch operand']
  #allocation3 [shape = 'bf16[512,36]{1,0:T(16,128)(2,1)}', space=vmem, size = 0x20000, scoped, tag = 'scratch operand']
  %s0 = inlined_call_operand.vmem [shape: f32[2,16,16,4], index: 0, kind: input, shape index: {}]
  %s1 = inlined_call_operand.vmem [shape: bf16[36,128], index: 1, kind: input, shape index: {}]
  %s2 = inlined_call_operand.hbm [shape: f32[1,2,128], index: 2, kind: output, shape index: {}]
  %s3 = sld [smem:[#allocation0]]
  $region18: #{tpu_custom_call.1} parent=0
    _
  %s5 = ssub.s32 1, %s3
  %s6 = scalar_select 0, %s5, %s3
  $region1: #{tpu_custom_call.1} parent=0
    #allocation4 [shape = 'u8[1024]{0}', space=vmem, size = 0x400, scoped, tag = 'output window, operand 0, single buffered']
    #allocation5 [shape = 's32[1]{0}', space=sflag, size = 0x4, scoped, tag = 'scoped memory for tpu_custom_call.1']
    %7 = vsyncpa [#allocation5], 0
    // Predicated region
    $region2: #{tpu_custom_call.1} parent=1 // pred_check
      _
    $region3: #{tpu_custom_call.1} parent=1 // pred_check_branch
      %9 = sbr.rel (0) target = $region5
    $region4: #{tpu_custom_call.1} parent=1 // pred_region
      _
    $region5: #{tpu_custom_call.1} parent=1 // pred_fallthru
      _
    // Predicated region
    $region6: #{tpu_custom_call.1} parent=1 // pred_check
      _
    $region7: #{tpu_custom_call.1} parent=1 // pred_check_branch
      %11 = sbr.rel (0) target = $region9
    $region8: #{tpu_custom_call.1} parent=1 // pred_region
      _
    $region9: #{tpu_custom_call.1} parent=1 // pred_fallthru
      _
    %vm13 = vcmask 27648
    %14 = vst.msk [vmem:[#allocation2] sm:$0xf] %vm13, 0
    %15 = vst.msk [vmem:[#allocation2 + $0x4] sm:$0xf] %vm13, 0
    %vm16 = vcmask 24576
    %17 = vst.msk [vmem:[#allocation2 + $0x8] sm:$0x1] %vm16, 0
    %18 = vst.msk [vmem:[#allocation2 + $0xc] sm:$0xf] %vm13, 0
    %19 = vst.msk [vmem:[#allocation2 + $0x10] sm:$0xf] %vm13, 0
    %20 = vst.msk [vmem:[#allocation2 + $0x14] sm:$0x1] %vm16, 0
    %21 = vst.msk [vmem:[#allocation2 + $0x18] sm:$0xf] %vm13, 0
    %22 = vst.msk [vmem:[#allocation2 + $0x1c] sm:$0xf] %vm13, 0
    %23 = vst.msk [vmem:[#allocation2 + $0x20] sm:$0x1] %vm16, 0
    %24 = vst.msk [vmem:[#allocation2 + $0x24] sm:$0xf] %vm13, 0
    %25 = vst.msk [vmem:[#allocation2 + $0x28] sm:$0xf] %vm13, 0
    %26 = vst.msk [vmem:[#allocation2 + $0x2c] sm:$0x1] %vm16, 0
    %27 = vst.msk [vmem:[#allocation2 + $0x30] sm:$0xf] %vm13, 0
    %28 = vst.msk [vmem:[#allocation2 + $0x34] sm:$0xf] %vm13, 0
    %29 = vst.msk [vmem:[#allocation2 + $0x38] sm:$0x1] %vm16, 0
    %30 = vst.msk [vmem:[#allocation2 + $0x3c] sm:$0xf] %vm13, 0
    %31 = vst.msk [vmem:[#allocation2 + $0x40] sm:$0xf] %vm13, 0
    %32 = vst.msk [vmem:[#allocation2 + $0x44] sm:$0x1] %vm16, 0
    %33 = vst.msk [vmem:[#allocation2 + $0x48] sm:$0xf] %vm13, 0
    %34 = vst.msk [vmem:[#allocation2 + $0x4c] sm:$0xf] %vm13, 0
    %35 = vst.msk [vmem:[#allocation2 + $0x50] sm:$0x1] %vm16, 0
    %36 = vst.msk [vmem:[#allocation2 + $0x54] sm:$0xf] %vm13, 0
    %37 = vst.msk [vmem:[#allocation2 + $0x58] sm:$0xf] %vm13, 0
    %38 = vst.msk [vmem:[#allocation2 + $0x5c] sm:$0x1] %vm16, 0
    %39 = vst.msk [vmem:[#allocation2 + $0x60] sm:$0xf] %vm13, 0
    %40 = vst.msk [vmem:[#allocation2 + $0x64] sm:$0xf] %vm13, 0
    %41 = vst.msk [vmem:[#allocation2 + $0x68] sm:$0x1] %vm16, 0
    %42 = vst.msk [vmem:[#allocation2 + $0x6c] sm:$0xf] %vm13, 0
    %43 = vst.msk [vmem:[#allocation2 + $0x70] sm:$0xf] %vm13, 0
    %44 = vst.msk [vmem:[#allocation2 + $0x74] sm:$0x1] %vm16, 0
    %45 = vst.msk [vmem:[#allocation2 + $0x78] sm:$0xf] %vm13, 0
    %46 = vst.msk [vmem:[#allocation2 + $0x7c] sm:$0xf] %vm13, 0
    %47 = vst.msk [vmem:[#allocation2 + $0x80] sm:$0x1] %vm16, 0
    %48 = vst.msk [vmem:[#allocation2 + $0x84] sm:$0xf] %vm13, 0
    %49 = vst.msk [vmem:[#allocation2 + $0x88] sm:$0xf] %vm13, 0
    %50 = vst.msk [vmem:[#allocation2 + $0x8c] sm:$0x1] %vm16, 0
    %51 = vst.msk [vmem:[#allocation2 + $0x90] sm:$0xf] %vm13, 0
    %52 = vst.msk [vmem:[#allocation2 + $0x94] sm:$0xf] %vm13, 0
    %53 = vst.msk [vmem:[#allocation2 + $0x98] sm:$0x1] %vm16, 0
    %54 = vst.msk [vmem:[#allocation2 + $0x9c] sm:$0xf] %vm13, 0
    %55 = vst.msk [vmem:[#allocation2 + $0xa0] sm:$0xf] %vm13, 0
    %56 = vst.msk [vmem:[#allocation2 + $0xa4] sm:$0x1] %vm16, 0
    %57 = vst.msk [vmem:[#allocation2 + $0xa8] sm:$0xf] %vm13, 0
    %58 = vst.msk [vmem:[#allocation2 + $0xac] sm:$0xf] %vm13, 0
    %59 = vst.msk [vmem:[#allocation2 + $0xb0] sm:$0x1] %vm16, 0
    %60 = vst.msk [vmem:[#allocation2 + $0xb4] sm:$0xf] %vm13, 0
    %61 = vst.msk [vmem:[#allocation2 + $0xb8] sm:$0xf] %vm13, 0
    %62 = vst.msk [vmem:[#allocation2 + $0xbc] sm:$0x1] %vm16, 0
    %63 = vst.msk [vmem:[#allocation2 + $0xc0] sm:$0xf] %vm13, 0
    %64 = vst.msk [vmem:[#allocation2 + $0xc4] sm:$0xf] %vm13, 0
    %65 = vst.msk [vmem:[#allocation2 + $0xc8] sm:$0x1] %vm16, 0
    %66 = vst.msk [vmem:[#allocation2 + $0xcc] sm:$0xf] %vm13, 0
    %67 = vst.msk [vmem:[#allocation2 + $0xd0] sm:$0xf] %vm13, 0
    %68 = vst.msk [vmem:[#allocation2 + $0xd4] sm:$0x1] %vm16, 0
    %69 = vst.msk [vmem:[#allocation2 + $0xd8] sm:$0xf] %vm13, 0
    %70 = vst.msk [vmem:[#allocation2 + $0xdc] sm:$0xf] %vm13, 0
    %71 = vst.msk [vmem:[#allocation2 + $0xe0] sm:$0x1] %vm16, 0
    %72 = vst.msk [vmem:[#allocation2 + $0xe4] sm:$0xf] %vm13, 0
    %73 = vst.msk [vmem:[#allocation2 + $0xe8] sm:$0xf] %vm13, 0
    %74 = vst.msk [vmem:[#allocation2 + $0xec] sm:$0x1] %vm16, 0
    %75 = vst.msk [vmem:[#allocation2 + $0xf0] sm:$0xf] %vm13, 0
    %76 = vst.msk [vmem:[#allocation2 + $0xf4] sm:$0xf] %vm13, 0
    %77 = vst.msk [vmem:[#allocation2 + $0xf8] sm:$0x1] %vm16, 0
    %78 = vst.msk [vmem:[#allocation2 + $0xfc] sm:$0xf] %vm13, 0
    %79 = vst.msk [vmem:[#allocation2 + $0x100] sm:$0xf] %vm13, 0
    %80 = vst.msk [vmem:[#allocation2 + $0x104] sm:$0x1] %vm16, 0
    %81 = vst.msk [vmem:[#allocation2 + $0x108] sm:$0xf] %vm13, 0
    %82 = vst.msk [vmem:[#allocation2 + $0x10c] sm:$0xf] %vm13, 0
    %83 = vst.msk [vmem:[#allocation2 + $0x110] sm:$0x1] %vm16, 0
    %84 = vst.msk [vmem:[#allocation2 + $0x114] sm:$0xf] %vm13, 0
    %85 = vst.msk [vmem:[#allocation2 + $0x118] sm:$0xf] %vm13, 0
    %86 = vst.msk [vmem:[#allocation2 + $0x11c] sm:$0x1] %vm16, 0
    %87 = vst.msk [vmem:[#allocation2 + $0x120] sm:$0xf] %vm13, 0
    %88 = vst.msk [vmem:[#allocation2 + $0x124] sm:$0xf] %vm13, 0
    %89 = vst.msk [vmem:[#allocation2 + $0x128] sm:$0x1] %vm16, 0
    %90 = vst.msk [vmem:[#allocation2 + $0x12c] sm:$0xf] %vm13, 0
    %91 = vst.msk [vmem:[#allocation2 + $0x130] sm:$0xf] %vm13, 0
    %92 = vst.msk [vmem:[#allocation2 + $0x134] sm:$0x1] %vm16, 0
    %93 = vst.msk [vmem:[#allocation2 + $0x138] sm:$0xf] %vm13, 0
    %94 = vst.msk [vmem:[#allocation2 + $0x13c] sm:$0xf] %vm13, 0
    %95 = vst.msk [vmem:[#allocation2 + $0x140] sm:$0x1] %vm16, 0
    %96 = vst.msk [vmem:[#allocation2 + $0x144] sm:$0xf] %vm13, 0
    %97 = vst.msk [vmem:[#allocation2 + $0x148] sm:$0xf] %vm13, 0
    %98 = vst.msk [vmem:[#allocation2 + $0x14c] sm:$0x1] %vm16, 0
    %99 = vst.msk [vmem:[#allocation2 + $0x150] sm:$0xf] %vm13, 0
    %100 = vst.msk [vmem:[#allocation2 + $0x154] sm:$0xf] %vm13, 0
    %101 = vst.msk [vmem:[#allocation2 + $0x158] sm:$0x1] %vm16, 0
    %102 = vst.msk [vmem:[#allocation2 + $0x15c] sm:$0xf] %vm13, 0
    %103 = vst.msk [vmem:[#allocation2 + $0x160] sm:$0xf] %vm13, 0
    %104 = vst.msk [vmem:[#allocation2 + $0x164] sm:$0x1] %vm16, 0
    %105 = vst.msk [vmem:[#allocation2 + $0x168] sm:$0xf] %vm13, 0
    %106 = vst.msk [vmem:[#allocation2 + $0x16c] sm:$0xf] %vm13, 0
    %107 = vst.msk [vmem:[#allocation2 + $0x170] sm:$0x1] %vm16, 0
    %108 = vst.msk [vmem:[#allocation2 + $0x174] sm:$0xf] %vm13, 0
    %109 = vst.msk [vmem:[#allocation2 + $0x178] sm:$0xf] %vm13, 0
    %110 = vst.msk [vmem:[#allocation2 + $0x17c] sm:$0x1] %vm16, 0
    %111 = vst.msk [vmem:[#allocation2 + $0x180] sm:$0xf] %vm13, 0
    %112 = vst.msk [vmem:[#allocation2 + $0x184] sm:$0xf] %vm13, 0
    %113 = vst.msk [vmem:[#allocation2 + $0x188] sm:$0x1] %vm16, 0
    %114 = vst.msk [vmem:[#allocation2 + $0x18c] sm:$0xf] %vm13, 0
    %115 = vst.msk [vmem:[#allocation2 + $0x190] sm:$0xf] %vm13, 0
    %116 = vst.msk [vmem:[#allocation2 + $0x194] sm:$0x1] %vm16, 0
    %117 = vst.msk [vmem:[#allocation2 + $0x198] sm:$0xf] %vm13, 0
    %118 = vst.msk [vmem:[#allocation2 + $0x19c] sm:$0xf] %vm13, 0
    %119 = vst.msk [vmem:[#allocation2 + $0x1a0] sm:$0x1] %vm16, 0
    %120 = vst.msk [vmem:[#allocation2 + $0x1a4] sm:$0xf] %vm13, 0
    %121 = vst.msk [vmem:[#allocation2 + $0x1a8] sm:$0xf] %vm13, 0
    %122 = vst.msk [vmem:[#allocation2 + $0x1ac] sm:$0x1] %vm16, 0
    %v123 = vld [vmem:[%s0] sm:$0xff]
    %v124 = vld [vmem:[%s0 + $0x8] sm:$0xff]
    %v125 = vld [vmem:[%s0 + $0x10] sm:$0xff]
    %v126 = vld [vmem:[%s0 + $0x18] sm:$0xff]
    %v127 = vld [vmem:[%s0 + $0x20] sm:$0xff]
    %v128 = vld [vmem:[%s0 + $0x28] sm:$0xff]
    %v129 = vld [vmem:[%s0 + $0x30] sm:$0xff]
    %v130 = vld [vmem:[%s0 + $0x38] sm:$0xff]
    %v131 = vld [vmem:[%s0 + $0x40] sm:$0xff]
    %v132 = vld [vmem:[%s0 + $0x48] sm:$0xff]
    %v133 = vld [vmem:[%s0 + $0x50] sm:$0xff]
    %v134 = vld [vmem:[%s0 + $0x58] sm:$0xff]
    %v135 = vld [vmem:[%s0 + $0x60] sm:$0xff]
    %v136 = vld [vmem:[%s0 + $0x68] sm:$0xff]
    %v137 = vld [vmem:[%s0 + $0x70] sm:$0xff]
    %v138 = vld [vmem:[%s0 + $0x78] sm:$0xff]
    %v139 = vld [vmem:[%s0 + $0x80] sm:$0xff]
    %v140 = vld [vmem:[%s0 + $0x88] sm:$0xff]
    %v141 = vld [vmem:[%s0 + $0x90] sm:$0xff]
    %v142 = vld [vmem:[%s0 + $0x98] sm:$0xff]
    %v143 = vld [vmem:[%s0 + $0xa0] sm:$0xff]
    %v144 = vld [vmem:[%s0 + $0xa8] sm:$0xff]
    %v145 = vld [vmem:[%s0 + $0xb0] sm:$0xff]
    %v146 = vld [vmem:[%s0 + $0xb8] sm:$0xff]
    %v147 = vld [vmem:[%s0 + $0xc0] sm:$0xff]
    %v148 = vld [vmem:[%s0 + $0xc8] sm:$0xff]
    %v149 = vld [vmem:[%s0 + $0xd0] sm:$0xff]
    %v150 = vld [vmem:[%s0 + $0xd8] sm:$0xff]
    %v151 = vld [vmem:[%s0 + $0xe0] sm:$0xff]
    %v152 = vld [vmem:[%s0 + $0xe8] sm:$0xff]
    %v153 = vld [vmem:[%s0 + $0xf0] sm:$0xff]
    %v154 = vld [vmem:[%s0 + $0xf8] sm:$0xff]
    %v155 = vld [vmem:[%s0 + $0x100] sm:$0xff]
    %v156 = vld [vmem:[%s0 + $0x108] sm:$0xff]
    %v157 = vld [vmem:[%s0 + $0x110] sm:$0xff]
    %v158 = vld [vmem:[%s0 + $0x118] sm:$0xff]
    %v159 = vld [vmem:[%s0 + $0x120] sm:$0xff]
    %v160 = vld [vmem:[%s0 + $0x128] sm:$0xff]
    %v161 = vld [vmem:[%s0 + $0x130] sm:$0xff]
    %v162 = vld [vmem:[%s0 + $0x138] sm:$0xff]
    %v163 = vld [vmem:[%s0 + $0x140] sm:$0xff]
    %v164 = vld [vmem:[%s0 + $0x148] sm:$0xff]
    %v165 = vld [vmem:[%s0 + $0x150] sm:$0xff]
    %v166 = vld [vmem:[%s0 + $0x158] sm:$0xff]
    %v167 = vld [vmem:[%s0 + $0x160] sm:$0xff]
    %v168 = vld [vmem:[%s0 + $0x168] sm:$0xff]
    %v169 = vld [vmem:[%s0 + $0x170] sm:$0xff]
    %v170 = vld [vmem:[%s0 + $0x178] sm:$0xff]
    %v171 = vld [vmem:[%s0 + $0x180] sm:$0xff]
    %v172 = vld [vmem:[%s0 + $0x188] sm:$0xff]
    %v173 = vld [vmem:[%s0 + $0x190] sm:$0xff]
    %v174 = vld [vmem:[%s0 + $0x198] sm:$0xff]
    %v175 = vld [vmem:[%s0 + $0x1a0] sm:$0xff]
    %v176 = vld [vmem:[%s0 + $0x1a8] sm:$0xff]
    %v177 = vld [vmem:[%s0 + $0x1b0] sm:$0xff]
    %v178 = vld [vmem:[%s0 + $0x1b8] sm:$0xff]
    %v179 = vld [vmem:[%s0 + $0x1c0] sm:$0xff]
    %v180 = vld [vmem:[%s0 + $0x1c8] sm:$0xff]
    %v181 = vld [vmem:[%s0 + $0x1d0] sm:$0xff]
    %v182 = vld [vmem:[%s0 + $0x1d8] sm:$0xff]
    %v183 = vld [vmem:[%s0 + $0x1e0] sm:$0xff]
    %v184 = vld [vmem:[%s0 + $0x1e8] sm:$0xff]
    %v185 = vld [vmem:[%s0 + $0x1f0] sm:$0xff]
    %v186 = vld [vmem:[%s0 + $0x1f8] sm:$0xff]
    %v187 = vpack.c.bf16 %v124, %v123
    %v188 = vpack.c.bf16 %v126, %v125
    %v189 = vpack.c.bf16 %v128, %v127
    %v190 = vpack.c.bf16 %v130, %v129
    %v191 = vpack.c.bf16 %v132, %v131
    %v192 = vpack.c.bf16 %v134, %v133
    %v193 = vpack.c.bf16 %v136, %v135
    %v194 = vpack.c.bf16 %v138, %v137
    %v195 = vpack.c.bf16 %v140, %v139
    %v196 = vpack.c.bf16 %v142, %v141
    %v197 = vpack.c.bf16 %v144, %v143
    %v198 = vpack.c.bf16 %v146, %v145
    %v199 = vpack.c.bf16 %v148, %v147
    %v200 = vpack.c.bf16 %v150, %v149
    %v201 = vpack.c.bf16 %v152, %v151
    %v202 = vpack.c.bf16 %v154, %v153
    %v203 = vpack.c.bf16 %v156, %v155
    %v204 = vpack.c.bf16 %v158, %v157
    %v205 = vpack.c.bf16 %v160, %v159
    %v206 = vpack.c.bf16 %v162, %v161
    %v207 = vpack.c.bf16 %v164, %v163
    %v208 = vpack.c.bf16 %v166, %v165
    %v209 = vpack.c.bf16 %v168, %v167
    %v210 = vpack.c.bf16 %v170, %v169
    %v211 = vpack.c.bf16 %v172, %v171
    %v212 = vpack.c.bf16 %v174, %v173
    %v213 = vpack.c.bf16 %v176, %v175
    %v214 = vpack.c.bf16 %v178, %v177
    %v215 = vpack.c.bf16 %v180, %v179
    %v216 = vpack.c.bf16 %v182, %v181
    %v217 = vpack.c.bf16 %v184, %v183
    %v218 = vpack.c.bf16 %v186, %v185
    %v251 = vunpack.c.l.b16 %v187
    %v252 = vunpack.c.h.b16 %v187
    %v253 = vunpack.c.l.b16 %v188
    %v254 = vunpack.c.h.b16 %v188
    %v255 = vunpack.c.l.b16 %v189
    %v256 = vunpack.c.h.b16 %v189
    %v257 = vunpack.c.l.b16 %v190
    %v258 = vunpack.c.h.b16 %v190
    %v259 = vunpack.c.l.b16 %v191
    %v260 = vunpack.c.h.b16 %v191
    %v261 = vunpack.c.l.b16 %v192
    %v262 = vunpack.c.h.b16 %v192
    %v263 = vunpack.c.l.b16 %v193
    %v264 = vunpack.c.h.b16 %v193
    %v265 = vunpack.c.l.b16 %v194
    %v266 = vunpack.c.h.b16 %v194
    %v267 = vunpack.c.l.b16 %v195
    %v268 = vunpack.c.h.b16 %v195
    %v269 = vunpack.c.l.b16 %v196
    %v270 = vunpack.c.h.b16 %v196
    %v271 = vunpack.c.l.b16 %v197
    %v272 = vunpack.c.h.b16 %v197
    %v273 = vunpack.c.l.b16 %v198
    %v274 = vunpack.c.h.b16 %v198
    %v275 = vunpack.c.l.b16 %v199
    %v276 = vunpack.c.h.b16 %v199
    %v277 = vunpack.c.l.b16 %v200
    %v278 = vunpack.c.h.b16 %v200
    %v279 = vunpack.c.l.b16 %v201
    %v280 = vunpack.c.h.b16 %v201
    %v281 = vunpack.c.l.b16 %v202
    %v282 = vunpack.c.h.b16 %v202
    %v283 = vunpack.c.l.b16 %v203
    %v284 = vunpack.c.h.b16 %v203
    %v285 = vunpack.c.l.b16 %v204
    %v286 = vunpack.c.h.b16 %v204
    %v287 = vunpack.c.l.b16 %v205
    %v288 = vunpack.c.h.b16 %v205
    %v289 = vunpack.c.l.b16 %v206
    %v290 = vunpack.c.h.b16 %v206
    %v291 = vunpack.c.l.b16 %v207
    %v292 = vunpack.c.h.b16 %v207
    %v293 = vunpack.c.l.b16 %v208
    %v294 = vunpack.c.h.b16 %v208
    %v295 = vunpack.c.l.b16 %v209
    %v296 = vunpack.c.h.b16 %v209
    %v297 = vunpack.c.l.b16 %v210
    %v298 = vunpack.c.h.b16 %v210
    %v299 = vunpack.c.l.b16 %v211
    %v300 = vunpack.c.h.b16 %v211
    %v301 = vunpack.c.l.b16 %v212
    %v302 = vunpack.c.h.b16 %v212
    %v303 = vunpack.c.l.b16 %v213
    %v304 = vunpack.c.h.b16 %v213
    %v305 = vunpack.c.l.b16 %v214
    %v306 = vunpack.c.h.b16 %v214
    %v307 = vunpack.c.l.b16 %v215
    %v308 = vunpack.c.h.b16 %v215
    %v309 = vunpack.c.l.b16 %v216
    %v310 = vunpack.c.h.b16 %v216
    %v311 = vunpack.c.l.b16 %v217
    %v312 = vunpack.c.h.b16 %v217
    %v313 = vunpack.c.l.b16 %v218
    %v314 = vunpack.c.h.b16 %v218
    %v315 = vpack.c.b16 %v251, %v251
    %v316 = vpack.c.b16 %v252, %v252
    %v317 = vpack.c.b16 %v253, %v253
    %v318 = vpack.c.b16 %v254, %v254
    %v319 = vpack.c.b16 %v255, %v255
    %v320 = vpack.c.b16 %v256, %v256
    %v321 = vpack.c.b16 %v257, %v257
    %v322 = vpack.c.b16 %v258, %v258
    %v323 = vpack.c.b16 %v259, %v259
    %v324 = vpack.c.b16 %v260, %v260
    %v325 = vpack.c.b16 %v261, %v261
    %v326 = vpack.c.b16 %v262, %v262
    %v327 = vpack.c.b16 %v263, %v263
    %v328 = vpack.c.b16 %v264, %v264
    %v329 = vpack.c.b16 %v265, %v265
    %v330 = vpack.c.b16 %v266, %v266
    %v331 = vpack.c.b16 %v267, %v267
    %v332 = vpack.c.b16 %v268, %v268
    %v333 = vpack.c.b16 %v269, %v269
    %v334 = vpack.c.b16 %v270, %v270
    %v335 = vpack.c.b16 %v271, %v271
    %v336 = vpack.c.b16 %v272, %v272
    %v337 = vpack.c.b16 %v273, %v273
    %v338 = vpack.c.b16 %v274, %v274
    %v339 = vpack.c.b16 %v275, %v275
    %v340 = vpack.c.b16 %v276, %v276
    %v341 = vpack.c.b16 %v277, %v277
    %v342 = vpack.c.b16 %v278, %v278
    %v343 = vpack.c.b16 %v279, %v279
    %v344 = vpack.c.b16 %v280, %v280
    %v345 = vpack.c.b16 %v281, %v281
    %v346 = vpack.c.b16 %v282, %v282
    %v347 = vpack.c.b16 %v283, %v283
    %v348 = vpack.c.b16 %v284, %v284
    %v349 = vpack.c.b16 %v285, %v285
    %v350 = vpack.c.b16 %v286, %v286
    %v351 = vpack.c.b16 %v287, %v287
    %v352 = vpack.c.b16 %v288, %v288
    %v353 = vpack.c.b16 %v289, %v289
    %v354 = vpack.c.b16 %v290, %v290
    %v355 = vpack.c.b16 %v291, %v291
    %v356 = vpack.c.b16 %v292, %v292
    %v357 = vpack.c.b16 %v293, %v293
    %v358 = vpack.c.b16 %v294, %v294
    %v359 = vpack.c.b16 %v295, %v295
    %v360 = vpack.c.b16 %v296, %v296
    %v361 = vpack.c.b16 %v297, %v297
    %v362 = vpack.c.b16 %v298, %v298
    %v363 = vpack.c.b16 %v299, %v299
    %v364 = vpack.c.b16 %v300, %v300
    %v365 = vpack.c.b16 %v301, %v301
    %v366 = vpack.c.b16 %v302, %v302
    %v367 = vpack.c.b16 %v303, %v303
    %v368 = vpack.c.b16 %v304, %v304
    %v369 = vpack.c.b16 %v305, %v305
    %v370 = vpack.c.b16 %v306, %v306
    %v371 = vpack.c.b16 %v307, %v307
    %v372 = vpack.c.b16 %v308, %v308
    %v373 = vpack.c.b16 %v309, %v309
    %v374 = vpack.c.b16 %v310, %v310
    %v375 = vpack.c.b16 %v311, %v311
    %v376 = vpack.c.b16 %v312, %v312
    %v377 = vpack.c.b16 %v313, %v313
    %v378 = vpack.c.b16 %v314, %v314
    %vm379 = vsmask.f32 256
    %vm380 = vsmask.f32 4368
    %vm381 = vmor %vm379, %vm380
    %v383 = vshrl.u32 %v315, 16
    %v385 = vrot.slane %v383, 7
    %v386 = vshll.u32 %v315, 16
    %v388 = vor.u32 %v385, %v386
    %v389 = vrot.slane %v385, 4
    %v391 = vshrl.u32 %v316, 16
    %v393 = vrot.slane %v391, 7
    %v394 = vshll.u32 %v316, 16
    %v396 = vor.u32 %v393, %v394
    %v397 = vsel %vm381, %v389, %v396
    %v398 = vrot.slane %v393, 4
    %v400 = vshrl.u32 %v317, 16
    %v402 = vrot.slane %v400, 7
    %v403 = vshll.u32 %v317, 16
    %v405 = vor.u32 %v402, %v403
    %v406 = vrot.slane %v402, 4
    %v408 = vshrl.u32 %v318, 16
    %v410 = vrot.slane %v408, 7
    %v411 = vshll.u32 %v318, 16
    %v413 = vor.u32 %v410, %v411
    %v414 = vsel %vm381, %v406, %v413
    %v415 = vrot.slane %v410, 4
    %v417 = vshrl.u32 %v319, 16
    %v419 = vrot.slane %v417, 7
    %v420 = vshll.u32 %v319, 16
    %v422 = vor.u32 %v419, %v420
    %v423 = vrot.slane %v419, 4
    %v425 = vshrl.u32 %v320, 16
    %v427 = vrot.slane %v425, 7
    %v428 = vshll.u32 %v320, 16
    %v430 = vor.u32 %v427, %v428
    %v431 = vsel %vm381, %v423, %v430
    %v432 = vrot.slane %v427, 4
    %v434 = vshrl.u32 %v321, 16
    %v436 = vrot.slane %v434, 7
    %v437 = vshll.u32 %v321, 16
    %v439 = vor.u32 %v436, %v437
    %v440 = vrot.slane %v436, 4
    %v442 = vshrl.u32 %v322, 16
    %v444 = vrot.slane %v442, 7
    %v445 = vshll.u32 %v322, 16
    %v447 = vor.u32 %v444, %v445
    %v448 = vsel %vm381, %v440, %v447
    %v449 = vrot.slane %v444, 4
    %v451 = vshrl.u32 %v323, 16
    %v453 = vrot.slane %v451, 7
    %v454 = vshll.u32 %v323, 16
    %v456 = vor.u32 %v453, %v454
    %v457 = vrot.slane %v453, 4
    %v459 = vshrl.u32 %v324, 16
    %v461 = vrot.slane %v459, 7
    %v462 = vshll.u32 %v324, 16
    %v464 = vor.u32 %v461, %v462
    %v465 = vsel %vm381, %v457, %v464
    %v466 = vrot.slane %v461, 4
    %v468 = vshrl.u32 %v325, 16
    %v470 = vrot.slane %v468, 7
    %v471 = vshll.u32 %v325, 16
    %v473 = vor.u32 %v470, %v471
    %v474 = vrot.slane %v470, 4
    %v476 = vshrl.u32 %v326, 16
    %v478 = vrot.slane %v476, 7
    %v479 = vshll.u32 %v326, 16
    %v481 = vor.u32 %v478, %v479
    %v482 = vsel %vm381, %v474, %v481
    %v483 = vrot.slane %v478, 4
    %v485 = vshrl.u32 %v327, 16
    %v487 = vrot.slane %v485, 7
    %v488 = vshll.u32 %v327, 16
    %v490 = vor.u32 %v487, %v488
    %v491 = vrot.slane %v487, 4
    %v493 = vshrl.u32 %v328, 16
    %v495 = vrot.slane %v493, 7
    %v496 = vshll.u32 %v328, 16
    %v498 = vor.u32 %v495, %v496
    %v499 = vsel %vm381, %v491, %v498
    %v500 = vrot.slane %v495, 4
    %v502 = vshrl.u32 %v329, 16
    %v504 = vrot.slane %v502, 7
    %v505 = vshll.u32 %v329, 16
    %v507 = vor.u32 %v504, %v505
    %v508 = vrot.slane %v504, 4
    %v510 = vshrl.u32 %v330, 16
    %v512 = vrot.slane %v510, 7
    %v513 = vshll.u32 %v330, 16
    %v515 = vor.u32 %v512, %v513
    %v516 = vsel %vm381, %v508, %v515
    %v517 = vrot.slane %v512, 4
    %v519 = vshrl.u32 %v331, 16
    %v521 = vrot.slane %v519, 7
    %v522 = vshll.u32 %v331, 16
    %v524 = vor.u32 %v521, %v522
    %v525 = vrot.slane %v521, 4
    %v527 = vshrl.u32 %v332, 16
    %v529 = vrot.slane %v527, 7
    %v530 = vshll.u32 %v332, 16
    %v532 = vor.u32 %v529, %v530
    %v533 = vsel %vm381, %v525, %v532
    %v534 = vrot.slane %v529, 4
    %v536 = vshrl.u32 %v333, 16
    %v538 = vrot.slane %v536, 7
    %v539 = vshll.u32 %v333, 16
    %v541 = vor.u32 %v538, %v539
    %v542 = vrot.slane %v538, 4
    %v544 = vshrl.u32 %v334, 16
    %v546 = vrot.slane %v544, 7
    %v547 = vshll.u32 %v334, 16
    %v549 = vor.u32 %v546, %v547
    %v550 = vsel %vm381, %v542, %v549
    %v551 = vrot.slane %v546, 4
    %v553 = vshrl.u32 %v335, 16
    %v555 = vrot.slane %v553, 7
    %v556 = vshll.u32 %v335, 16
    %v558 = vor.u32 %v555, %v556
    %v559 = vrot.slane %v555, 4
    %v561 = vshrl.u32 %v336, 16
    %v563 = vrot.slane %v561, 7
    %v564 = vshll.u32 %v336, 16
    %v566 = vor.u32 %v563, %v564
    %v567 = vsel %vm381, %v559, %v566
    %v568 = vrot.slane %v563, 4
    %v570 = vshrl.u32 %v337, 16
    %v572 = vrot.slane %v570, 7
    %v573 = vshll.u32 %v337, 16
    %v575 = vor.u32 %v572, %v573
    %v576 = vrot.slane %v572, 4
    %v578 = vshrl.u32 %v338, 16
    %v580 = vrot.slane %v578, 7
    %v581 = vshll.u32 %v338, 16
    %v583 = vor.u32 %v580, %v581
    %v584 = vsel %vm381, %v576, %v583
    %v585 = vrot.slane %v580, 4
    %v587 = vshrl.u32 %v339, 16
    %v589 = vrot.slane %v587, 7
    %v590 = vshll.u32 %v339, 16
    %v592 = vor.u32 %v589, %v590
    %v593 = vrot.slane %v589, 4
    %v595 = vshrl.u32 %v340, 16
    %v597 = vrot.slane %v595, 7
    %v598 = vshll.u32 %v340, 16
    %v600 = vor.u32 %v597, %v598
    %v601 = vsel %vm381, %v593, %v600
    %v602 = vrot.slane %v597, 4
    %v604 = vshrl.u32 %v341, 16
    %v606 = vrot.slane %v604, 7
    %v607 = vshll.u32 %v341, 16
    %v609 = vor.u32 %v606, %v607
    %v610 = vrot.slane %v606, 4
    %v612 = vshrl.u32 %v342, 16
    %v614 = vrot.slane %v612, 7
    %v615 = vshll.u32 %v342, 16
    %v617 = vor.u32 %v614, %v615
    %v618 = vsel %vm381, %v610, %v617
    %v619 = vrot.slane %v614, 4
    %v621 = vshrl.u32 %v343, 16
    %v623 = vrot.slane %v621, 7
    %v624 = vshll.u32 %v343, 16
    %v626 = vor.u32 %v623, %v624
    %v627 = vrot.slane %v623, 4
    %v629 = vshrl.u32 %v344, 16
    %v631 = vrot.slane %v629, 7
    %v632 = vshll.u32 %v344, 16
    %v634 = vor.u32 %v631, %v632
    %v635 = vsel %vm381, %v627, %v634
    %v636 = vrot.slane %v631, 4
    %v638 = vshrl.u32 %v345, 16
    %v640 = vrot.slane %v638, 7
    %v641 = vshll.u32 %v345, 16
    %v643 = vor.u32 %v640, %v641
    %v644 = vrot.slane %v640, 4
    %v646 = vshrl.u32 %v346, 16
    %v648 = vrot.slane %v646, 7
    %v649 = vshll.u32 %v346, 16
    %v651 = vor.u32 %v648, %v649
    %v652 = vsel %vm381, %v644, %v651
    %v653 = vrot.slane %v648, 4
    %v655 = vshrl.u32 %v347, 16
    %v657 = vrot.slane %v655, 7
    %v658 = vshll.u32 %v347, 16
    %v660 = vor.u32 %v657, %v658
    %v661 = vrot.slane %v657, 4
    %v663 = vshrl.u32 %v348, 16
    %v665 = vrot.slane %v663, 7
    %v666 = vshll.u32 %v348, 16
    %v668 = vor.u32 %v665, %v666
    %v669 = vsel %vm381, %v661, %v668
    %v670 = vrot.slane %v665, 4
    %v672 = vshrl.u32 %v349, 16
    %v674 = vrot.slane %v672, 7
    %v675 = vshll.u32 %v349, 16
    %v677 = vor.u32 %v674, %v675
    %v678 = vrot.slane %v674, 4
    %v680 = vshrl.u32 %v350, 16
    %v682 = vrot.slane %v680, 7
    %v683 = vshll.u32 %v350, 16
    %v685 = vor.u32 %v682, %v683
    %v686 = vsel %vm381, %v678, %v685
    %v687 = vrot.slane %v682, 4
    %v689 = vshrl.u32 %v351, 16
    %v691 = vrot.slane %v689, 7
    %v692 = vshll.u32 %v351, 16
    %v694 = vor.u32 %v691, %v692
    %v695 = vrot.slane %v691, 4
    %v697 = vshrl.u32 %v352, 16
    %v699 = vrot.slane %v697, 7
    %v700 = vshll.u32 %v352, 16
    %v702 = vor.u32 %v699, %v700
    %v703 = vsel %vm381, %v695, %v702
    %v704 = vrot.slane %v699, 4
    %v706 = vshrl.u32 %v353, 16
    %v708 = vrot.slane %v706, 7
    %v709 = vshll.u32 %v353, 16
    %v711 = vor.u32 %v708, %v709
    %v712 = vrot.slane %v708, 4
    %v714 = vshrl.u32 %v354, 16
    %v716 = vrot.slane %v714, 7
    %v717 = vshll.u32 %v354, 16
    %v719 = vor.u32 %v716, %v717
    %v720 = vsel %vm381, %v712, %v719
    %v721 = vrot.slane %v716, 4
    %v723 = vshrl.u32 %v355, 16
    %v725 = vrot.slane %v723, 7
    %v726 = vshll.u32 %v355, 16
    %v728 = vor.u32 %v725, %v726
    %v729 = vrot.slane %v725, 4
    %v731 = vshrl.u32 %v356, 16
    %v733 = vrot.slane %v731, 7
    %v734 = vshll.u32 %v356, 16
    %v736 = vor.u32 %v733, %v734
    %v737 = vsel %vm381, %v729, %v736
    %v738 = vrot.slane %v733, 4
    %v740 = vshrl.u32 %v357, 16
    %v742 = vrot.slane %v740, 7
    %v743 = vshll.u32 %v357, 16
    %v745 = vor.u32 %v742, %v743
    %v746 = vrot.slane %v742, 4
    %v748 = vshrl.u32 %v358, 16
    %v750 = vrot.slane %v748, 7
    %v751 = vshll.u32 %v358, 16
    %v753 = vor.u32 %v750, %v751
    %v754 = vsel %vm381, %v746, %v753
    %v755 = vrot.slane %v750, 4
    %v757 = vshrl.u32 %v359, 16
    %v759 = vrot.slane %v757, 7
    %v760 = vshll.u32 %v359, 16
    %v762 = vor.u32 %v759, %v760
    %v763 = vrot.slane %v759, 4
    %v765 = vshrl.u32 %v360, 16
    %v767 = vrot.slane %v765, 7
    %v768 = vshll.u32 %v360, 16
    %v770 = vor.u32 %v767, %v768
    %v771 = vsel %vm381, %v763, %v770
    %v772 = vrot.slane %v767, 4
    %v774 = vshrl.u32 %v361, 16
    %v776 = vrot.slane %v774, 7
    %v777 = vshll.u32 %v361, 16
    %v779 = vor.u32 %v776, %v777
    %v780 = vrot.slane %v776, 4
    %v782 = vshrl.u32 %v362, 16
    %v784 = vrot.slane %v782, 7
    %v785 = vshll.u32 %v362, 16
    %v787 = vor.u32 %v784, %v785
    %v788 = vsel %vm381, %v780, %v787
    %v789 = vrot.slane %v784, 4
    %v791 = vshrl.u32 %v363, 16
    %v793 = vrot.slane %v791, 7
    %v794 = vshll.u32 %v363, 16
    %v796 = vor.u32 %v793, %v794
    %v797 = vrot.slane %v793, 4
    %v799 = vshrl.u32 %v364, 16
    %v801 = vrot.slane %v799, 7
    %v802 = vshll.u32 %v364, 16
    %v804 = vor.u32 %v801, %v802
    %v805 = vsel %vm381, %v797, %v804
    %v806 = vrot.slane %v801, 4
    %v808 = vshrl.u32 %v365, 16
    %v810 = vrot.slane %v808, 7
    %v811 = vshll.u32 %v365, 16
    %v813 = vor.u32 %v810, %v811
    %v814 = vrot.slane %v810, 4
    %v816 = vshrl.u32 %v366, 16
    %v818 = vrot.slane %v816, 7
    %v819 = vshll.u32 %v366, 16
    %v821 = vor.u32 %v818, %v819
    %v822 = vsel %vm381, %v814, %v821
    %v823 = vrot.slane %v818, 4
    %v825 = vshrl.u32 %v367, 16
    %v827 = vrot.slane %v825, 7
    %v828 = vshll.u32 %v367, 16
    %v830 = vor.u32 %v827, %v828
    %v831 = vrot.slane %v827, 4
    %v833 = vshrl.u32 %v368, 16
    %v835 = vrot.slane %v833, 7
    %v836 = vshll.u32 %v368, 16
    %v838 = vor.u32 %v835, %v836
    %v839 = vsel %vm381, %v831, %v838
    %v840 = vrot.slane %v835, 4
    %v842 = vshrl.u32 %v369, 16
    %v844 = vrot.slane %v842, 7
    %v845 = vshll.u32 %v369, 16
    %v847 = vor.u32 %v844, %v845
    %v848 = vrot.slane %v844, 4
    %v850 = vshrl.u32 %v370, 16
    %v852 = vrot.slane %v850, 7
    %v853 = vshll.u32 %v370, 16
    %v855 = vor.u32 %v852, %v853
    %v856 = vsel %vm381, %v848, %v855
    %v857 = vrot.slane %v852, 4
    %v859 = vshrl.u32 %v371, 16
    %v861 = vrot.slane %v859, 7
    %v862 = vshll.u32 %v371, 16
    %v864 = vor.u32 %v861, %v862
    %v865 = vrot.slane %v861, 4
    %v867 = vshrl.u32 %v372, 16
    %v869 = vrot.slane %v867, 7
    %v870 = vshll.u32 %v372, 16
    %v872 = vor.u32 %v869, %v870
    %v873 = vsel %vm381, %v865, %v872
    %v874 = vrot.slane %v869, 4
    %v876 = vshrl.u32 %v373, 16
    %v878 = vrot.slane %v876, 7
    %v879 = vshll.u32 %v373, 16
    %v881 = vor.u32 %v878, %v879
    %v882 = vrot.slane %v878, 4
    %v884 = vshrl.u32 %v374, 16
    %v886 = vrot.slane %v884, 7
    %v887 = vshll.u32 %v374, 16
    %v889 = vor.u32 %v886, %v887
    %v890 = vsel %vm381, %v882, %v889
    %v891 = vrot.slane %v886, 4
    %v893 = vshrl.u32 %v375, 16
    %v895 = vrot.slane %v893, 7
    %v896 = vshll.u32 %v375, 16
    %v898 = vor.u32 %v895, %v896
    %v899 = vrot.slane %v895, 4
    %v901 = vshrl.u32 %v376, 16
    %v903 = vrot.slane %v901, 7
    %v904 = vshll.u32 %v376, 16
    %v906 = vor.u32 %v903, %v904
    %v907 = vsel %vm381, %v899, %v906
    %v908 = vrot.slane %v903, 4
    %v910 = vshrl.u32 %v377, 16
    %v912 = vrot.slane %v910, 7
    %v913 = vshll.u32 %v377, 16
    %v915 = vor.u32 %v912, %v913
    %v916 = vrot.slane %v912, 4
    %v918 = vshrl.u32 %v378, 16
    %v920 = vrot.slane %v918, 7
    %v921 = vshll.u32 %v378, 16
    %v923 = vor.u32 %v920, %v921
    %v924 = vsel %vm381, %v916, %v923
    %v925 = vrot.slane %v920, 4
    %s1022 = scalar_lea.vmem [#allocation2], 12
    %vm1023 = vcmask 27648
    %vm1024 = vsmask.f32 7938
    %vm1025 = vmand %vm1023, %vm1024
    %v1026 = vld [vmem:[%s1022] sm:$0xf]
    %v1027 = vsel %vm1025, %v388, %v1026
    %1028 = vst [vmem:[%s1022] sm:$0xf] %v1027
    %1029 = vst.msk [vmem:[%s1022 + $0x4] sm:$0xf] %vm13, %v397
    %vm1030 = vcmask 24576
    %vm1031 = vmand %vm1030, %vm379
    %v1032 = vld [vmem:[%s1022 + $0x8] sm:$0x1]
    %v1033 = vsel %vm1031, %v398, %v1032
    %1034 = vst [vmem:[%s1022 + $0x8] sm:$0x1] %v1033
    %v1035 = vld [vmem:[%s1022 + $0xc] sm:$0xf]
    %v1036 = vsel %vm1025, %v405, %v1035
    %1037 = vst [vmem:[%s1022 + $0xc] sm:$0xf] %v1036
    %1038 = vst.msk [vmem:[%s1022 + $0x10] sm:$0xf] %vm13, %v414
    %v1039 = vld [vmem:[%s1022 + $0x14] sm:$0x1]
    %v1040 = vsel %vm1031, %v415, %v1039
    %1041 = vst [vmem:[%s1022 + $0x14] sm:$0x1] %v1040
    %v1042 = vld [vmem:[%s1022 + $0x18] sm:$0xf]
    %v1043 = vsel %vm1025, %v422, %v1042
    %1044 = vst [vmem:[%s1022 + $0x18] sm:$0xf] %v1043
    %1045 = vst.msk [vmem:[%s1022 + $0x1c] sm:$0xf] %vm13, %v431
    %v1046 = vld [vmem:[%s1022 + $0x20] sm:$0x1]
    %v1047 = vsel %vm1031, %v432, %v1046
    %1048 = vst [vmem:[%s1022 + $0x20] sm:$0x1] %v1047
    %v1049 = vld [vmem:[%s1022 + $0x24] sm:$0xf]
    %v1050 = vsel %vm1025, %v439, %v1049
    %1051 = vst [vmem:[%s1022 + $0x24] sm:$0xf] %v1050
    %1052 = vst.msk [vmem:[%s1022 + $0x28] sm:$0xf] %vm13, %v448
    %v1053 = vld [vmem:[%s1022 + $0x2c] sm:$0x1]
    %v1054 = vsel %vm1031, %v449, %v1053
    %1055 = vst [vmem:[%s1022 + $0x2c] sm:$0x1] %v1054
    %v1056 = vld [vmem:[%s1022 + $0x30] sm:$0xf]
    %v1057 = vsel %vm1025, %v456, %v1056
    %1058 = vst [vmem:[%s1022 + $0x30] sm:$0xf] %v1057
    %1059 = vst.msk [vmem:[%s1022 + $0x34] sm:$0xf] %vm13, %v465
    %v1060 = vld [vmem:[%s1022 + $0x38] sm:$0x1]
    %v1061 = vsel %vm1031, %v466, %v1060
    %1062 = vst [vmem:[%s1022 + $0x38] sm:$0x1] %v1061
    %v1063 = vld [vmem:[%s1022 + $0x3c] sm:$0xf]
    %v1064 = vsel %vm1025, %v473, %v1063
    %1065 = vst [vmem:[%s1022 + $0x3c] sm:$0xf] %v1064
    %1066 = vst.msk [vmem:[%s1022 + $0x40] sm:$0xf] %vm13, %v482
    %v1067 = vld [vmem:[%s1022 + $0x44] sm:$0x1]
    %v1068 = vsel %vm1031, %v483, %v1067
    %1069 = vst [vmem:[%s1022 + $0x44] sm:$0x1] %v1068
    %v1070 = vld [vmem:[%s1022 + $0x48] sm:$0xf]
    %v1071 = vsel %vm1025, %v490, %v1070
    %1072 = vst [vmem:[%s1022 + $0x48] sm:$0xf] %v1071
    %1073 = vst.msk [vmem:[%s1022 + $0x4c] sm:$0xf] %vm13, %v499
    %v1074 = vld [vmem:[%s1022 + $0x50] sm:$0x1]
    %v1075 = vsel %vm1031, %v500, %v1074
    %1076 = vst [vmem:[%s1022 + $0x50] sm:$0x1] %v1075
    %v1077 = vld [vmem:[%s1022 + $0x54] sm:$0xf]
    %v1078 = vsel %vm1025, %v507, %v1077
    %1079 = vst [vmem:[%s1022 + $0x54] sm:$0xf] %v1078
    %1080 = vst.msk [vmem:[%s1022 + $0x58] sm:$0xf] %vm13, %v516
    %v1081 = vld [vmem:[%s1022 + $0x5c] sm:$0x1]
    %v1082 = vsel %vm1031, %v517, %v1081
    %1083 = vst [vmem:[%s1022 + $0x5c] sm:$0x1] %v1082
    %v1084 = vld [vmem:[%s1022 + $0x60] sm:$0xf]
    %v1085 = vsel %vm1025, %v524, %v1084
    %1086 = vst [vmem:[%s1022 + $0x60] sm:$0xf] %v1085
    %1087 = vst.msk [vmem:[%s1022 + $0x64] sm:$0xf] %vm13, %v533
    %v1088 = vld [vmem:[%s1022 + $0x68] sm:$0x1]
    %v1089 = vsel %vm1031, %v534, %v1088
    %1090 = vst [vmem:[%s1022 + $0x68] sm:$0x1] %v1089
    %v1091 = vld [vmem:[%s1022 + $0x6c] sm:$0xf]
    %v1092 = vsel %vm1025, %v541, %v1091
    %1093 = vst [vmem:[%s1022 + $0x6c] sm:$0xf] %v1092
    %1094 = vst.msk [vmem:[%s1022 + $0x70] sm:$0xf] %vm13, %v550
    %v1095 = vld [vmem:[%s1022 + $0x74] sm:$0x1]
    %v1096 = vsel %vm1031, %v551, %v1095
    %1097 = vst [vmem:[%s1022 + $0x74] sm:$0x1] %v1096
    %v1098 = vld [vmem:[%s1022 + $0x78] sm:$0xf]
    %v1099 = vsel %vm1025, %v558, %v1098
    %1100 = vst [vmem:[%s1022 + $0x78] sm:$0xf] %v1099
    %1101 = vst.msk [vmem:[%s1022 + $0x7c] sm:$0xf] %vm13, %v567
    %v1102 = vld [vmem:[%s1022 + $0x80] sm:$0x1]
    %v1103 = vsel %vm1031, %v568, %v1102
    %1104 = vst [vmem:[%s1022 + $0x80] sm:$0x1] %v1103
    %v1105 = vld [vmem:[%s1022 + $0x84] sm:$0xf]
    %v1106 = vsel %vm1025, %v575, %v1105
    %1107 = vst [vmem:[%s1022 + $0x84] sm:$0xf] %v1106
    %1108 = vst.msk [vmem:[%s1022 + $0x88] sm:$0xf] %vm13, %v584
    %v1109 = vld [vmem:[%s1022 + $0x8c] sm:$0x1]
    %v1110 = vsel %vm1031, %v585, %v1109
    %1111 = vst [vmem:[%s1022 + $0x8c] sm:$0x1] %v1110
    %v1112 = vld [vmem:[%s1022 + $0x90] sm:$0xf]
    %v1113 = vsel %vm1025, %v592, %v1112
    %1114 = vst [vmem:[%s1022 + $0x90] sm:$0xf] %v1113
    %1115 = vst.msk [vmem:[%s1022 + $0x94] sm:$0xf] %vm13, %v601
    %v1116 = vld [vmem:[%s1022 + $0x98] sm:$0x1]
    %v1117 = vsel %vm1031, %v602, %v1116
    %1118 = vst [vmem:[%s1022 + $0x98] sm:$0x1] %v1117
    %v1119 = vld [vmem:[%s1022 + $0x9c] sm:$0xf]
    %v1120 = vsel %vm1025, %v609, %v1119
    %1121 = vst [vmem:[%s1022 + $0x9c] sm:$0xf] %v1120
    %1122 = vst.msk [vmem:[%s1022 + $0xa0] sm:$0xf] %vm13, %v618
    %v1123 = vld [vmem:[%s1022 + $0xa4] sm:$0x1]
    %v1124 = vsel %vm1031, %v619, %v1123
    %1125 = vst [vmem:[%s1022 + $0xa4] sm:$0x1] %v1124
    %v1126 = vld [vmem:[%s1022 + $0xa8] sm:$0xf]
    %v1127 = vsel %vm1025, %v626, %v1126
    %1128 = vst [vmem:[%s1022 + $0xa8] sm:$0xf] %v1127
    %1129 = vst.msk [vmem:[%s1022 + $0xac] sm:$0xf] %vm13, %v635
    %v1130 = vld [vmem:[%s1022 + $0xb0] sm:$0x1]
    %v1131 = vsel %vm1031, %v636, %v1130
    %1132 = vst [vmem:[%s1022 + $0xb0] sm:$0x1] %v1131
    %v1133 = vld [vmem:[%s1022 + $0xb4] sm:$0xf]
    %v1134 = vsel %vm1025, %v643, %v1133
    %1135 = vst [vmem:[%s1022 + $0xb4] sm:$0xf] %v1134
    %1136 = vst.msk [vmem:[%s1022 + $0xb8] sm:$0xf] %vm13, %v652
    %v1137 = vld [vmem:[%s1022 + $0xbc] sm:$0x1]
    %v1138 = vsel %vm1031, %v653, %v1137
    %1139 = vst [vmem:[%s1022 + $0xbc] sm:$0x1] %v1138
    %v1140 = vld [vmem:[%s1022 + $0xd8] sm:$0xf]
    %v1141 = vsel %vm1025, %v660, %v1140
    %1142 = vst [vmem:[%s1022 + $0xd8] sm:$0xf] %v1141
    %1143 = vst.msk [vmem:[%s1022 + $0xdc] sm:$0xf] %vm13, %v669
    %v1144 = vld [vmem:[%s1022 + $0xe0] sm:$0x1]
    %v1145 = vsel %vm1031, %v670, %v1144
    %1146 = vst [vmem:[%s1022 + $0xe0] sm:$0x1] %v1145
    %v1147 = vld [vmem:[%s1022 + $0xe4] sm:$0xf]
    %v1148 = vsel %vm1025, %v677, %v1147
    %1149 = vst [vmem:[%s1022 + $0xe4] sm:$0xf] %v1148
    %1150 = vst.msk [vmem:[%s1022 + $0xe8] sm:$0xf] %vm13, %v686
    %v1151 = vld [vmem:[%s1022 + $0xec] sm:$0x1]
    %v1152 = vsel %vm1031, %v687, %v1151
    %1153 = vst [vmem:[%s1022 + $0xec] sm:$0x1] %v1152
    %v1154 = vld [vmem:[%s1022 + $0xf0] sm:$0xf]
    %v1155 = vsel %vm1025, %v694, %v1154
    %1156 = vst [vmem:[%s1022 + $0xf0] sm:$0xf] %v1155
    %1157 = vst.msk [vmem:[%s1022 + $0xf4] sm:$0xf] %vm13, %v703
    %v1158 = vld [vmem:[%s1022 + $0xf8] sm:$0x1]
    %v1159 = vsel %vm1031, %v704, %v1158
    %1160 = vst [vmem:[%s1022 + $0xf8] sm:$0x1] %v1159
    %v1161 = vld [vmem:[%s1022 + $0xfc] sm:$0xf]
    %v1162 = vsel %vm1025, %v711, %v1161
    %1163 = vst [vmem:[%s1022 + $0xfc] sm:$0xf] %v1162
    %1164 = vst.msk [vmem:[%s1022 + $0x100] sm:$0xf] %vm13, %v720
    %v1165 = vld [vmem:[%s1022 + $0x104] sm:$0x1]
    %v1166 = vsel %vm1031, %v721, %v1165
    %1167 = vst [vmem:[%s1022 + $0x104] sm:$0x1] %v1166
    %v1168 = vld [vmem:[%s1022 + $0x108] sm:$0xf]
    %v1169 = vsel %vm1025, %v728, %v1168
    %1170 = vst [vmem:[%s1022 + $0x108] sm:$0xf] %v1169
    %1171 = vst.msk [vmem:[%s1022 + $0x10c] sm:$0xf] %vm13, %v737
    %v1172 = vld [vmem:[%s1022 + $0x110] sm:$0x1]
    %v1173 = vsel %vm1031, %v738, %v1172
    %1174 = vst [vmem:[%s1022 + $0x110] sm:$0x1] %v1173
    %v1175 = vld [vmem:[%s1022 + $0x114] sm:$0xf]
    %v1176 = vsel %vm1025, %v745, %v1175
    %1177 = vst [vmem:[%s1022 + $0x114] sm:$0xf] %v1176
    %1178 = vst.msk [vmem:[%s1022 + $0x118] sm:$0xf] %vm13, %v754
    %v1179 = vld [vmem:[%s1022 + $0x11c] sm:$0x1]
    %v1180 = vsel %vm1031, %v755, %v1179
    %1181 = vst [vmem:[%s1022 + $0x11c] sm:$0x1] %v1180
    %v1182 = vld [vmem:[%s1022 + $0x120] sm:$0xf]
    %v1183 = vsel %vm1025, %v762, %v1182
    %1184 = vst [vmem:[%s1022 + $0x120] sm:$0xf] %v1183
    %1185 = vst.msk [vmem:[%s1022 + $0x124] sm:$0xf] %vm13, %v771
    %v1186 = vld [vmem:[%s1022 + $0x128] sm:$0x1]
    %v1187 = vsel %vm1031, %v772, %v1186
    %1188 = vst [vmem:[%s1022 + $0x128] sm:$0x1] %v1187
    %v1189 = vld [vmem:[%s1022 + $0x12c] sm:$0xf]
    %v1190 = vsel %vm1025, %v779, %v1189
    %1191 = vst [vmem:[%s1022 + $0x12c] sm:$0xf] %v1190
    %1192 = vst.msk [vmem:[%s1022 + $0x130] sm:$0xf] %vm13, %v788
    %v1193 = vld [vmem:[%s1022 + $0x134] sm:$0x1]
    %v1194 = vsel %vm1031, %v789, %v1193
    %1195 = vst [vmem:[%s1022 + $0x134] sm:$0x1] %v1194
    %v1196 = vld [vmem:[%s1022 + $0x138] sm:$0xf]
    %v1197 = vsel %vm1025, %v796, %v1196
    %1198 = vst [vmem:[%s1022 + $0x138] sm:$0xf] %v1197
    %1199 = vst.msk [vmem:[%s1022 + $0x13c] sm:$0xf] %vm13, %v805
    %v1200 = vld [vmem:[%s1022 + $0x140] sm:$0x1]
    %v1201 = vsel %vm1031, %v806, %v1200
    %1202 = vst [vmem:[%s1022 + $0x140] sm:$0x1] %v1201
    %v1203 = vld [vmem:[%s1022 + $0x144] sm:$0xf]
    %v1204 = vsel %vm1025, %v813, %v1203
    %1205 = vst [vmem:[%s1022 + $0x144] sm:$0xf] %v1204
    %1206 = vst.msk [vmem:[%s1022 + $0x148] sm:$0xf] %vm13, %v822
    %v1207 = vld [vmem:[%s1022 + $0x14c] sm:$0x1]
    %v1208 = vsel %vm1031, %v823, %v1207
    %1209 = vst [vmem:[%s1022 + $0x14c] sm:$0x1] %v1208
    %v1210 = vld [vmem:[%s1022 + $0x150] sm:$0xf]
    %v1211 = vsel %vm1025, %v830, %v1210
    %1212 = vst [vmem:[%s1022 + $0x150] sm:$0xf] %v1211
    %1213 = vst.msk [vmem:[%s1022 + $0x154] sm:$0xf] %vm13, %v839
    %v1214 = vld [vmem:[%s1022 + $0x158] sm:$0x1]
    %v1215 = vsel %vm1031, %v840, %v1214
    %1216 = vst [vmem:[%s1022 + $0x158] sm:$0x1] %v1215
    %v1217 = vld [vmem:[%s1022 + $0x15c] sm:$0xf]
    %v1218 = vsel %vm1025, %v847, %v1217
    %1219 = vst [vmem:[%s1022 + $0x15c] sm:$0xf] %v1218
    %1220 = vst.msk [vmem:[%s1022 + $0x160] sm:$0xf] %vm13, %v856
    %v1221 = vld [vmem:[%s1022 + $0x164] sm:$0x1]
    %v1222 = vsel %vm1031, %v857, %v1221
    %1223 = vst [vmem:[%s1022 + $0x164] sm:$0x1] %v1222
    %v1224 = vld [vmem:[%s1022 + $0x168] sm:$0xf]
    %v1225 = vsel %vm1025, %v864, %v1224
    %1226 = vst [vmem:[%s1022 + $0x168] sm:$0xf] %v1225
    %1227 = vst.msk [vmem:[%s1022 + $0x16c] sm:$0xf] %vm13, %v873
    %v1228 = vld [vmem:[%s1022 + $0x170] sm:$0x1]
    %v1229 = vsel %vm1031, %v874, %v1228
    %1230 = vst [vmem:[%s1022 + $0x170] sm:$0x1] %v1229
    %v1231 = vld [vmem:[%s1022 + $0x174] sm:$0xf]
    %v1232 = vsel %vm1025, %v881, %v1231
    %1233 = vst [vmem:[%s1022 + $0x174] sm:$0xf] %v1232
    %1234 = vst.msk [vmem:[%s1022 + $0x178] sm:$0xf] %vm13, %v890
    %v1235 = vld [vmem:[%s1022 + $0x17c] sm:$0x1]
    %v1236 = vsel %vm1031, %v891, %v1235
    %1237 = vst [vmem:[%s1022 + $0x17c] sm:$0x1] %v1236
    %v1238 = vld [vmem:[%s1022 + $0x180] sm:$0xf]
    %v1239 = vsel %vm1025, %v898, %v1238
    %1240 = vst [vmem:[%s1022 + $0x180] sm:$0xf] %v1239
    %1241 = vst.msk [vmem:[%s1022 + $0x184] sm:$0xf] %vm13, %v907
    %v1242 = vld [vmem:[%s1022 + $0x188] sm:$0x1]
    %v1243 = vsel %vm1031, %v908, %v1242
    %1244 = vst [vmem:[%s1022 + $0x188] sm:$0x1] %v1243
    %v1245 = vld [vmem:[%s1022 + $0x18c] sm:$0xf]
    %v1246 = vsel %vm1025, %v915, %v1245
    %1247 = vst [vmem:[%s1022 + $0x18c] sm:$0xf] %v1246
    %1248 = vst.msk [vmem:[%s1022 + $0x190] sm:$0xf] %vm13, %v924
    %v1249 = vld [vmem:[%s1022 + $0x194] sm:$0x1]
    %v1250 = vsel %vm1031, %v925, %v1249
    %1251 = vst [vmem:[%s1022 + $0x194] sm:$0x1] %v1250
    %v1252 = vld [vmem:[#allocation2] sm:$0xf]
    %v1253 = vld [vmem:[#allocation2 + $0x4] sm:$0xf]
    %v1254 = vld [vmem:[#allocation2 + $0x8] sm:$0x1]
    %v1255 = vld [vmem:[#allocation2 + $0xc] sm:$0xf]
    %v1256 = vld [vmem:[#allocation2 + $0x10] sm:$0xf]
    %v1257 = vld [vmem:[#allocation2 + $0x14] sm:$0x1]
    %v1258 = vld [vmem:[#allocation2 + $0x18] sm:$0xf]
    %v1259 = vld [vmem:[#allocation2 + $0x1c] sm:$0xf]
    %v1260 = vld [vmem:[#allocation2 + $0x20] sm:$0x1]
    %v1261 = vld [vmem:[#allocation2 + $0x24] sm:$0xf]
    %v1262 = vld [vmem:[#allocation2 + $0x28] sm:$0xf]
    %v1263 = vld [vmem:[#allocation2 + $0x2c] sm:$0x1]
    %v1264 = vld [vmem:[#allocation2 + $0x30] sm:$0xf]
    %v1265 = vld [vmem:[#allocation2 + $0x34] sm:$0xf]
    %v1266 = vld [vmem:[#allocation2 + $0x38] sm:$0x1]
    %v1267 = vld [vmem:[#allocation2 + $0x3c] sm:$0xf]
    %v1268 = vld [vmem:[#allocation2 + $0x40] sm:$0xf]
    %v1269 = vld [vmem:[#allocation2 + $0x44] sm:$0x1]
    %v1270 = vld [vmem:[#allocation2 + $0x48] sm:$0xf]
    %v1271 = vld [vmem:[#allocation2 + $0x4c] sm:$0xf]
    %v1272 = vld [vmem:[#allocation2 + $0x50] sm:$0x1]
    %v1273 = vld [vmem:[#allocation2 + $0x54] sm:$0xf]
    %v1274 = vld [vmem:[#allocation2 + $0x58] sm:$0xf]
    %v1275 = vld [vmem:[#allocation2 + $0x5c] sm:$0x1]
    %v1276 = vld [vmem:[#allocation2 + $0x60] sm:$0xf]
    %v1277 = vld [vmem:[#allocation2 + $0x64] sm:$0xf]
    %v1278 = vld [vmem:[#allocation2 + $0x68] sm:$0x1]
    %v1279 = vld [vmem:[#allocation2 + $0x6c] sm:$0xf]
    %v1280 = vld [vmem:[#allocation2 + $0x70] sm:$0xf]
    %v1281 = vld [vmem:[#allocation2 + $0x74] sm:$0x1]
    %v1282 = vld [vmem:[#allocation2 + $0x78] sm:$0xf]
    %v1283 = vld [vmem:[#allocation2 + $0x7c] sm:$0xf]
    %v1284 = vld [vmem:[#allocation2 + $0x80] sm:$0x1]
    %v1285 = vld [vmem:[#allocation2 + $0x84] sm:$0xf]
    %v1286 = vld [vmem:[#allocation2 + $0x88] sm:$0xf]
    %v1287 = vld [vmem:[#allocation2 + $0x8c] sm:$0x1]
    %v1288 = vld [vmem:[#allocation2 + $0x90] sm:$0xf]
    %v1289 = vld [vmem:[#allocation2 + $0x94] sm:$0xf]
    %v1290 = vld [vmem:[#allocation2 + $0x98] sm:$0x1]
    %v1291 = vld [vmem:[#allocation2 + $0x9c] sm:$0xf]
    %v1292 = vld [vmem:[#allocation2 + $0xa0] sm:$0xf]
    %v1293 = vld [vmem:[#allocation2 + $0xa4] sm:$0x1]
    %v1294 = vld [vmem:[#allocation2 + $0xa8] sm:$0xf]
    %v1295 = vld [vmem:[#allocation2 + $0xac] sm:$0xf]
    %v1296 = vld [vmem:[#allocation2 + $0xb0] sm:$0x1]
    %v1297 = vld [vmem:[#allocation2 + $0xb4] sm:$0xf]
    %v1298 = vld [vmem:[#allocation2 + $0xb8] sm:$0xf]
    %v1299 = vld [vmem:[#allocation2 + $0xbc] sm:$0x1]
    %v1300 = vld [vmem:[#allocation2 + $0xc0] sm:$0xf]
    %v1301 = vld [vmem:[#allocation2 + $0xc4] sm:$0xf]
    %v1302 = vld [vmem:[#allocation2 + $0xc8] sm:$0x1]
    %v1303 = vld [vmem:[#allocation2 + $0xcc] sm:$0xf]
    %v1304 = vld [vmem:[#allocation2 + $0xd0] sm:$0xf]
    %v1305 = vld [vmem:[#allocation2 + $0xd4] sm:$0x1]
    %v1306 = vld [vmem:[#allocation2 + $0xd8] sm:$0xf]
    %v1307 = vld [vmem:[#allocation2 + $0xdc] sm:$0xf]
    %v1308 = vld [vmem:[#allocation2 + $0xe0] sm:$0x1]
    %v1309 = vld [vmem:[#allocation2 + $0xe4] sm:$0xf]
    %v1310 = vld [vmem:[#allocation2 + $0xe8] sm:$0xf]
    %v1311 = vld [vmem:[#allocation2 + $0xec] sm:$0x1]
    %v1312 = vld [vmem:[#allocation2 + $0xf0] sm:$0xf]
    %v1313 = vld [vmem:[#allocation2 + $0xf4] sm:$0xf]
    %v1314 = vld [vmem:[#allocation2 + $0xf8] sm:$0x1]
    %v1315 = vld [vmem:[#allocation2 + $0xfc] sm:$0xf]
    %v1316 = vld [vmem:[#allocation2 + $0x100] sm:$0xf]
    %v1317 = vld [vmem:[#allocation2 + $0x104] sm:$0x1]
    %v1318 = vld [vmem:[#allocation2 + $0x108] sm:$0xf]
    %v1319 = vld [vmem:[#allocation2 + $0x10c] sm:$0xf]
    %v1320 = vld [vmem:[#allocation2 + $0x110] sm:$0x1]
    %v1321 = vld [vmem:[#allocation2 + $0x114] sm:$0xf]
    %v1322 = vld [vmem:[#allocation2 + $0x118] sm:$0xf]
    %v1323 = vld [vmem:[#allocation2 + $0x11c] sm:$0x1]
    %v1324 = vld [vmem:[#allocation2 + $0x120] sm:$0xf]
    %v1325 = vld [vmem:[#allocation2 + $0x124] sm:$0xf]
    %v1326 = vld [vmem:[#allocation2 + $0x128] sm:$0x1]
    %v1327 = vld [vmem:[#allocation2 + $0x12c] sm:$0xf]
    %v1328 = vld [vmem:[#allocation2 + $0x130] sm:$0xf]
    %v1329 = vld [vmem:[#allocation2 + $0x134] sm:$0x1]
    %v1330 = vld [vmem:[#allocation2 + $0x138] sm:$0xf]
    %v1331 = vld [vmem:[#allocation2 + $0x13c] sm:$0xf]
    %v1332 = vld [vmem:[#allocation2 + $0x140] sm:$0x1]
    %v1333 = vld [vmem:[#allocation2 + $0x144] sm:$0xf]
    %v1334 = vld [vmem:[#allocation2 + $0x148] sm:$0xf]
    %v1335 = vld [vmem:[#allocation2 + $0x14c] sm:$0x1]
    %v1336 = vld [vmem:[#allocation2 + $0x150] sm:$0xf]
    %v1337 = vld [vmem:[#allocation2 + $0x154] sm:$0xf]
    %v1338 = vld [vmem:[#allocation2 + $0x158] sm:$0x1]
    %v1339 = vld [vmem:[#allocation2 + $0x15c] sm:$0xf]
    %v1340 = vld [vmem:[#allocation2 + $0x160] sm:$0xf]
    %v1341 = vld [vmem:[#allocation2 + $0x164] sm:$0x1]
    %v1342 = vld [vmem:[#allocation2 + $0x168] sm:$0xf]
    %v1343 = vld [vmem:[#allocation2 + $0x16c] sm:$0xf]
    %v1344 = vld [vmem:[#allocation2 + $0x170] sm:$0x1]
    %v1345 = vld [vmem:[#allocation2 + $0x174] sm:$0xf]
    %v1346 = vld [vmem:[#allocation2 + $0x178] sm:$0xf]
    %v1347 = vld [vmem:[#allocation2 + $0x17c] sm:$0x1]
    %v1348 = vld [vmem:[#allocation2 + $0x180] sm:$0xf]
    %v1349 = vld [vmem:[#allocation2 + $0x184] sm:$0xf]
    %v1350 = vld [vmem:[#allocation2 + $0x188] sm:$0x1]
    %v1351 = vld [vmem:[#allocation2 + $0x18c] sm:$0xf]
    %v1352 = vld [vmem:[#allocation2 + $0x190] sm:$0xf]
    %v1353 = vld [vmem:[#allocation2 + $0x194] sm:$0x1]
    %v1354 = vld [vmem:[#allocation2 + $0x198] sm:$0xf]
    %v1355 = vld [vmem:[#allocation2 + $0x19c] sm:$0xf]
    %v1356 = vld [vmem:[#allocation2 + $0x1a0] sm:$0x1]
    %v1357 = vld [vmem:[#allocation2 + $0x1a4] sm:$0xf]
    %v1358 = vld [vmem:[#allocation2 + $0x1a8] sm:$0xf]
    %v1359 = vld [vmem:[#allocation2 + $0x1ac] sm:$0x1]
    %v1424 = vunpack.c.l.b16 %v1252
    %v1425 = vunpack.c.l.b16 %v1253
    %v1426 = vunpack.c.l.b16 %v1255
    %v1427 = vunpack.c.l.b16 %v1256
    %v1428 = vunpack.c.l.b16 %v1258
    %v1429 = vunpack.c.l.b16 %v1259
    %v1430 = vunpack.c.l.b16 %v1261
    %v1431 = vunpack.c.l.b16 %v1262
    %v1432 = vunpack.c.l.b16 %v1264
    %v1433 = vunpack.c.l.b16 %v1265
    %v1434 = vunpack.c.l.b16 %v1267
    %v1435 = vunpack.c.l.b16 %v1268
    %v1436 = vunpack.c.l.b16 %v1270
    %v1437 = vunpack.c.l.b16 %v1271
    %v1438 = vunpack.c.l.b16 %v1273
    %v1439 = vunpack.c.l.b16 %v1274
    %v1440 = vunpack.c.l.b16 %v1276
    %v1441 = vunpack.c.l.b16 %v1277
    %v1442 = vunpack.c.l.b16 %v1279
    %v1443 = vunpack.c.l.b16 %v1280
    %v1444 = vunpack.c.l.b16 %v1282
    %v1445 = vunpack.c.l.b16 %v1283
    %v1446 = vunpack.c.l.b16 %v1285
    %v1447 = vunpack.c.l.b16 %v1286
    %v1448 = vunpack.c.l.b16 %v1288
    %v1449 = vunpack.c.l.b16 %v1289
    %v1450 = vunpack.c.l.b16 %v1291
    %v1451 = vunpack.c.l.b16 %v1292
    %v1452 = vunpack.c.l.b16 %v1294
    %v1453 = vunpack.c.l.b16 %v1295
    %v1454 = vunpack.c.l.b16 %v1297
    %v1455 = vunpack.c.l.b16 %v1298
    %v1456 = vunpack.c.l.b16 %v1306
    %v1457 = vunpack.c.l.b16 %v1307
    %v1458 = vunpack.c.l.b16 %v1309
    %v1459 = vunpack.c.l.b16 %v1310
    %v1460 = vunpack.c.l.b16 %v1312
    %v1461 = vunpack.c.l.b16 %v1313
    %v1462 = vunpack.c.l.b16 %v1315
    %v1463 = vunpack.c.l.b16 %v1316
    %v1464 = vunpack.c.l.b16 %v1318
    %v1465 = vunpack.c.l.b16 %v1319
    %v1466 = vunpack.c.l.b16 %v1321
    %v1467 = vunpack.c.l.b16 %v1322
    %v1468 = vunpack.c.l.b16 %v1324
    %v1469 = vunpack.c.l.b16 %v1325
    %v1470 = vunpack.c.l.b16 %v1327
    %v1471 = vunpack.c.l.b16 %v1328
    %v1472 = vunpack.c.l.b16 %v1330
    %v1473 = vunpack.c.l.b16 %v1331
    %v1474 = vunpack.c.l.b16 %v1333
    %v1475 = vunpack.c.l.b16 %v1334
    %v1476 = vunpack.c.l.b16 %v1336
    %v1477 = vunpack.c.l.b16 %v1337
    %v1478 = vunpack.c.l.b16 %v1339
    %v1479 = vunpack.c.l.b16 %v1340
    %v1480 = vunpack.c.l.b16 %v1342
    %v1481 = vunpack.c.l.b16 %v1343
    %v1482 = vunpack.c.l.b16 %v1345
    %v1483 = vunpack.c.l.b16 %v1346
    %v1484 = vunpack.c.l.b16 %v1348
    %v1485 = vunpack.c.l.b16 %v1349
    %v1486 = vunpack.c.l.b16 %v1351
    %v1487 = vunpack.c.l.b16 %v1352
    %v1488 = vpack.c.b16 %v1425, %v1424
    %v1489 = vpack.c.b16 %v1427, %v1426
    %v1490 = vpack.c.b16 %v1429, %v1428
    %v1491 = vpack.c.b16 %v1431, %v1430
    %v1492 = vpack.c.b16 %v1433, %v1432
    %v1493 = vpack.c.b16 %v1435, %v1434
    %v1494 = vpack.c.b16 %v1437, %v1436
    %v1495 = vpack.c.b16 %v1439, %v1438
    %v1496 = vpack.c.b16 %v1441, %v1440
    %v1497 = vpack.c.b16 %v1443, %v1442
    %v1498 = vpack.c.b16 %v1445, %v1444
    %v1499 = vpack.c.b16 %v1447, %v1446
    %v1500 = vpack.c.b16 %v1449, %v1448
    %v1501 = vpack.c.b16 %v1451, %v1450
    %v1502 = vpack.c.b16 %v1453, %v1452
    %v1503 = vpack.c.b16 %v1455, %v1454
    %v1504 = vpack.c.b16 %v1457, %v1456
    %v1505 = vpack.c.b16 %v1459, %v1458
    %v1506 = vpack.c.b16 %v1461, %v1460
    %v1507 = vpack.c.b16 %v1463, %v1462
    %v1508 = vpack.c.b16 %v1465, %v1464
    %v1509 = vpack.c.b16 %v1467, %v1466
    %v1510 = vpack.c.b16 %v1469, %v1468
    %v1511 = vpack.c.b16 %v1471, %v1470
    %v1512 = vpack.c.b16 %v1473, %v1472
    %v1513 = vpack.c.b16 %v1475, %v1474
    %v1514 = vpack.c.b16 %v1477, %v1476
    %v1515 = vpack.c.b16 %v1479, %v1478
    %v1516 = vpack.c.b16 %v1481, %v1480
    %v1517 = vpack.c.b16 %v1483, %v1482
    %v1518 = vpack.c.b16 %v1485, %v1484
    %v1519 = vpack.c.b16 %v1487, %v1486
    %vm1552 = vcmask 31744
    %1553 = vst.msk [vmem:[#allocation3] sm:$0xff] %vm1552, %v1488
    %1554 = vst.msk [vmem:[#allocation3 + $0x8] sm:$0xff] %vm1552, %v1489
    %1555 = vst.msk [vmem:[#allocation3 + $0x10] sm:$0xff] %vm1552, %v1490
    %1556 = vst.msk [vmem:[#allocation3 + $0x18] sm:$0xff] %vm1552, %v1491
    %1557 = vst.msk [vmem:[#allocation3 + $0x20] sm:$0xff] %vm1552, %v1492
    %1558 = vst.msk [vmem:[#allocation3 + $0x28] sm:$0xff] %vm1552, %v1493
    %1559 = vst.msk [vmem:[#allocation3 + $0x30] sm:$0xff] %vm1552, %v1494
    %1560 = vst.msk [vmem:[#allocation3 + $0x38] sm:$0xff] %vm1552, %v1495
    %1561 = vst.msk [vmem:[#allocation3 + $0x40] sm:$0xff] %vm1552, %v1496
    %1562 = vst.msk [vmem:[#allocation3 + $0x48] sm:$0xff] %vm1552, %v1497
    %1563 = vst.msk [vmem:[#allocation3 + $0x50] sm:$0xff] %vm1552, %v1498
    %1564 = vst.msk [vmem:[#allocation3 + $0x58] sm:$0xff] %vm1552, %v1499
    %1565 = vst.msk [vmem:[#allocation3 + $0x60] sm:$0xff] %vm1552, %v1500
    %1566 = vst.msk [vmem:[#allocation3 + $0x68] sm:$0xff] %vm1552, %v1501
    %1567 = vst.msk [vmem:[#allocation3 + $0x70] sm:$0xff] %vm1552, %v1502
    %1568 = vst.msk [vmem:[#allocation3 + $0x78] sm:$0xff] %vm1552, %v1503
    %1569 = vst.msk [vmem:[#allocation3 + $0x80] sm:$0xff] %vm1552, %v1504
    %1570 = vst.msk [vmem:[#allocation3 + $0x88] sm:$0xff] %vm1552, %v1505
    %1571 = vst.msk [vmem:[#allocation3 + $0x90] sm:$0xff] %vm1552, %v1506
    %1572 = vst.msk [vmem:[#allocation3 + $0x98] sm:$0xff] %vm1552, %v1507
    %1573 = vst.msk [vmem:[#allocation3 + $0xa0] sm:$0xff] %vm1552, %v1508
    %1574 = vst.msk [vmem:[#allocation3 + $0xa8] sm:$0xff] %vm1552, %v1509
    %1575 = vst.msk [vmem:[#allocation3 + $0xb0] sm:$0xff] %vm1552, %v1510
    %1576 = vst.msk [vmem:[#allocation3 + $0xb8] sm:$0xff] %vm1552, %v1511
    %1577 = vst.msk [vmem:[#allocation3 + $0xc0] sm:$0xff] %vm1552, %v1512
    %1578 = vst.msk [vmem:[#allocation3 + $0xc8] sm:$0xff] %vm1552, %v1513
    %1579 = vst.msk [vmem:[#allocation3 + $0xd0] sm:$0xff] %vm1552, %v1514
    %1580 = vst.msk [vmem:[#allocation3 + $0xd8] sm:$0xff] %vm1552, %v1515
    %1581 = vst.msk [vmem:[#allocation3 + $0xe0] sm:$0xff] %vm1552, %v1516
    %1582 = vst.msk [vmem:[#allocation3 + $0xe8] sm:$0xff] %vm1552, %v1517
    %1583 = vst.msk [vmem:[#allocation3 + $0xf0] sm:$0xff] %vm1552, %v1518
    %1584 = vst.msk [vmem:[#allocation3 + $0xf8] sm:$0xff] %vm1552, %v1519
    %vm1585 = vsmask.f32 3328
    %vm1586 = vsmask.f32 7440
    %vm1587 = vmor %vm1585, %vm1586
    %v1589 = vshrl.u32 %v1252, 16
    %v1591 = vrot.slane %v1589, 4
    %v1592 = vshll.u32 %v1252, 16
    %v1594 = vrot.slane %v1592, 5
    %v1595 = vor.u32 %v1591, %v1594
    %v1596 = vrot.slane %v1595, 4
    %v1598 = vshll.u32 %v1253, 16
    %v1600 = vrot.slane %v1598, 5
    %v1601 = vsel %vm1587, %v1596, %v1600
    %v1602 = vshrl.u32 %v1253, 16
    %v1604 = vrot.slane %v1602, 4
    %v1605 = vor.u32 %v1604, %v1600
    %v1606 = vrot.slane %v1605, 4
    %v1608 = vshll.u32 %v1254, 16
    %v1610 = vrot.slane %v1608, 5
    %v1611 = vsel %vm1587, %v1606, %v1610
    %v1613 = vshrl.u32 %v1255, 16
    %v1615 = vrot.slane %v1613, 4
    %v1616 = vshll.u32 %v1255, 16
    %v1618 = vrot.slane %v1616, 5
    %v1619 = vor.u32 %v1615, %v1618
    %v1620 = vrot.slane %v1619, 4
    %v1622 = vshll.u32 %v1256, 16
    %v1624 = vrot.slane %v1622, 5
    %v1625 = vsel %vm1587, %v1620, %v1624
    %v1626 = vshrl.u32 %v1256, 16
    %v1628 = vrot.slane %v1626, 4
    %v1629 = vor.u32 %v1628, %v1624
    %v1630 = vrot.slane %v1629, 4
    %v1632 = vshll.u32 %v1257, 16
    %v1634 = vrot.slane %v1632, 5
    %v1635 = vsel %vm1587, %v1630, %v1634
    %v1637 = vshrl.u32 %v1258, 16
    %v1639 = vrot.slane %v1637, 4
    %v1640 = vshll.u32 %v1258, 16
    %v1642 = vrot.slane %v1640, 5
    %v1643 = vor.u32 %v1639, %v1642
    %v1644 = vrot.slane %v1643, 4
    %v1646 = vshll.u32 %v1259, 16
    %v1648 = vrot.slane %v1646, 5
    %v1649 = vsel %vm1587, %v1644, %v1648
    %v1650 = vshrl.u32 %v1259, 16
    %v1652 = vrot.slane %v1650, 4
    %v1653 = vor.u32 %v1652, %v1648
    %v1654 = vrot.slane %v1653, 4
    %v1656 = vshll.u32 %v1260, 16
    %v1658 = vrot.slane %v1656, 5
    %v1659 = vsel %vm1587, %v1654, %v1658
    %v1661 = vshrl.u32 %v1261, 16
    %v1663 = vrot.slane %v1661, 4
    %v1664 = vshll.u32 %v1261, 16
    %v1666 = vrot.slane %v1664, 5
    %v1667 = vor.u32 %v1663, %v1666
    %v1668 = vrot.slane %v1667, 4
    %v1670 = vshll.u32 %v1262, 16
    %v1672 = vrot.slane %v1670, 5
    %v1673 = vsel %vm1587, %v1668, %v1672
    %v1674 = vshrl.u32 %v1262, 16
    %v1676 = vrot.slane %v1674, 4
    %v1677 = vor.u32 %v1676, %v1672
    %v1678 = vrot.slane %v1677, 4
    %v1680 = vshll.u32 %v1263, 16
    %v1682 = vrot.slane %v1680, 5
    %v1683 = vsel %vm1587, %v1678, %v1682
    %v1685 = vshrl.u32 %v1264, 16
    %v1687 = vrot.slane %v1685, 4
    %v1688 = vshll.u32 %v1264, 16
    %v1690 = vrot.slane %v1688, 5
    %v1691 = vor.u32 %v1687, %v1690
    %v1692 = vrot.slane %v1691, 4
    %v1694 = vshll.u32 %v1265, 16
    %v1696 = vrot.slane %v1694, 5
    %v1697 = vsel %vm1587, %v1692, %v1696
    %v1698 = vshrl.u32 %v1265, 16
    %v1700 = vrot.slane %v1698, 4
    %v1701 = vor.u32 %v1700, %v1696
    %v1702 = vrot.slane %v1701, 4
    %v1704 = vshll.u32 %v1266, 16
    %v1706 = vrot.slane %v1704, 5
    %v1707 = vsel %vm1587, %v1702, %v1706
    %v1709 = vshrl.u32 %v1267, 16
    %v1711 = vrot.slane %v1709, 4
    %v1712 = vshll.u32 %v1267, 16
    %v1714 = vrot.slane %v1712, 5
    %v1715 = vor.u32 %v1711, %v1714
    %v1716 = vrot.slane %v1715, 4
    %v1718 = vshll.u32 %v1268, 16
    %v1720 = vrot.slane %v1718, 5
    %v1721 = vsel %vm1587, %v1716, %v1720
    %v1722 = vshrl.u32 %v1268, 16
    %v1724 = vrot.slane %v1722, 4
    %v1725 = vor.u32 %v1724, %v1720
    %v1726 = vrot.slane %v1725, 4
    %v1728 = vshll.u32 %v1269, 16
    %v1730 = vrot.slane %v1728, 5
    %v1731 = vsel %vm1587, %v1726, %v1730
    %v1733 = vshrl.u32 %v1270, 16
    %v1735 = vrot.slane %v1733, 4
    %v1736 = vshll.u32 %v1270, 16
    %v1738 = vrot.slane %v1736, 5
    %v1739 = vor.u32 %v1735, %v1738
    %v1740 = vrot.slane %v1739, 4
    %v1742 = vshll.u32 %v1271, 16
    %v1744 = vrot.slane %v1742, 5
    %v1745 = vsel %vm1587, %v1740, %v1744
    %v1746 = vshrl.u32 %v1271, 16
    %v1748 = vrot.slane %v1746, 4
    %v1749 = vor.u32 %v1748, %v1744
    %v1750 = vrot.slane %v1749, 4
    %v1752 = vshll.u32 %v1272, 16
    %v1754 = vrot.slane %v1752, 5
    %v1755 = vsel %vm1587, %v1750, %v1754
    %v1757 = vshrl.u32 %v1273, 16
    %v1759 = vrot.slane %v1757, 4
    %v1760 = vshll.u32 %v1273, 16
    %v1762 = vrot.slane %v1760, 5
    %v1763 = vor.u32 %v1759, %v1762
    %v1764 = vrot.slane %v1763, 4
    %v1766 = vshll.u32 %v1274, 16
    %v1768 = vrot.slane %v1766, 5
    %v1769 = vsel %vm1587, %v1764, %v1768
    %v1770 = vshrl.u32 %v1274, 16
    %v1772 = vrot.slane %v1770, 4
    %v1773 = vor.u32 %v1772, %v1768
    %v1774 = vrot.slane %v1773, 4
    %v1776 = vshll.u32 %v1275, 16
    %v1778 = vrot.slane %v1776, 5
    %v1779 = vsel %vm1587, %v1774, %v1778
    %v1781 = vshrl.u32 %v1276, 16
    %v1783 = vrot.slane %v1781, 4
    %v1784 = vshll.u32 %v1276, 16
    %v1786 = vrot.slane %v1784, 5
    %v1787 = vor.u32 %v1783, %v1786
    %v1788 = vrot.slane %v1787, 4
    %v1790 = vshll.u32 %v1277, 16
    %v1792 = vrot.slane %v1790, 5
    %v1793 = vsel %vm1587, %v1788, %v1792
    %v1794 = vshrl.u32 %v1277, 16
    %v1796 = vrot.slane %v1794, 4
    %v1797 = vor.u32 %v1796, %v1792
    %v1798 = vrot.slane %v1797, 4
    %v1800 = vshll.u32 %v1278, 16
    %v1802 = vrot.slane %v1800, 5
    %v1803 = vsel %vm1587, %v1798, %v1802
    %v1805 = vshrl.u32 %v1279, 16
    %v1807 = vrot.slane %v1805, 4
    %v1808 = vshll.u32 %v1279, 16
    %v1810 = vrot.slane %v1808, 5
    %v1811 = vor.u32 %v1807, %v1810
    %v1812 = vrot.slane %v1811, 4
    %v1814 = vshll.u32 %v1280, 16
    %v1816 = vrot.slane %v1814, 5
    %v1817 = vsel %vm1587, %v1812, %v1816
    %v1818 = vshrl.u32 %v1280, 16
    %v1820 = vrot.slane %v1818, 4
    %v1821 = vor.u32 %v1820, %v1816
    %v1822 = vrot.slane %v1821, 4
    %v1824 = vshll.u32 %v1281, 16
    %v1826 = vrot.slane %v1824, 5
    %v1827 = vsel %vm1587, %v1822, %v1826
    %v1829 = vshrl.u32 %v1282, 16
    %v1831 = vrot.slane %v1829, 4
    %v1832 = vshll.u32 %v1282, 16
    %v1834 = vrot.slane %v1832, 5
    %v1835 = vor.u32 %v1831, %v1834
    %v1836 = vrot.slane %v1835, 4
    %v1838 = vshll.u32 %v1283, 16
    %v1840 = vrot.slane %v1838, 5
    %v1841 = vsel %vm1587, %v1836, %v1840
    %v1842 = vshrl.u32 %v1283, 16
    %v1844 = vrot.slane %v1842, 4
    %v1845 = vor.u32 %v1844, %v1840
    %v1846 = vrot.slane %v1845, 4
    %v1848 = vshll.u32 %v1284, 16
    %v1850 = vrot.slane %v1848, 5
    %v1851 = vsel %vm1587, %v1846, %v1850
    %v1853 = vshrl.u32 %v1285, 16
    %v1855 = vrot.slane %v1853, 4
    %v1856 = vshll.u32 %v1285, 16
    %v1858 = vrot.slane %v1856, 5
    %v1859 = vor.u32 %v1855, %v1858
    %v1860 = vrot.slane %v1859, 4
    %v1862 = vshll.u32 %v1286, 16
    %v1864 = vrot.slane %v1862, 5
    %v1865 = vsel %vm1587, %v1860, %v1864
    %v1866 = vshrl.u32 %v1286, 16
    %v1868 = vrot.slane %v1866, 4
    %v1869 = vor.u32 %v1868, %v1864
    %v1870 = vrot.slane %v1869, 4
    %v1872 = vshll.u32 %v1287, 16
    %v1874 = vrot.slane %v1872, 5
    %v1875 = vsel %vm1587, %v1870, %v1874
    %v1877 = vshrl.u32 %v1288, 16
    %v1879 = vrot.slane %v1877, 4
    %v1880 = vshll.u32 %v1288, 16
    %v1882 = vrot.slane %v1880, 5
    %v1883 = vor.u32 %v1879, %v1882
    %v1884 = vrot.slane %v1883, 4
    %v1886 = vshll.u32 %v1289, 16
    %v1888 = vrot.slane %v1886, 5
    %v1889 = vsel %vm1587, %v1884, %v1888
    %v1890 = vshrl.u32 %v1289, 16
    %v1892 = vrot.slane %v1890, 4
    %v1893 = vor.u32 %v1892, %v1888
    %v1894 = vrot.slane %v1893, 4
    %v1896 = vshll.u32 %v1290, 16
    %v1898 = vrot.slane %v1896, 5
    %v1899 = vsel %vm1587, %v1894, %v1898
    %v1901 = vshrl.u32 %v1291, 16
    %v1903 = vrot.slane %v1901, 4
    %v1904 = vshll.u32 %v1291, 16
    %v1906 = vrot.slane %v1904, 5
    %v1907 = vor.u32 %v1903, %v1906
    %v1908 = vrot.slane %v1907, 4
    %v1910 = vshll.u32 %v1292, 16
    %v1912 = vrot.slane %v1910, 5
    %v1913 = vsel %vm1587, %v1908, %v1912
    %v1914 = vshrl.u32 %v1292, 16
    %v1916 = vrot.slane %v1914, 4
    %v1917 = vor.u32 %v1916, %v1912
    %v1918 = vrot.slane %v1917, 4
    %v1920 = vshll.u32 %v1293, 16
    %v1922 = vrot.slane %v1920, 5
    %v1923 = vsel %vm1587, %v1918, %v1922
    %v1925 = vshrl.u32 %v1294, 16
    %v1927 = vrot.slane %v1925, 4
    %v1928 = vshll.u32 %v1294, 16
    %v1930 = vrot.slane %v1928, 5
    %v1931 = vor.u32 %v1927, %v1930
    %v1932 = vrot.slane %v1931, 4
    %v1934 = vshll.u32 %v1295, 16
    %v1936 = vrot.slane %v1934, 5
    %v1937 = vsel %vm1587, %v1932, %v1936
    %v1938 = vshrl.u32 %v1295, 16
    %v1940 = vrot.slane %v1938, 4
    %v1941 = vor.u32 %v1940, %v1936
    %v1942 = vrot.slane %v1941, 4
    %v1944 = vshll.u32 %v1296, 16
    %v1946 = vrot.slane %v1944, 5
    %v1947 = vsel %vm1587, %v1942, %v1946
    %v1949 = vshrl.u32 %v1297, 16
    %v1951 = vrot.slane %v1949, 4
    %v1952 = vshll.u32 %v1297, 16
    %v1954 = vrot.slane %v1952, 5
    %v1955 = vor.u32 %v1951, %v1954
    %v1956 = vrot.slane %v1955, 4
    %v1958 = vshll.u32 %v1298, 16
    %v1960 = vrot.slane %v1958, 5
    %v1961 = vsel %vm1587, %v1956, %v1960
    %v1962 = vshrl.u32 %v1298, 16
    %v1964 = vrot.slane %v1962, 4
    %v1965 = vor.u32 %v1964, %v1960
    %v1966 = vrot.slane %v1965, 4
    %v1968 = vshll.u32 %v1299, 16
    %v1970 = vrot.slane %v1968, 5
    %v1971 = vsel %vm1587, %v1966, %v1970
    %v1973 = vshrl.u32 %v1306, 16
    %v1975 = vrot.slane %v1973, 4
    %v1976 = vshll.u32 %v1306, 16
    %v1978 = vrot.slane %v1976, 5
    %v1979 = vor.u32 %v1975, %v1978
    %v1980 = vrot.slane %v1979, 4
    %v1982 = vshll.u32 %v1307, 16
    %v1984 = vrot.slane %v1982, 5
    %v1985 = vsel %vm1587, %v1980, %v1984
    %v1986 = vshrl.u32 %v1307, 16
    %v1988 = vrot.slane %v1986, 4
    %v1989 = vor.u32 %v1988, %v1984
    %v1990 = vrot.slane %v1989, 4
    %v1992 = vshll.u32 %v1308, 16
    %v1994 = vrot.slane %v1992, 5
    %v1995 = vsel %vm1587, %v1990, %v1994
    %v1997 = vshrl.u32 %v1309, 16
    %v1999 = vrot.slane %v1997, 4
    %v2000 = vshll.u32 %v1309, 16
    %v2002 = vrot.slane %v2000, 5
    %v2003 = vor.u32 %v1999, %v2002
    %v2004 = vrot.slane %v2003, 4
    %v2006 = vshll.u32 %v1310, 16
    %v2008 = vrot.slane %v2006, 5
    %v2009 = vsel %vm1587, %v2004, %v2008
    %v2010 = vshrl.u32 %v1310, 16
    %v2012 = vrot.slane %v2010, 4
    %v2013 = vor.u32 %v2012, %v2008
    %v2014 = vrot.slane %v2013, 4
    %v2016 = vshll.u32 %v1311, 16
    %v2018 = vrot.slane %v2016, 5
    %v2019 = vsel %vm1587, %v2014, %v2018
    %v2021 = vshrl.u32 %v1312, 16
    %v2023 = vrot.slane %v2021, 4
    %v2024 = vshll.u32 %v1312, 16
    %v2026 = vrot.slane %v2024, 5
    %v2027 = vor.u32 %v2023, %v2026
    %v2028 = vrot.slane %v2027, 4
    %v2030 = vshll.u32 %v1313, 16
    %v2032 = vrot.slane %v2030, 5
    %v2033 = vsel %vm1587, %v2028, %v2032
    %v2034 = vshrl.u32 %v1313, 16
    %v2036 = vrot.slane %v2034, 4
    %v2037 = vor.u32 %v2036, %v2032
    %v2038 = vrot.slane %v2037, 4
    %v2040 = vshll.u32 %v1314, 16
    %v2042 = vrot.slane %v2040, 5
    %v2043 = vsel %vm1587, %v2038, %v2042
    %v2045 = vshrl.u32 %v1315, 16
    %v2047 = vrot.slane %v2045, 4
    %v2048 = vshll.u32 %v1315, 16
    %v2050 = vrot.slane %v2048, 5
    %v2051 = vor.u32 %v2047, %v2050
    %v2052 = vrot.slane %v2051, 4
    %v2054 = vshll.u32 %v1316, 16
    %v2056 = vrot.slane %v2054, 5
    %v2057 = vsel %vm1587, %v2052, %v2056
    %v2058 = vshrl.u32 %v1316, 16
    %v2060 = vrot.slane %v2058, 4
    %v2061 = vor.u32 %v2060, %v2056
    %v2062 = vrot.slane %v2061, 4
    %v2064 = vshll.u32 %v1317, 16
    %v2066 = vrot.slane %v2064, 5
    %v2067 = vsel %vm1587, %v2062, %v2066
    %v2069 = vshrl.u32 %v1318, 16
    %v2071 = vrot.slane %v2069, 4
    %v2072 = vshll.u32 %v1318, 16
    %v2074 = vrot.slane %v2072, 5
    %v2075 = vor.u32 %v2071, %v2074
    %v2076 = vrot.slane %v2075, 4
    %v2078 = vshll.u32 %v1319, 16
    %v2080 = vrot.slane %v2078, 5
    %v2081 = vsel %vm1587, %v2076, %v2080
    %v2082 = vshrl.u32 %v1319, 16
    %v2084 = vrot.slane %v2082, 4
    %v2085 = vor.u32 %v2084, %v2080
    %v2086 = vrot.slane %v2085, 4
    %v2088 = vshll.u32 %v1320, 16
    %v2090 = vrot.slane %v2088, 5
    %v2091 = vsel %vm1587, %v2086, %v2090
    %v2093 = vshrl.u32 %v1321, 16
    %v2095 = vrot.slane %v2093, 4
    %v2096 = vshll.u32 %v1321, 16
    %v2098 = vrot.slane %v2096, 5
    %v2099 = vor.u32 %v2095, %v2098
    %v2100 = vrot.slane %v2099, 4
    %v2102 = vshll.u32 %v1322, 16
    %v2104 = vrot.slane %v2102, 5
    %v2105 = vsel %vm1587, %v2100, %v2104
    %v2106 = vshrl.u32 %v1322, 16
    %v2108 = vrot.slane %v2106, 4
    %v2109 = vor.u32 %v2108, %v2104
    %v2110 = vrot.slane %v2109, 4
    %v2112 = vshll.u32 %v1323, 16
    %v2114 = vrot.slane %v2112, 5
    %v2115 = vsel %vm1587, %v2110, %v2114
    %v2117 = vshrl.u32 %v1324, 16
    %v2119 = vrot.slane %v2117, 4
    %v2120 = vshll.u32 %v1324, 16
    %v2122 = vrot.slane %v2120, 5
    %v2123 = vor.u32 %v2119, %v2122
    %v2124 = vrot.slane %v2123, 4
    %v2126 = vshll.u32 %v1325, 16
    %v2128 = vrot.slane %v2126, 5
    %v2129 = vsel %vm1587, %v2124, %v2128
    %v2130 = vshrl.u32 %v1325, 16
    %v2132 = vrot.slane %v2130, 4
    %v2133 = vor.u32 %v2132, %v2128
    %v2134 = vrot.slane %v2133, 4
    %v2136 = vshll.u32 %v1326, 16
    %v2138 = vrot.slane %v2136, 5
    %v2139 = vsel %vm1587, %v2134, %v2138
    %v2141 = vshrl.u32 %v1327, 16
    %v2143 = vrot.slane %v2141, 4
    %v2144 = vshll.u32 %v1327, 16
    %v2146 = vrot.slane %v2144, 5
    %v2147 = vor.u32 %v2143, %v2146
    %v2148 = vrot.slane %v2147, 4
    %v2150 = vshll.u32 %v1328, 16
    %v2152 = vrot.slane %v2150, 5
    %v2153 = vsel %vm1587, %v2148, %v2152
    %v2154 = vshrl.u32 %v1328, 16
    %v2156 = vrot.slane %v2154, 4
    %v2157 = vor.u32 %v2156, %v2152
    %v2158 = vrot.slane %v2157, 4
    %v2160 = vshll.u32 %v1329, 16
    %v2162 = vrot.slane %v2160, 5
    %v2163 = vsel %vm1587, %v2158, %v2162
    %v2165 = vshrl.u32 %v1330, 16
    %v2167 = vrot.slane %v2165, 4
    %v2168 = vshll.u32 %v1330, 16
    %v2170 = vrot.slane %v2168, 5
    %v2171 = vor.u32 %v2167, %v2170
    %v2172 = vrot.slane %v2171, 4
    %v2174 = vshll.u32 %v1331, 16
    %v2176 = vrot.slane %v2174, 5
    %v2177 = vsel %vm1587, %v2172, %v2176
    %v2178 = vshrl.u32 %v1331, 16
    %v2180 = vrot.slane %v2178, 4
    %v2181 = vor.u32 %v2180, %v2176
    %v2182 = vrot.slane %v2181, 4
    %v2184 = vshll.u32 %v1332, 16
    %v2186 = vrot.slane %v2184, 5
    %v2187 = vsel %vm1587, %v2182, %v2186
    %v2189 = vshrl.u32 %v1333, 16
    %v2191 = vrot.slane %v2189, 4
    %v2192 = vshll.u32 %v1333, 16
    %v2194 = vrot.slane %v2192, 5
    %v2195 = vor.u32 %v2191, %v2194
    %v2196 = vrot.slane %v2195, 4
    %v2198 = vshll.u32 %v1334, 16
    %v2200 = vrot.slane %v2198, 5
    %v2201 = vsel %vm1587, %v2196, %v2200
    %v2202 = vshrl.u32 %v1334, 16
    %v2204 = vrot.slane %v2202, 4
    %v2205 = vor.u32 %v2204, %v2200
    %v2206 = vrot.slane %v2205, 4
    %v2208 = vshll.u32 %v1335, 16
    %v2210 = vrot.slane %v2208, 5
    %v2211 = vsel %vm1587, %v2206, %v2210
    %v2213 = vshrl.u32 %v1336, 16
    %v2215 = vrot.slane %v2213, 4
    %v2216 = vshll.u32 %v1336, 16
    %v2218 = vrot.slane %v2216, 5
    %v2219 = vor.u32 %v2215, %v2218
    %v2220 = vrot.slane %v2219, 4
    %v2222 = vshll.u32 %v1337, 16
    %v2224 = vrot.slane %v2222, 5
    %v2225 = vsel %vm1587, %v2220, %v2224
    %v2226 = vshrl.u32 %v1337, 16
    %v2228 = vrot.slane %v2226, 4
    %v2229 = vor.u32 %v2228, %v2224
    %v2230 = vrot.slane %v2229, 4
    %v2232 = vshll.u32 %v1338, 16
    %v2234 = vrot.slane %v2232, 5
    %v2235 = vsel %vm1587, %v2230, %v2234
    %v2237 = vshrl.u32 %v1339, 16
    %v2239 = vrot.slane %v2237, 4
    %v2240 = vshll.u32 %v1339, 16
    %v2242 = vrot.slane %v2240, 5
    %v2243 = vor.u32 %v2239, %v2242
    %v2244 = vrot.slane %v2243, 4
    %v2246 = vshll.u32 %v1340, 16
    %v2248 = vrot.slane %v2246, 5
    %v2249 = vsel %vm1587, %v2244, %v2248
    %v2250 = vshrl.u32 %v1340, 16
    %v2252 = vrot.slane %v2250, 4
    %v2253 = vor.u32 %v2252, %v2248
    %v2254 = vrot.slane %v2253, 4
    %v2256 = vshll.u32 %v1341, 16
    %v2258 = vrot.slane %v2256, 5
    %v2259 = vsel %vm1587, %v2254, %v2258
    %v2261 = vshrl.u32 %v1342, 16
    %v2263 = vrot.slane %v2261, 4
    %v2264 = vshll.u32 %v1342, 16
    %v2266 = vrot.slane %v2264, 5
    %v2267 = vor.u32 %v2263, %v2266
    %v2268 = vrot.slane %v2267, 4
    %v2270 = vshll.u32 %v1343, 16
    %v2272 = vrot.slane %v2270, 5
    %v2273 = vsel %vm1587, %v2268, %v2272
    %v2274 = vshrl.u32 %v1343, 16
    %v2276 = vrot.slane %v2274, 4
    %v2277 = vor.u32 %v2276, %v2272
    %v2278 = vrot.slane %v2277, 4
    %v2280 = vshll.u32 %v1344, 16
    %v2282 = vrot.slane %v2280, 5
    %v2283 = vsel %vm1587, %v2278, %v2282
    %v2285 = vshrl.u32 %v1345, 16
    %v2287 = vrot.slane %v2285, 4
    %v2288 = vshll.u32 %v1345, 16
    %v2290 = vrot.slane %v2288, 5
    %v2291 = vor.u32 %v2287, %v2290
    %v2292 = vrot.slane %v2291, 4
    %v2294 = vshll.u32 %v1346, 16
    %v2296 = vrot.slane %v2294, 5
    %v2297 = vsel %vm1587, %v2292, %v2296
    %v2298 = vshrl.u32 %v1346, 16
    %v2300 = vrot.slane %v2298, 4
    %v2301 = vor.u32 %v2300, %v2296
    %v2302 = vrot.slane %v2301, 4
    %v2304 = vshll.u32 %v1347, 16
    %v2306 = vrot.slane %v2304, 5
    %v2307 = vsel %vm1587, %v2302, %v2306
    %v2309 = vshrl.u32 %v1348, 16
    %v2311 = vrot.slane %v2309, 4
    %v2312 = vshll.u32 %v1348, 16
    %v2314 = vrot.slane %v2312, 5
    %v2315 = vor.u32 %v2311, %v2314
    %v2316 = vrot.slane %v2315, 4
    %v2318 = vshll.u32 %v1349, 16
    %v2320 = vrot.slane %v2318, 5
    %v2321 = vsel %vm1587, %v2316, %v2320
    %v2322 = vshrl.u32 %v1349, 16
    %v2324 = vrot.slane %v2322, 4
    %v2325 = vor.u32 %v2324, %v2320
    %v2326 = vrot.slane %v2325, 4
    %v2328 = vshll.u32 %v1350, 16
    %v2330 = vrot.slane %v2328, 5
    %v2331 = vsel %vm1587, %v2326, %v2330
    %v2333 = vshrl.u32 %v1351, 16
    %v2335 = vrot.slane %v2333, 4
    %v2336 = vshll.u32 %v1351, 16
    %v2338 = vrot.slane %v2336, 5
    %v2339 = vor.u32 %v2335, %v2338
    %v2340 = vrot.slane %v2339, 4
    %v2342 = vshll.u32 %v1352, 16
    %v2344 = vrot.slane %v2342, 5
    %v2345 = vsel %vm1587, %v2340, %v2344
    %v2346 = vshrl.u32 %v1352, 16
    %v2348 = vrot.slane %v2346, 4
    %v2349 = vor.u32 %v2348, %v2344
    %v2350 = vrot.slane %v2349, 4
    %v2352 = vshll.u32 %v1353, 16
    %v2354 = vrot.slane %v2352, 5
    %v2355 = vsel %vm1587, %v2350, %v2354
    %v2356 = vunpack.c.l.b16 %v1601
    %v2357 = vunpack.c.l.b16 %v1611
    %v2358 = vunpack.c.l.b16 %v1625
    %v2359 = vunpack.c.l.b16 %v1635
    %v2360 = vunpack.c.l.b16 %v1649
    %v2361 = vunpack.c.l.b16 %v1659
    %v2362 = vunpack.c.l.b16 %v1673
    %v2363 = vunpack.c.l.b16 %v1683
    %v2364 = vunpack.c.l.b16 %v1697
    %v2365 = vunpack.c.l.b16 %v1707
    %v2366 = vunpack.c.l.b16 %v1721
    %v2367 = vunpack.c.l.b16 %v1731
    %v2368 = vunpack.c.l.b16 %v1745
    %v2369 = vunpack.c.l.b16 %v1755
    %v2370 = vunpack.c.l.b16 %v1769
    %v2371 = vunpack.c.l.b16 %v1779
    %v2372 = vunpack.c.l.b16 %v1793
    %v2373 = vunpack.c.l.b16 %v1803
    %v2374 = vunpack.c.l.b16 %v1817
    %v2375 = vunpack.c.l.b16 %v1827
    %v2376 = vunpack.c.l.b16 %v1841
    %v2377 = vunpack.c.l.b16 %v1851
    %v2378 = vunpack.c.l.b16 %v1865
    %v2379 = vunpack.c.l.b16 %v1875
    %v2380 = vunpack.c.l.b16 %v1889
    %v2381 = vunpack.c.l.b16 %v1899
    %v2382 = vunpack.c.l.b16 %v1913
    %v2383 = vunpack.c.l.b16 %v1923
    %v2384 = vunpack.c.l.b16 %v1937
    %v2385 = vunpack.c.l.b16 %v1947
    %v2386 = vunpack.c.l.b16 %v1961
    %v2387 = vunpack.c.l.b16 %v1971
    %v2388 = vunpack.c.l.b16 %v1985
    %v2389 = vunpack.c.l.b16 %v1995
    %v2390 = vunpack.c.l.b16 %v2009
    %v2391 = vunpack.c.l.b16 %v2019
    %v2392 = vunpack.c.l.b16 %v2033
    %v2393 = vunpack.c.l.b16 %v2043
    %v2394 = vunpack.c.l.b16 %v2057
    %v2395 = vunpack.c.l.b16 %v2067
    %v2396 = vunpack.c.l.b16 %v2081
    %v2397 = vunpack.c.l.b16 %v2091
    %v2398 = vunpack.c.l.b16 %v2105
    %v2399 = vunpack.c.l.b16 %v2115
    %v2400 = vunpack.c.l.b16 %v2129
    %v2401 = vunpack.c.l.b16 %v2139
    %v2402 = vunpack.c.l.b16 %v2153
    %v2403 = vunpack.c.l.b16 %v2163
    %v2404 = vunpack.c.l.b16 %v2177
    %v2405 = vunpack.c.l.b16 %v2187
    %v2406 = vunpack.c.l.b16 %v2201
    %v2407 = vunpack.c.l.b16 %v2211
    %v2408 = vunpack.c.l.b16 %v2225
    %v2409 = vunpack.c.l.b16 %v2235
    %v2410 = vunpack.c.l.b16 %v2249
    %v2411 = vunpack.c.l.b16 %v2259
    %v2412 = vunpack.c.l.b16 %v2273
    %v2413 = vunpack.c.l.b16 %v2283
    %v2414 = vunpack.c.l.b16 %v2297
    %v2415 = vunpack.c.l.b16 %v2307
    %v2416 = vunpack.c.l.b16 %v2321
    %v2417 = vunpack.c.l.b16 %v2331
    %v2418 = vunpack.c.l.b16 %v2345
    %v2419 = vunpack.c.l.b16 %v2355
    %v2420 = vpack.c.b16 %v2357, %v2356
    %v2421 = vpack.c.b16 %v2359, %v2358
    %v2422 = vpack.c.b16 %v2361, %v2360
    %v2423 = vpack.c.b16 %v2363, %v2362
    %v2424 = vpack.c.b16 %v2365, %v2364
    %v2425 = vpack.c.b16 %v2367, %v2366
    %v2426 = vpack.c.b16 %v2369, %v2368
    %v2427 = vpack.c.b16 %v2371, %v2370
    %v2428 = vpack.c.b16 %v2373, %v2372
    %v2429 = vpack.c.b16 %v2375, %v2374
    %v2430 = vpack.c.b16 %v2377, %v2376
    %v2431 = vpack.c.b16 %v2379, %v2378
    %v2432 = vpack.c.b16 %v2381, %v2380
    %v2433 = vpack.c.b16 %v2383, %v2382
    %v2434 = vpack.c.b16 %v2385, %v2384
    %v2435 = vpack.c.b16 %v2387, %v2386
    %v2436 = vpack.c.b16 %v2389, %v2388
    %v2437 = vpack.c.b16 %v2391, %v2390
    %v2438 = vpack.c.b16 %v2393, %v2392
    %v2439 = vpack.c.b16 %v2395, %v2394
    %v2440 = vpack.c.b16 %v2397, %v2396
    %v2441 = vpack.c.b16 %v2399, %v2398
    %v2442 = vpack.c.b16 %v2401, %v2400
    %v2443 = vpack.c.b16 %v2403, %v2402
    %v2444 = vpack.c.b16 %v2405, %v2404
    %v2445 = vpack.c.b16 %v2407, %v2406
    %v2446 = vpack.c.b16 %v2409, %v2408
    %v2447 = vpack.c.b16 %v2411, %v2410
    %v2448 = vpack.c.b16 %v2413, %v2412
    %v2449 = vpack.c.b16 %v2415, %v2414
    %v2450 = vpack.c.b16 %v2417, %v2416
    %v2451 = vpack.c.b16 %v2419, %v2418
    %2452 = vrot.lane.b32.xlu0 %v2420, 4
    %v2453 = vpop.permute.xlu0 %2452
    %2454 = vrot.lane.b32.xlu0 %v2421, 4
    %v2455 = vpop.permute.xlu0 %2454
    %2456 = vrot.lane.b32.xlu0 %v2422, 4
    %v2457 = vpop.permute.xlu0 %2456
    %2458 = vrot.lane.b32.xlu0 %v2423, 4
    %v2459 = vpop.permute.xlu0 %2458
    %2460 = vrot.lane.b32.xlu0 %v2424, 4
    %v2461 = vpop.permute.xlu0 %2460
    %2462 = vrot.lane.b32.xlu0 %v2425, 4
    %v2463 = vpop.permute.xlu0 %2462
    %2464 = vrot.lane.b32.xlu0 %v2426, 4
    %v2465 = vpop.permute.xlu0 %2464
    %2466 = vrot.lane.b32.xlu0 %v2427, 4
    %v2467 = vpop.permute.xlu0 %2466
    %2468 = vrot.lane.b32.xlu0 %v2428, 4
    %v2469 = vpop.permute.xlu0 %2468
    %2470 = vrot.lane.b32.xlu0 %v2429, 4
    %v2471 = vpop.permute.xlu0 %2470
    %2472 = vrot.lane.b32.xlu0 %v2430, 4
    %v2473 = vpop.permute.xlu0 %2472
    %2474 = vrot.lane.b32.xlu0 %v2431, 4
    %v2475 = vpop.permute.xlu0 %2474
    %2476 = vrot.lane.b32.xlu0 %v2432, 4
    %v2477 = vpop.permute.xlu0 %2476
    %2478 = vrot.lane.b32.xlu0 %v2433, 4
    %v2479 = vpop.permute.xlu0 %2478
    %2480 = vrot.lane.b32.xlu0 %v2434, 4
    %v2481 = vpop.permute.xlu0 %2480
    %2482 = vrot.lane.b32.xlu0 %v2435, 4
    %v2483 = vpop.permute.xlu0 %2482
    %2484 = vrot.lane.b32.xlu0 %v2436, 4
    %v2485 = vpop.permute.xlu0 %2484
    %2486 = vrot.lane.b32.xlu0 %v2437, 4
    %v2487 = vpop.permute.xlu0 %2486
    %2488 = vrot.lane.b32.xlu0 %v2438, 4
    %v2489 = vpop.permute.xlu0 %2488
    %2490 = vrot.lane.b32.xlu0 %v2439, 4
    %v2491 = vpop.permute.xlu0 %2490
    %2492 = vrot.lane.b32.xlu0 %v2440, 4
    %v2493 = vpop.permute.xlu0 %2492
    %2494 = vrot.lane.b32.xlu0 %v2441, 4
    %v2495 = vpop.permute.xlu0 %2494
    %2496 = vrot.lane.b32.xlu0 %v2442, 4
    %v2497 = vpop.permute.xlu0 %2496
    %2498 = vrot.lane.b32.xlu0 %v2443, 4
    %v2499 = vpop.permute.xlu0 %2498
    %2500 = vrot.lane.b32.xlu0 %v2444, 4
    %v2501 = vpop.permute.xlu0 %2500
    %2502 = vrot.lane.b32.xlu0 %v2445, 4
    %v2503 = vpop.permute.xlu0 %2502
    %2504 = vrot.lane.b32.xlu0 %v2446, 4
    %v2505 = vpop.permute.xlu0 %2504
    %2506 = vrot.lane.b32.xlu0 %v2447, 4
    %v2507 = vpop.permute.xlu0 %2506
    %2508 = vrot.lane.b32.xlu0 %v2448, 4
    %v2509 = vpop.permute.xlu0 %2508
    %2510 = vrot.lane.b32.xlu0 %v2449, 4
    %v2511 = vpop.permute.xlu0 %2510
    %2512 = vrot.lane.b32.xlu0 %v2450, 4
    %v2513 = vpop.permute.xlu0 %2512
    %2514 = vrot.lane.b32.xlu0 %v2451, 4
    %v2515 = vpop.permute.xlu0 %2514
    %vm2548 = vcmask 64544
    %2549 = vst.msk [vmem:[#allocation3] sm:$0xff] %vm2548, %v2453
    %2550 = vst.msk [vmem:[#allocation3 + $0x8] sm:$0xff] %vm2548, %v2455
    %2551 = vst.msk [vmem:[#allocation3 + $0x10] sm:$0xff] %vm2548, %v2457
    %2552 = vst.msk [vmem:[#allocation3 + $0x18] sm:$0xff] %vm2548, %v2459
    %2553 = vst.msk [vmem:[#allocation3 + $0x20] sm:$0xff] %vm2548, %v2461
    %2554 = vst.msk [vmem:[#allocation3 + $0x28] sm:$0xff] %vm2548, %v2463
    %2555 = vst.msk [vmem:[#allocation3 + $0x30] sm:$0xff] %vm2548, %v2465
    %2556 = vst.msk [vmem:[#allocation3 + $0x38] sm:$0xff] %vm2548, %v2467
    %2557 = vst.msk [vmem:[#allocation3 + $0x40] sm:$0xff] %vm2548, %v2469
    %2558 = vst.msk [vmem:[#allocation3 + $0x48] sm:$0xff] %vm2548, %v2471
    %2559 = vst.msk [vmem:[#allocation3 + $0x50] sm:$0xff] %vm2548, %v2473
    %2560 = vst.msk [vmem:[#allocation3 + $0x58] sm:$0xff] %vm2548, %v2475
    %2561 = vst.msk [vmem:[#allocation3 + $0x60] sm:$0xff] %vm2548, %v2477
    %2562 = vst.msk [vmem:[#allocation3 + $0x68] sm:$0xff] %vm2548, %v2479
    %2563 = vst.msk [vmem:[#allocation3 + $0x70] sm:$0xff] %vm2548, %v2481
    %2564 = vst.msk [vmem:[#allocation3 + $0x78] sm:$0xff] %vm2548, %v2483
    %2565 = vst.msk [vmem:[#allocation3 + $0x80] sm:$0xff] %vm2548, %v2485
    %2566 = vst.msk [vmem:[#allocation3 + $0x88] sm:$0xff] %vm2548, %v2487
    %2567 = vst.msk [vmem:[#allocation3 + $0x90] sm:$0xff] %vm2548, %v2489
    %2568 = vst.msk [vmem:[#allocation3 + $0x98] sm:$0xff] %vm2548, %v2491
    %2569 = vst.msk [vmem:[#allocation3 + $0xa0] sm:$0xff] %vm2548, %v2493
    %2570 = vst.msk [vmem:[#allocation3 + $0xa8] sm:$0xff] %vm2548, %v2495
    %2571 = vst.msk [vmem:[#allocation3 + $0xb0] sm:$0xff] %vm2548, %v2497
    %2572 = vst.msk [vmem:[#allocation3 + $0xb8] sm:$0xff] %vm2548, %v2499
    %2573 = vst.msk [vmem:[#allocation3 + $0xc0] sm:$0xff] %vm2548, %v2501
    %2574 = vst.msk [vmem:[#allocation3 + $0xc8] sm:$0xff] %vm2548, %v2503
    %2575 = vst.msk [vmem:[#allocation3 + $0xd0] sm:$0xff] %vm2548, %v2505
    %2576 = vst.msk [vmem:[#allocation3 + $0xd8] sm:$0xff] %vm2548, %v2507
    %2577 = vst.msk [vmem:[#allocation3 + $0xe0] sm:$0xff] %vm2548, %v2509
    %2578 = vst.msk [vmem:[#allocation3 + $0xe8] sm:$0xff] %vm2548, %v2511
    %2579 = vst.msk [vmem:[#allocation3 + $0xf0] sm:$0xff] %vm2548, %v2513
    %2580 = vst.msk [vmem:[#allocation3 + $0xf8] sm:$0xff] %vm2548, %v2515
    %vm2613 = vcmask 1042432
    %vm2614 = vcmask 1046532
    %vm2615 = vmor %vm2613, %vm2614
    %v2616 = vrot.slane %v1252, 5
    %v2617 = vrot.slane %v2616, 4
    %v2618 = vrot.slane %v1253, 5
    %v2619 = vsel %vm2615, %v2617, %v2618
    %v2620 = vrot.slane %v2618, 4
    %v2621 = vrot.slane %v1254, 5
    %v2622 = vsel %vm2615, %v2620, %v2621
    %v2623 = vrot.slane %v1255, 5
    %v2624 = vrot.slane %v2623, 4
    %v2625 = vrot.slane %v1256, 5
    %v2626 = vsel %vm2615, %v2624, %v2625
    %v2627 = vrot.slane %v2625, 4
    %v2628 = vrot.slane %v1257, 5
    %v2629 = vsel %vm2615, %v2627, %v2628
    %v2630 = vrot.slane %v1258, 5
    %v2631 = vrot.slane %v2630, 4
    %v2632 = vrot.slane %v1259, 5
    %v2633 = vsel %vm2615, %v2631, %v2632
    %v2634 = vrot.slane %v2632, 4
    %v2635 = vrot.slane %v1260, 5
    %v2636 = vsel %vm2615, %v2634, %v2635
    %v2637 = vrot.slane %v1261, 5
    %v2638 = vrot.slane %v2637, 4
    %v2639 = vrot.slane %v1262, 5
    %v2640 = vsel %vm2615, %v2638, %v2639
    %v2641 = vrot.slane %v2639, 4
    %v2642 = vrot.slane %v1263, 5
    %v2643 = vsel %vm2615, %v2641, %v2642
    %v2644 = vrot.slane %v1264, 5
    %v2645 = vrot.slane %v2644, 4
    %v2646 = vrot.slane %v1265, 5
    %v2647 = vsel %vm2615, %v2645, %v2646
    %v2648 = vrot.slane %v2646, 4
    %v2649 = vrot.slane %v1266, 5
    %v2650 = vsel %vm2615, %v2648, %v2649
    %v2651 = vrot.slane %v1267, 5
    %v2652 = vrot.slane %v2651, 4
    %v2653 = vrot.slane %v1268, 5
    %v2654 = vsel %vm2615, %v2652, %v2653
    %v2655 = vrot.slane %v2653, 4
    %v2656 = vrot.slane %v1269, 5
    %v2657 = vsel %vm2615, %v2655, %v2656
    %v2658 = vrot.slane %v1270, 5
    %v2659 = vrot.slane %v2658, 4
    %v2660 = vrot.slane %v1271, 5
    %v2661 = vsel %vm2615, %v2659, %v2660
    %v2662 = vrot.slane %v2660, 4
    %v2663 = vrot.slane %v1272, 5
    %v2664 = vsel %vm2615, %v2662, %v2663
    %v2665 = vrot.slane %v1273, 5
    %v2666 = vrot.slane %v2665, 4
    %v2667 = vrot.slane %v1274, 5
    %v2668 = vsel %vm2615, %v2666, %v2667
    %v2669 = vrot.slane %v2667, 4
    %v2670 = vrot.slane %v1275, 5
    %v2671 = vsel %vm2615, %v2669, %v2670
    %v2672 = vrot.slane %v1276, 5
    %v2673 = vrot.slane %v2672, 4
    %v2674 = vrot.slane %v1277, 5
    %v2675 = vsel %vm2615, %v2673, %v2674
    %v2676 = vrot.slane %v2674, 4
    %v2677 = vrot.slane %v1278, 5
    %v2678 = vsel %vm2615, %v2676, %v2677
    %v2679 = vrot.slane %v1279, 5
    %v2680 = vrot.slane %v2679, 4
    %v2681 = vrot.slane %v1280, 5
    %v2682 = vsel %vm2615, %v2680, %v2681
    %v2683 = vrot.slane %v2681, 4
    %v2684 = vrot.slane %v1281, 5
    %v2685 = vsel %vm2615, %v2683, %v2684
    %v2686 = vrot.slane %v1282, 5
    %v2687 = vrot.slane %v2686, 4
    %v2688 = vrot.slane %v1283, 5
    %v2689 = vsel %vm2615, %v2687, %v2688
    %v2690 = vrot.slane %v2688, 4
    %v2691 = vrot.slane %v1284, 5
    %v2692 = vsel %vm2615, %v2690, %v2691
    %v2693 = vrot.slane %v1285, 5
    %v2694 = vrot.slane %v2693, 4
    %v2695 = vrot.slane %v1286, 5
    %v2696 = vsel %vm2615, %v2694, %v2695
    %v2697 = vrot.slane %v2695, 4
    %v2698 = vrot.slane %v1287, 5
    %v2699 = vsel %vm2615, %v2697, %v2698
    %v2700 = vrot.slane %v1288, 5
    %v2701 = vrot.slane %v2700, 4
    %v2702 = vrot.slane %v1289, 5
    %v2703 = vsel %vm2615, %v2701, %v2702
    %v2704 = vrot.slane %v2702, 4
    %v2705 = vrot.slane %v1290, 5
    %v2706 = vsel %vm2615, %v2704, %v2705
    %v2707 = vrot.slane %v1291, 5
    %v2708 = vrot.slane %v2707, 4
    %v2709 = vrot.slane %v1292, 5
    %v2710 = vsel %vm2615, %v2708, %v2709
    %v2711 = vrot.slane %v2709, 4
    %v2712 = vrot.slane %v1293, 5
    %v2713 = vsel %vm2615, %v2711, %v2712
    %v2714 = vrot.slane %v1294, 5
    %v2715 = vrot.slane %v2714, 4
    %v2716 = vrot.slane %v1295, 5
    %v2717 = vsel %vm2615, %v2715, %v2716
    %v2718 = vrot.slane %v2716, 4
    %v2719 = vrot.slane %v1296, 5
    %v2720 = vsel %vm2615, %v2718, %v2719
    %v2721 = vrot.slane %v1297, 5
    %v2722 = vrot.slane %v2721, 4
    %v2723 = vrot.slane %v1298, 5
    %v2724 = vsel %vm2615, %v2722, %v2723
    %v2725 = vrot.slane %v2723, 4
    %v2726 = vrot.slane %v1299, 5
    %v2727 = vsel %vm2615, %v2725, %v2726
    %v2728 = vrot.slane %v1306, 5
    %v2729 = vrot.slane %v2728, 4
    %v2730 = vrot.slane %v1307, 5
    %v2731 = vsel %vm2615, %v2729, %v2730
    %v2732 = vrot.slane %v2730, 4
    %v2733 = vrot.slane %v1308, 5
    %v2734 = vsel %vm2615, %v2732, %v2733
    %v2735 = vrot.slane %v1309, 5
    %v2736 = vrot.slane %v2735, 4
    %v2737 = vrot.slane %v1310, 5
    %v2738 = vsel %vm2615, %v2736, %v2737
    %v2739 = vrot.slane %v2737, 4
    %v2740 = vrot.slane %v1311, 5
    %v2741 = vsel %vm2615, %v2739, %v2740
    %v2742 = vrot.slane %v1312, 5
    %v2743 = vrot.slane %v2742, 4
    %v2744 = vrot.slane %v1313, 5
    %v2745 = vsel %vm2615, %v2743, %v2744
    %v2746 = vrot.slane %v2744, 4
    %v2747 = vrot.slane %v1314, 5
    %v2748 = vsel %vm2615, %v2746, %v2747
    %v2749 = vrot.slane %v1315, 5
    %v2750 = vrot.slane %v2749, 4
    %v2751 = vrot.slane %v1316, 5
    %v2752 = vsel %vm2615, %v2750, %v2751
    %v2753 = vrot.slane %v2751, 4
    %v2754 = vrot.slane %v1317, 5
    %v2755 = vsel %vm2615, %v2753, %v2754
    %v2756 = vrot.slane %v1318, 5
    %v2757 = vrot.slane %v2756, 4
    %v2758 = vrot.slane %v1319, 5
    %v2759 = vsel %vm2615, %v2757, %v2758
    %v2760 = vrot.slane %v2758, 4
    %v2761 = vrot.slane %v1320, 5
    %v2762 = vsel %vm2615, %v2760, %v2761
    %v2763 = vrot.slane %v1321, 5
    %v2764 = vrot.slane %v2763, 4
    %v2765 = vrot.slane %v1322, 5
    %v2766 = vsel %vm2615, %v2764, %v2765
    %v2767 = vrot.slane %v2765, 4
    %v2768 = vrot.slane %v1323, 5
    %v2769 = vsel %vm2615, %v2767, %v2768
    %v2770 = vrot.slane %v1324, 5
    %v2771 = vrot.slane %v2770, 4
    %v2772 = vrot.slane %v1325, 5
    %v2773 = vsel %vm2615, %v2771, %v2772
    %v2774 = vrot.slane %v2772, 4
    %v2775 = vrot.slane %v1326, 5
    %v2776 = vsel %vm2615, %v2774, %v2775
    %v2777 = vrot.slane %v1327, 5
    %v2778 = vrot.slane %v2777, 4
    %v2779 = vrot.slane %v1328, 5
    %v2780 = vsel %vm2615, %v2778, %v2779
    %v2781 = vrot.slane %v2779, 4
    %v2782 = vrot.slane %v1329, 5
    %v2783 = vsel %vm2615, %v2781, %v2782
    %v2784 = vrot.slane %v1330, 5
    %v2785 = vrot.slane %v2784, 4
    %v2786 = vrot.slane %v1331, 5
    %v2787 = vsel %vm2615, %v2785, %v2786
    %v2788 = vrot.slane %v2786, 4
    %v2789 = vrot.slane %v1332, 5
    %v2790 = vsel %vm2615, %v2788, %v2789
    %v2791 = vrot.slane %v1333, 5
    %v2792 = vrot.slane %v2791, 4
    %v2793 = vrot.slane %v1334, 5
    %v2794 = vsel %vm2615, %v2792, %v2793
    %v2795 = vrot.slane %v2793, 4
    %v2796 = vrot.slane %v1335, 5
    %v2797 = vsel %vm2615, %v2795, %v2796
    %v2798 = vrot.slane %v1336, 5
    %v2799 = vrot.slane %v2798, 4
    %v2800 = vrot.slane %v1337, 5
    %v2801 = vsel %vm2615, %v2799, %v2800
    %v2802 = vrot.slane %v2800, 4
    %v2803 = vrot.slane %v1338, 5
    %v2804 = vsel %vm2615, %v2802, %v2803
    %v2805 = vrot.slane %v1339, 5
    %v2806 = vrot.slane %v2805, 4
    %v2807 = vrot.slane %v1340, 5
    %v2808 = vsel %vm2615, %v2806, %v2807
    %v2809 = vrot.slane %v2807, 4
    %v2810 = vrot.slane %v1341, 5
    %v2811 = vsel %vm2615, %v2809, %v2810
    %v2812 = vrot.slane %v1342, 5
    %v2813 = vrot.slane %v2812, 4
    %v2814 = vrot.slane %v1343, 5
    %v2815 = vsel %vm2615, %v2813, %v2814
    %v2816 = vrot.slane %v2814, 4
    %v2817 = vrot.slane %v1344, 5
    %v2818 = vsel %vm2615, %v2816, %v2817
    %v2819 = vrot.slane %v1345, 5
    %v2820 = vrot.slane %v2819, 4
    %v2821 = vrot.slane %v1346, 5
    %v2822 = vsel %vm2615, %v2820, %v2821
    %v2823 = vrot.slane %v2821, 4
    %v2824 = vrot.slane %v1347, 5
    %v2825 = vsel %vm2615, %v2823, %v2824
    %v2826 = vrot.slane %v1348, 5
    %v2827 = vrot.slane %v2826, 4
    %v2828 = vrot.slane %v1349, 5
    %v2829 = vsel %vm2615, %v2827, %v2828
    %v2830 = vrot.slane %v2828, 4
    %v2831 = vrot.slane %v1350, 5
    %v2832 = vsel %vm2615, %v2830, %v2831
    %v2833 = vrot.slane %v1351, 5
    %v2834 = vrot.slane %v2833, 4
    %v2835 = vrot.slane %v1352, 5
    %v2836 = vsel %vm2615, %v2834, %v2835
    %v2837 = vrot.slane %v2835, 4
    %v2838 = vrot.slane %v1353, 5
    %v2839 = vsel %vm2615, %v2837, %v2838
    %v2840 = vunpack.c.l.b16 %v2619
    %v2841 = vunpack.c.l.b16 %v2622
    %v2842 = vunpack.c.l.b16 %v2626
    %v2843 = vunpack.c.l.b16 %v2629
    %v2844 = vunpack.c.l.b16 %v2633
    %v2845 = vunpack.c.l.b16 %v2636
    %v2846 = vunpack.c.l.b16 %v2640
    %v2847 = vunpack.c.l.b16 %v2643
    %v2848 = vunpack.c.l.b16 %v2647
    %v2849 = vunpack.c.l.b16 %v2650
    %v2850 = vunpack.c.l.b16 %v2654
    %v2851 = vunpack.c.l.b16 %v2657
    %v2852 = vunpack.c.l.b16 %v2661
    %v2853 = vunpack.c.l.b16 %v2664
    %v2854 = vunpack.c.l.b16 %v2668
    %v2855 = vunpack.c.l.b16 %v2671
    %v2856 = vunpack.c.l.b16 %v2675
    %v2857 = vunpack.c.l.b16 %v2678
    %v2858 = vunpack.c.l.b16 %v2682
    %v2859 = vunpack.c.l.b16 %v2685
    %v2860 = vunpack.c.l.b16 %v2689
    %v2861 = vunpack.c.l.b16 %v2692
    %v2862 = vunpack.c.l.b16 %v2696
    %v2863 = vunpack.c.l.b16 %v2699
    %v2864 = vunpack.c.l.b16 %v2703
    %v2865 = vunpack.c.l.b16 %v2706
    %v2866 = vunpack.c.l.b16 %v2710
    %v2867 = vunpack.c.l.b16 %v2713
    %v2868 = vunpack.c.l.b16 %v2717
    %v2869 = vunpack.c.l.b16 %v2720
    %v2870 = vunpack.c.l.b16 %v2724
    %v2871 = vunpack.c.l.b16 %v2727
    %v2872 = vunpack.c.l.b16 %v2731
    %v2873 = vunpack.c.l.b16 %v2734
    %v2874 = vunpack.c.l.b16 %v2738
    %v2875 = vunpack.c.l.b16 %v2741
    %v2876 = vunpack.c.l.b16 %v2745
    %v2877 = vunpack.c.l.b16 %v2748
    %v2878 = vunpack.c.l.b16 %v2752
    %v2879 = vunpack.c.l.b16 %v2755
    %v2880 = vunpack.c.l.b16 %v2759
    %v2881 = vunpack.c.l.b16 %v2762
    %v2882 = vunpack.c.l.b16 %v2766
    %v2883 = vunpack.c.l.b16 %v2769
    %v2884 = vunpack.c.l.b16 %v2773
    %v2885 = vunpack.c.l.b16 %v2776
    %v2886 = vunpack.c.l.b16 %v2780
    %v2887 = vunpack.c.l.b16 %v2783
    %v2888 = vunpack.c.l.b16 %v2787
    %v2889 = vunpack.c.l.b16 %v2790
    %v2890 = vunpack.c.l.b16 %v2794
    %v2891 = vunpack.c.l.b16 %v2797
    %v2892 = vunpack.c.l.b16 %v2801
    %v2893 = vunpack.c.l.b16 %v2804
    %v2894 = vunpack.c.l.b16 %v2808
    %v2895 = vunpack.c.l.b16 %v2811
    %v2896 = vunpack.c.l.b16 %v2815
    %v2897 = vunpack.c.l.b16 %v2818
    %v2898 = vunpack.c.l.b16 %v2822
    %v2899 = vunpack.c.l.b16 %v2825
    %v2900 = vunpack.c.l.b16 %v2829
    %v2901 = vunpack.c.l.b16 %v2832
    %v2902 = vunpack.c.l.b16 %v2836
    %v2903 = vunpack.c.l.b16 %v2839
    %v2904 = vpack.c.b16 %v2841, %v2840
    %v2905 = vpack.c.b16 %v2843, %v2842
    %v2906 = vpack.c.b16 %v2845, %v2844
    %v2907 = vpack.c.b16 %v2847, %v2846
    %v2908 = vpack.c.b16 %v2849, %v2848
    %v2909 = vpack.c.b16 %v2851, %v2850
    %v2910 = vpack.c.b16 %v2853, %v2852
    %v2911 = vpack.c.b16 %v2855, %v2854
    %v2912 = vpack.c.b16 %v2857, %v2856
    %v2913 = vpack.c.b16 %v2859, %v2858
    %v2914 = vpack.c.b16 %v2861, %v2860
    %v2915 = vpack.c.b16 %v2863, %v2862
    %v2916 = vpack.c.b16 %v2865, %v2864
    %v2917 = vpack.c.b16 %v2867, %v2866
    %v2918 = vpack.c.b16 %v2869, %v2868
    %v2919 = vpack.c.b16 %v2871, %v2870
    %v2920 = vpack.c.b16 %v2873, %v2872
    %v2921 = vpack.c.b16 %v2875, %v2874
    %v2922 = vpack.c.b16 %v2877, %v2876
    %v2923 = vpack.c.b16 %v2879, %v2878
    %v2924 = vpack.c.b16 %v2881, %v2880
    %v2925 = vpack.c.b16 %v2883, %v2882
    %v2926 = vpack.c.b16 %v2885, %v2884
    %v2927 = vpack.c.b16 %v2887, %v2886
    %v2928 = vpack.c.b16 %v2889, %v2888
    %v2929 = vpack.c.b16 %v2891, %v2890
    %v2930 = vpack.c.b16 %v2893, %v2892
    %v2931 = vpack.c.b16 %v2895, %v2894
    %v2932 = vpack.c.b16 %v2897, %v2896
    %v2933 = vpack.c.b16 %v2899, %v2898
    %v2934 = vpack.c.b16 %v2901, %v2900
    %v2935 = vpack.c.b16 %v2903, %v2902
    %2936 = vrot.lane.b32.xlu0 %v2904, 8
    %v2937 = vpop.permute.xlu0 %2936
    %2938 = vrot.lane.b32.xlu0 %v2905, 8
    %v2939 = vpop.permute.xlu0 %2938
    %2940 = vrot.lane.b32.xlu0 %v2906, 8
    %v2941 = vpop.permute.xlu0 %2940
    %2942 = vrot.lane.b32.xlu0 %v2907, 8
    %v2943 = vpop.permute.xlu0 %2942
    %2944 = vrot.lane.b32.xlu0 %v2908, 8
    %v2945 = vpop.permute.xlu0 %2944
    %2946 = vrot.lane.b32.xlu0 %v2909, 8
    %v2947 = vpop.permute.xlu0 %2946
    %2948 = vrot.lane.b32.xlu0 %v2910, 8
    %v2949 = vpop.permute.xlu0 %2948
    %2950 = vrot.lane.b32.xlu0 %v2911, 8
    %v2951 = vpop.permute.xlu0 %2950
    %2952 = vrot.lane.b32.xlu0 %v2912, 8
    %v2953 = vpop.permute.xlu0 %2952
    %2954 = vrot.lane.b32.xlu0 %v2913, 8
    %v2955 = vpop.permute.xlu0 %2954
    %2956 = vrot.lane.b32.xlu0 %v2914, 8
    %v2957 = vpop.permute.xlu0 %2956
    %2958 = vrot.lane.b32.xlu0 %v2915, 8
    %v2959 = vpop.permute.xlu0 %2958
    %2960 = vrot.lane.b32.xlu0 %v2916, 8
    %v2961 = vpop.permute.xlu0 %2960
    %2962 = vrot.lane.b32.xlu0 %v2917, 8
    %v2963 = vpop.permute.xlu0 %2962
    %2964 = vrot.lane.b32.xlu0 %v2918, 8
    %v2965 = vpop.permute.xlu0 %2964
    %2966 = vrot.lane.b32.xlu0 %v2919, 8
    %v2967 = vpop.permute.xlu0 %2966
    %2968 = vrot.lane.b32.xlu0 %v2920, 8
    %v2969 = vpop.permute.xlu0 %2968
    %2970 = vrot.lane.b32.xlu0 %v2921, 8
    %v2971 = vpop.permute.xlu0 %2970
    %2972 = vrot.lane.b32.xlu0 %v2922, 8
    %v2973 = vpop.permute.xlu0 %2972
    %2974 = vrot.lane.b32.xlu0 %v2923, 8
    %v2975 = vpop.permute.xlu0 %2974
    %2976 = vrot.lane.b32.xlu0 %v2924, 8
    %v2977 = vpop.permute.xlu0 %2976
    %2978 = vrot.lane.b32.xlu0 %v2925, 8
    %v2979 = vpop.permute.xlu0 %2978
    %2980 = vrot.lane.b32.xlu0 %v2926, 8
    %v2981 = vpop.permute.xlu0 %2980
    %2982 = vrot.lane.b32.xlu0 %v2927, 8
    %v2983 = vpop.permute.xlu0 %2982
    %2984 = vrot.lane.b32.xlu0 %v2928, 8
    %v2985 = vpop.permute.xlu0 %2984
    %2986 = vrot.lane.b32.xlu0 %v2929, 8
    %v2987 = vpop.permute.xlu0 %2986
    %2988 = vrot.lane.b32.xlu0 %v2930, 8
    %v2989 = vpop.permute.xlu0 %2988
    %2990 = vrot.lane.b32.xlu0 %v2931, 8
    %v2991 = vpop.permute.xlu0 %2990
    %2992 = vrot.lane.b32.xlu0 %v2932, 8
    %v2993 = vpop.permute.xlu0 %2992
    %2994 = vrot.lane.b32.xlu0 %v2933, 8
    %v2995 = vpop.permute.xlu0 %2994
    %2996 = vrot.lane.b32.xlu0 %v2934, 8
    %v2997 = vpop.permute.xlu0 %2996
    %2998 = vrot.lane.b32.xlu0 %v2935, 8
    %v2999 = vpop.permute.xlu0 %2998
    %vm3032 = vcmask 97344
    %3033 = vst.msk [vmem:[#allocation3] sm:$0xff] %vm3032, %v2937
    %3034 = vst.msk [vmem:[#allocation3 + $0x8] sm:$0xff] %vm3032, %v2939
    %3035 = vst.msk [vmem:[#allocation3 + $0x10] sm:$0xff] %vm3032, %v2941
    %3036 = vst.msk [vmem:[#allocation3 + $0x18] sm:$0xff] %vm3032, %v2943
    %3037 = vst.msk [vmem:[#allocation3 + $0x20] sm:$0xff] %vm3032, %v2945
    %3038 = vst.msk [vmem:[#allocation3 + $0x28] sm:$0xff] %vm3032, %v2947
    %3039 = vst.msk [vmem:[#allocation3 + $0x30] sm:$0xff] %vm3032, %v2949
    %3040 = vst.msk [vmem:[#allocation3 + $0x38] sm:$0xff] %vm3032, %v2951
    %3041 = vst.msk [vmem:[#allocation3 + $0x40] sm:$0xff] %vm3032, %v2953
    %3042 = vst.msk [vmem:[#allocation3 + $0x48] sm:$0xff] %vm3032, %v2955
    %3043 = vst.msk [vmem:[#allocation3 + $0x50] sm:$0xff] %vm3032, %v2957
    %3044 = vst.msk [vmem:[#allocation3 + $0x58] sm:$0xff] %vm3032, %v2959
    %3045 = vst.msk [vmem:[#allocation3 + $0x60] sm:$0xff] %vm3032, %v2961
    %3046 = vst.msk [vmem:[#allocation3 + $0x68] sm:$0xff] %vm3032, %v2963
    %3047 = vst.msk [vmem:[#allocation3 + $0x70] sm:$0xff] %vm3032, %v2965
    %3048 = vst.msk [vmem:[#allocation3 + $0x78] sm:$0xff] %vm3032, %v2967
    %3049 = vst.msk [vmem:[#allocation3 + $0x80] sm:$0xff] %vm3032, %v2969
    %3050 = vst.msk [vmem:[#allocation3 + $0x88] sm:$0xff] %vm3032, %v2971
    %3051 = vst.msk [vmem:[#allocation3 + $0x90] sm:$0xff] %vm3032, %v2973
    %3052 = vst.msk [vmem:[#allocation3 + $0x98] sm:$0xff] %vm3032, %v2975
    %3053 = vst.msk [vmem:[#allocation3 + $0xa0] sm:$0xff] %vm3032, %v2977
    %3054 = vst.msk [vmem:[#allocation3 + $0xa8] sm:$0xff] %vm3032, %v2979
    %3055 = vst.msk [vmem:[#allocation3 + $0xb0] sm:$0xff] %vm3032, %v2981
    %3056 = vst.msk [vmem:[#allocation3 + $0xb8] sm:$0xff] %vm3032, %v2983
    %3057 = vst.msk [vmem:[#allocation3 + $0xc0] sm:$0xff] %vm3032, %v2985
    %3058 = vst.msk [vmem:[#allocation3 + $0xc8] sm:$0xff] %vm3032, %v2987
    %3059 = vst.msk [vmem:[#allocation3 + $0xd0] sm:$0xff] %vm3032, %v2989
    %3060 = vst.msk [vmem:[#allocation3 + $0xd8] sm:$0xff] %vm3032, %v2991
    %3061 = vst.msk [vmem:[#allocation3 + $0xe0] sm:$0xff] %vm3032, %v2993
    %3062 = vst.msk [vmem:[#allocation3 + $0xe8] sm:$0xff] %vm3032, %v2995
    %3063 = vst.msk [vmem:[#allocation3 + $0xf0] sm:$0xff] %vm3032, %v2997
    %3064 = vst.msk [vmem:[#allocation3 + $0xf8] sm:$0xff] %vm3032, %v2999
    %v3069 = vunpack.c.l.b16 %v1300
    %v3070 = vunpack.c.l.b16 %v1301
    %v3071 = vunpack.c.l.b16 %v1354
    %v3072 = vunpack.c.l.b16 %v1355
    %v3073 = vpack.c.b16 %v3070, %v3069
    %v3074 = vpack.c.b16 %v3072, %v3071
    %3075 = vrot.lane.b32.xlu0 %v1489, 12
    %v3076 = vpop.permute.xlu0 %3075
    %3077 = vrot.lane.b32.xlu0 %v1490, 12
    %v3078 = vpop.permute.xlu0 %3077
    %3079 = vrot.lane.b32.xlu0 %v1491, 12
    %v3080 = vpop.permute.xlu0 %3079
    %3081 = vrot.lane.b32.xlu0 %v1492, 12
    %v3082 = vpop.permute.xlu0 %3081
    %3083 = vrot.lane.b32.xlu0 %v1493, 12
    %v3084 = vpop.permute.xlu0 %3083
    %3085 = vrot.lane.b32.xlu0 %v1494, 12
    %v3086 = vpop.permute.xlu0 %3085
    %3087 = vrot.lane.b32.xlu0 %v1495, 12
    %v3088 = vpop.permute.xlu0 %3087
    %3089 = vrot.lane.b32.xlu0 %v1496, 12
    %v3090 = vpop.permute.xlu0 %3089
    %3091 = vrot.lane.b32.xlu0 %v1497, 12
    %v3092 = vpop.permute.xlu0 %3091
    %3093 = vrot.lane.b32.xlu0 %v1498, 12
    %v3094 = vpop.permute.xlu0 %3093
    %3095 = vrot.lane.b32.xlu0 %v1499, 12
    %v3096 = vpop.permute.xlu0 %3095
    %3097 = vrot.lane.b32.xlu0 %v1500, 12
    %v3098 = vpop.permute.xlu0 %3097
    %3099 = vrot.lane.b32.xlu0 %v1501, 12
    %v3100 = vpop.permute.xlu0 %3099
    %3101 = vrot.lane.b32.xlu0 %v1502, 12
    %v3102 = vpop.permute.xlu0 %3101
    %3103 = vrot.lane.b32.xlu0 %v1503, 12
    %v3104 = vpop.permute.xlu0 %3103
    %3105 = vrot.lane.b32.xlu0 %v3073, 12
    %v3106 = vpop.permute.xlu0 %3105
    %3107 = vrot.lane.b32.xlu0 %v1505, 12
    %v3108 = vpop.permute.xlu0 %3107
    %3109 = vrot.lane.b32.xlu0 %v1506, 12
    %v3110 = vpop.permute.xlu0 %3109
    %3111 = vrot.lane.b32.xlu0 %v1507, 12
    %v3112 = vpop.permute.xlu0 %3111
    %3113 = vrot.lane.b32.xlu0 %v1508, 12
    %v3114 = vpop.permute.xlu0 %3113
    %3115 = vrot.lane.b32.xlu0 %v1509, 12
    %v3116 = vpop.permute.xlu0 %3115
    %3117 = vrot.lane.b32.xlu0 %v1510, 12
    %v3118 = vpop.permute.xlu0 %3117
    %3119 = vrot.lane.b32.xlu0 %v1511, 12
    %v3120 = vpop.permute.xlu0 %3119
    %3121 = vrot.lane.b32.xlu0 %v1512, 12
    %v3122 = vpop.permute.xlu0 %3121
    %3123 = vrot.lane.b32.xlu0 %v1513, 12
    %v3124 = vpop.permute.xlu0 %3123
    %3125 = vrot.lane.b32.xlu0 %v1514, 12
    %v3126 = vpop.permute.xlu0 %3125
    %3127 = vrot.lane.b32.xlu0 %v1515, 12
    %v3128 = vpop.permute.xlu0 %3127
    %3129 = vrot.lane.b32.xlu0 %v1516, 12
    %v3130 = vpop.permute.xlu0 %3129
    %3131 = vrot.lane.b32.xlu0 %v1517, 12
    %v3132 = vpop.permute.xlu0 %3131
    %3133 = vrot.lane.b32.xlu0 %v1518, 12
    %v3134 = vpop.permute.xlu0 %3133
    %3135 = vrot.lane.b32.xlu0 %v1519, 12
    %v3136 = vpop.permute.xlu0 %3135
    %3137 = vrot.lane.b32.xlu0 %v3074, 12
    %v3138 = vpop.permute.xlu0 %3137
    %vm3171 = vcmask 130144
    %3172 = vst.msk [vmem:[#allocation3] sm:$0xff] %vm3171, %v3076
    %3173 = vst.msk [vmem:[#allocation3 + $0x8] sm:$0xff] %vm3171, %v3078
    %3174 = vst.msk [vmem:[#allocation3 + $0x10] sm:$0xff] %vm3171, %v3080
    %3175 = vst.msk [vmem:[#allocation3 + $0x18] sm:$0xff] %vm3171, %v3082
    %3176 = vst.msk [vmem:[#allocation3 + $0x20] sm:$0xff] %vm3171, %v3084
    %3177 = vst.msk [vmem:[#allocation3 + $0x28] sm:$0xff] %vm3171, %v3086
    %3178 = vst.msk [vmem:[#allocation3 + $0x30] sm:$0xff] %vm3171, %v3088
    %3179 = vst.msk [vmem:[#allocation3 + $0x38] sm:$0xff] %vm3171, %v3090
    %3180 = vst.msk [vmem:[#allocation3 + $0x40] sm:$0xff] %vm3171, %v3092
    %3181 = vst.msk [vmem:[#allocation3 + $0x48] sm:$0xff] %vm3171, %v3094
    %3182 = vst.msk [vmem:[#allocation3 + $0x50] sm:$0xff] %vm3171, %v3096
    %3183 = vst.msk [vmem:[#allocation3 + $0x58] sm:$0xff] %vm3171, %v3098
    %3184 = vst.msk [vmem:[#allocation3 + $0x60] sm:$0xff] %vm3171, %v3100
    %3185 = vst.msk [vmem:[#allocation3 + $0x68] sm:$0xff] %vm3171, %v3102
    %3186 = vst.msk [vmem:[#allocation3 + $0x70] sm:$0xff] %vm3171, %v3104
    %3187 = vst.msk [vmem:[#allocation3 + $0x78] sm:$0xff] %vm3171, %v3106
    %3188 = vst.msk [vmem:[#allocation3 + $0x80] sm:$0xff] %vm3171, %v3108
    %3189 = vst.msk [vmem:[#allocation3 + $0x88] sm:$0xff] %vm3171, %v3110
    %3190 = vst.msk [vmem:[#allocation3 + $0x90] sm:$0xff] %vm3171, %v3112
    %3191 = vst.msk [vmem:[#allocation3 + $0x98] sm:$0xff] %vm3171, %v3114
    %3192 = vst.msk [vmem:[#allocation3 + $0xa0] sm:$0xff] %vm3171, %v3116
    %3193 = vst.msk [vmem:[#allocation3 + $0xa8] sm:$0xff] %vm3171, %v3118
    %3194 = vst.msk [vmem:[#allocation3 + $0xb0] sm:$0xff] %vm3171, %v3120
    %3195 = vst.msk [vmem:[#allocation3 + $0xb8] sm:$0xff] %vm3171, %v3122
    %3196 = vst.msk [vmem:[#allocation3 + $0xc0] sm:$0xff] %vm3171, %v3124
    %3197 = vst.msk [vmem:[#allocation3 + $0xc8] sm:$0xff] %vm3171, %v3126
    %3198 = vst.msk [vmem:[#allocation3 + $0xd0] sm:$0xff] %vm3171, %v3128
    %3199 = vst.msk [vmem:[#allocation3 + $0xd8] sm:$0xff] %vm3171, %v3130
    %3200 = vst.msk [vmem:[#allocation3 + $0xe0] sm:$0xff] %vm3171, %v3132
    %3201 = vst.msk [vmem:[#allocation3 + $0xe8] sm:$0xff] %vm3171, %v3134
    %3202 = vst.msk [vmem:[#allocation3 + $0xf0] sm:$0xff] %vm3171, %v3136
    %3203 = vst.msk [vmem:[#allocation3 + $0xf8] sm:$0xff] %vm3171, %v3138
    %v3205 = vshrl.u32 %v1300, 16
    %v3207 = vrot.slane %v3205, 4
    %v3208 = vshll.u32 %v1300, 16
    %v3210 = vrot.slane %v3208, 5
    %v3211 = vor.u32 %v3207, %v3210
    %v3212 = vrot.slane %v3211, 4
    %v3214 = vshll.u32 %v1301, 16
    %v3216 = vrot.slane %v3214, 5
    %v3217 = vsel %vm1587, %v3212, %v3216
    %v3218 = vshrl.u32 %v1301, 16
    %v3220 = vrot.slane %v3218, 4
    %v3221 = vor.u32 %v3220, %v3216
    %v3222 = vrot.slane %v3221, 4
    %v3224 = vshll.u32 %v1302, 16
    %v3226 = vrot.slane %v3224, 5
    %v3227 = vsel %vm1587, %v3222, %v3226
    %v3229 = vshrl.u32 %v1354, 16
    %v3231 = vrot.slane %v3229, 4
    %v3232 = vshll.u32 %v1354, 16
    %v3234 = vrot.slane %v3232, 5
    %v3235 = vor.u32 %v3231, %v3234
    %v3236 = vrot.slane %v3235, 4
    %v3238 = vshll.u32 %v1355, 16
    %v3240 = vrot.slane %v3238, 5
    %v3241 = vsel %vm1587, %v3236, %v3240
    %v3242 = vshrl.u32 %v1355, 16
    %v3244 = vrot.slane %v3242, 4
    %v3245 = vor.u32 %v3244, %v3240
    %v3246 = vrot.slane %v3245, 4
    %v3248 = vshll.u32 %v1356, 16
    %v3250 = vrot.slane %v3248, 5
    %v3251 = vsel %vm1587, %v3246, %v3250
    %v3252 = vunpack.c.l.b16 %v3217
    %v3253 = vunpack.c.l.b16 %v3227
    %v3254 = vunpack.c.l.b16 %v3241
    %v3255 = vunpack.c.l.b16 %v3251
    %v3256 = vpack.c.b16 %v3253, %v3252
    %v3257 = vpack.c.b16 %v3255, %v3254
    %3258 = vrot.lane.b32.xlu0 %v2421, 16
    %v3259 = vpop.permute.xlu0 %3258
    %3260 = vrot.lane.b32.xlu0 %v2422, 16
    %v3261 = vpop.permute.xlu0 %3260
    %3262 = vrot.lane.b32.xlu0 %v2423, 16
    %v3263 = vpop.permute.xlu0 %3262
    %3264 = vrot.lane.b32.xlu0 %v2424, 16
    %v3265 = vpop.permute.xlu0 %3264
    %3266 = vrot.lane.b32.xlu0 %v2425, 16
    %v3267 = vpop.permute.xlu0 %3266
    %3268 = vrot.lane.b32.xlu0 %v2426, 16
    %v3269 = vpop.permute.xlu0 %3268
    %3270 = vrot.lane.b32.xlu0 %v2427, 16
    %v3271 = vpop.permute.xlu0 %3270
    %3272 = vrot.lane.b32.xlu0 %v2428, 16
    %v3273 = vpop.permute.xlu0 %3272
    %3274 = vrot.lane.b32.xlu0 %v2429, 16
    %v3275 = vpop.permute.xlu0 %3274
    %3276 = vrot.lane.b32.xlu0 %v2430, 16
    %v3277 = vpop.permute.xlu0 %3276
    %3278 = vrot.lane.b32.xlu0 %v2431, 16
    %v3279 = vpop.permute.xlu0 %3278
    %3280 = vrot.lane.b32.xlu0 %v2432, 16
    %v3281 = vpop.permute.xlu0 %3280
    %3282 = vrot.lane.b32.xlu0 %v2433, 16
    %v3283 = vpop.permute.xlu0 %3282
    %3284 = vrot.lane.b32.xlu0 %v2434, 16
    %v3285 = vpop.permute.xlu0 %3284
    %3286 = vrot.lane.b32.xlu0 %v2435, 16
    %v3287 = vpop.permute.xlu0 %3286
    %3288 = vrot.lane.b32.xlu0 %v3256, 16
    %v3289 = vpop.permute.xlu0 %3288
    %3290 = vrot.lane.b32.xlu0 %v2437, 16
    %v3291 = vpop.permute.xlu0 %3290
    %3292 = vrot.lane.b32.xlu0 %v2438, 16
    %v3293 = vpop.permute.xlu0 %3292
    %3294 = vrot.lane.b32.xlu0 %v2439, 16
    %v3295 = vpop.permute.xlu0 %3294
    %3296 = vrot.lane.b32.xlu0 %v2440, 16
    %v3297 = vpop.permute.xlu0 %3296
    %3298 = vrot.lane.b32.xlu0 %v2441, 16
    %v3299 = vpop.permute.xlu0 %3298
    %3300 = vrot.lane.b32.xlu0 %v2442, 16
    %v3301 = vpop.permute.xlu0 %3300
    %3302 = vrot.lane.b32.xlu0 %v2443, 16
    %v3303 = vpop.permute.xlu0 %3302
    %3304 = vrot.lane.b32.xlu0 %v2444, 16
    %v3305 = vpop.permute.xlu0 %3304
    %3306 = vrot.lane.b32.xlu0 %v2445, 16
    %v3307 = vpop.permute.xlu0 %3306
    %3308 = vrot.lane.b32.xlu0 %v2446, 16
    %v3309 = vpop.permute.xlu0 %3308
    %3310 = vrot.lane.b32.xlu0 %v2447, 16
    %v3311 = vpop.permute.xlu0 %3310
    %3312 = vrot.lane.b32.xlu0 %v2448, 16
    %v3313 = vpop.permute.xlu0 %3312
    %3314 = vrot.lane.b32.xlu0 %v2449, 16
    %v3315 = vpop.permute.xlu0 %3314
    %3316 = vrot.lane.b32.xlu0 %v2450, 16
    %v3317 = vpop.permute.xlu0 %3316
    %3318 = vrot.lane.b32.xlu0 %v2451, 16
    %v3319 = vpop.permute.xlu0 %3318
    %3320 = vrot.lane.b32.xlu0 %v3257, 16
    %v3321 = vpop.permute.xlu0 %3320
    %vm3354 = vcmask 162944
    %3355 = vst.msk [vmem:[#allocation3] sm:$0xff] %vm3354, %v3259
    %3356 = vst.msk [vmem:[#allocation3 + $0x8] sm:$0xff] %vm3354, %v3261
    %3357 = vst.msk [vmem:[#allocation3 + $0x10] sm:$0xff] %vm3354, %v3263
    %3358 = vst.msk [vmem:[#allocation3 + $0x18] sm:$0xff] %vm3354, %v3265
    %3359 = vst.msk [vmem:[#allocation3 + $0x20] sm:$0xff] %vm3354, %v3267
    %3360 = vst.msk [vmem:[#allocation3 + $0x28] sm:$0xff] %vm3354, %v3269
    %3361 = vst.msk [vmem:[#allocation3 + $0x30] sm:$0xff] %vm3354, %v3271
    %3362 = vst.msk [vmem:[#allocation3 + $0x38] sm:$0xff] %vm3354, %v3273
    %3363 = vst.msk [vmem:[#allocation3 + $0x40] sm:$0xff] %vm3354, %v3275
    %3364 = vst.msk [vmem:[#allocation3 + $0x48] sm:$0xff] %vm3354, %v3277
    %3365 = vst.msk [vmem:[#allocation3 + $0x50] sm:$0xff] %vm3354, %v3279
    %3366 = vst.msk [vmem:[#allocation3 + $0x58] sm:$0xff] %vm3354, %v3281
    %3367 = vst.msk [vmem:[#allocation3 + $0x60] sm:$0xff] %vm3354, %v3283
    %3368 = vst.msk [vmem:[#allocation3 + $0x68] sm:$0xff] %vm3354, %v3285
    %3369 = vst.msk [vmem:[#allocation3 + $0x70] sm:$0xff] %vm3354, %v3287
    %3370 = vst.msk [vmem:[#allocation3 + $0x78] sm:$0xff] %vm3354, %v3289
    %3371 = vst.msk [vmem:[#allocation3 + $0x80] sm:$0xff] %vm3354, %v3291
    %3372 = vst.msk [vmem:[#allocation3 + $0x88] sm:$0xff] %vm3354, %v3293
    %3373 = vst.msk [vmem:[#allocation3 + $0x90] sm:$0xff] %vm3354, %v3295
    %3374 = vst.msk [vmem:[#allocation3 + $0x98] sm:$0xff] %vm3354, %v3297
    %3375 = vst.msk [vmem:[#allocation3 + $0xa0] sm:$0xff] %vm3354, %v3299
    %3376 = vst.msk [vmem:[#allocation3 + $0xa8] sm:$0xff] %vm3354, %v3301
    %3377 = vst.msk [vmem:[#allocation3 + $0xb0] sm:$0xff] %vm3354, %v3303
    %3378 = vst.msk [vmem:[#allocation3 + $0xb8] sm:$0xff] %vm3354, %v3305
    %3379 = vst.msk [vmem:[#allocation3 + $0xc0] sm:$0xff] %vm3354, %v3307
    %3380 = vst.msk [vmem:[#allocation3 + $0xc8] sm:$0xff] %vm3354, %v3309
    %3381 = vst.msk [vmem:[#allocation3 + $0xd0] sm:$0xff] %vm3354, %v3311
    %3382 = vst.msk [vmem:[#allocation3 + $0xd8] sm:$0xff] %vm3354, %v3313
    %3383 = vst.msk [vmem:[#allocation3 + $0xe0] sm:$0xff] %vm3354, %v3315
    %3384 = vst.msk [vmem:[#allocation3 + $0xe8] sm:$0xff] %vm3354, %v3317
    %3385 = vst.msk [vmem:[#allocation3 + $0xf0] sm:$0xff] %vm3354, %v3319
    %3386 = vst.msk [vmem:[#allocation3 + $0xf8] sm:$0xff] %vm3354, %v3321
    %v3389 = vrot.slane %v1300, 5
    %v3390 = vrot.slane %v3389, 4
    %v3391 = vrot.slane %v1301, 5
    %v3392 = vsel %vm2615, %v3390, %v3391
    %v3393 = vrot.slane %v3391, 4
    %v3394 = vrot.slane %v1302, 5
    %v3395 = vsel %vm2615, %v3393, %v3394
    %v3396 = vrot.slane %v1354, 5
    %v3397 = vrot.slane %v3396, 4
    %v3398 = vrot.slane %v1355, 5
    %v3399 = vsel %vm2615, %v3397, %v3398
    %v3400 = vrot.slane %v3398, 4
    %v3401 = vrot.slane %v1356, 5
    %v3402 = vsel %vm2615, %v3400, %v3401
    %v3403 = vunpack.c.l.b16 %v3392
    %v3404 = vunpack.c.l.b16 %v3395
    %v3405 = vunpack.c.l.b16 %v3399
    %v3406 = vunpack.c.l.b16 %v3402
    %v3407 = vpack.c.b16 %v3404, %v3403
    %v3408 = vpack.c.b16 %v3406, %v3405
    %3409 = vrot.lane.b32.xlu0 %v2905, 20
    %v3410 = vpop.permute.xlu0 %3409
    %3411 = vrot.lane.b32.xlu0 %v2906, 20
    %v3412 = vpop.permute.xlu0 %3411
    %3413 = vrot.lane.b32.xlu0 %v2907, 20
    %v3414 = vpop.permute.xlu0 %3413
    %3415 = vrot.lane.b32.xlu0 %v2908, 20
    %v3416 = vpop.permute.xlu0 %3415
    %3417 = vrot.lane.b32.xlu0 %v2909, 20
    %v3418 = vpop.permute.xlu0 %3417
    %3419 = vrot.lane.b32.xlu0 %v2910, 20
    %v3420 = vpop.permute.xlu0 %3419
    %3421 = vrot.lane.b32.xlu0 %v2911, 20
    %v3422 = vpop.permute.xlu0 %3421
    %3423 = vrot.lane.b32.xlu0 %v2912, 20
    %v3424 = vpop.permute.xlu0 %3423
    %3425 = vrot.lane.b32.xlu0 %v2913, 20
    %v3426 = vpop.permute.xlu0 %3425
    %3427 = vrot.lane.b32.xlu0 %v2914, 20
    %v3428 = vpop.permute.xlu0 %3427
    %3429 = vrot.lane.b32.xlu0 %v2915, 20
    %v3430 = vpop.permute.xlu0 %3429
    %3431 = vrot.lane.b32.xlu0 %v2916, 20
    %v3432 = vpop.permute.xlu0 %3431
    %3433 = vrot.lane.b32.xlu0 %v2917, 20
    %v3434 = vpop.permute.xlu0 %3433
    %3435 = vrot.lane.b32.xlu0 %v2918, 20
    %v3436 = vpop.permute.xlu0 %3435
    %3437 = vrot.lane.b32.xlu0 %v2919, 20
    %v3438 = vpop.permute.xlu0 %3437
    %3439 = vrot.lane.b32.xlu0 %v3407, 20
    %v3440 = vpop.permute.xlu0 %3439
    %3441 = vrot.lane.b32.xlu0 %v2921, 20
    %v3442 = vpop.permute.xlu0 %3441
    %3443 = vrot.lane.b32.xlu0 %v2922, 20
    %v3444 = vpop.permute.xlu0 %3443
    %3445 = vrot.lane.b32.xlu0 %v2923, 20
    %v3446 = vpop.permute.xlu0 %3445
    %3447 = vrot.lane.b32.xlu0 %v2924, 20
    %v3448 = vpop.permute.xlu0 %3447
    %3449 = vrot.lane.b32.xlu0 %v2925, 20
    %v3450 = vpop.permute.xlu0 %3449
    %3451 = vrot.lane.b32.xlu0 %v2926, 20
    %v3452 = vpop.permute.xlu0 %3451
    %3453 = vrot.lane.b32.xlu0 %v2927, 20
    %v3454 = vpop.permute.xlu0 %3453
    %3455 = vrot.lane.b32.xlu0 %v2928, 20
    %v3456 = vpop.permute.xlu0 %3455
    %3457 = vrot.lane.b32.xlu0 %v2929, 20
    %v3458 = vpop.permute.xlu0 %3457
    %3459 = vrot.lane.b32.xlu0 %v2930, 20
    %v3460 = vpop.permute.xlu0 %3459
    %3461 = vrot.lane.b32.xlu0 %v2931, 20
    %v3462 = vpop.permute.xlu0 %3461
    %3463 = vrot.lane.b32.xlu0 %v2932, 20
    %v3464 = vpop.permute.xlu0 %3463
    %3465 = vrot.lane.b32.xlu0 %v2933, 20
    %v3466 = vpop.permute.xlu0 %3465
    %3467 = vrot.lane.b32.xlu0 %v2934, 20
    %v3468 = vpop.permute.xlu0 %3467
    %3469 = vrot.lane.b32.xlu0 %v2935, 20
    %v3470 = vpop.permute.xlu0 %3469
    %3471 = vrot.lane.b32.xlu0 %v3408, 20
    %v3472 = vpop.permute.xlu0 %3471
    %vm3505 = vcmask 195744
    %3506 = vst.msk [vmem:[#allocation3] sm:$0xff] %vm3505, %v3410
    %3507 = vst.msk [vmem:[#allocation3 + $0x8] sm:$0xff] %vm3505, %v3412
    %3508 = vst.msk [vmem:[#allocation3 + $0x10] sm:$0xff] %vm3505, %v3414
    %3509 = vst.msk [vmem:[#allocation3 + $0x18] sm:$0xff] %vm3505, %v3416
    %3510 = vst.msk [vmem:[#allocation3 + $0x20] sm:$0xff] %vm3505, %v3418
    %3511 = vst.msk [vmem:[#allocation3 + $0x28] sm:$0xff] %vm3505, %v3420
    %3512 = vst.msk [vmem:[#allocation3 + $0x30] sm:$0xff] %vm3505, %v3422
    %3513 = vst.msk [vmem:[#allocation3 + $0x38] sm:$0xff] %vm3505, %v3424
    %3514 = vst.msk [vmem:[#allocation3 + $0x40] sm:$0xff] %vm3505, %v3426
    %3515 = vst.msk [vmem:[#allocation3 + $0x48] sm:$0xff] %vm3505, %v3428
    %3516 = vst.msk [vmem:[#allocation3 + $0x50] sm:$0xff] %vm3505, %v3430
    %3517 = vst.msk [vmem:[#allocation3 + $0x58] sm:$0xff] %vm3505, %v3432
    %3518 = vst.msk [vmem:[#allocation3 + $0x60] sm:$0xff] %vm3505, %v3434
    %3519 = vst.msk [vmem:[#allocation3 + $0x68] sm:$0xff] %vm3505, %v3436
    %3520 = vst.msk [vmem:[#allocation3 + $0x70] sm:$0xff] %vm3505, %v3438
    %3521 = vst.msk [vmem:[#allocation3 + $0x78] sm:$0xff] %vm3505, %v3440
    %3522 = vst.msk [vmem:[#allocation3 + $0x80] sm:$0xff] %vm3505, %v3442
    %3523 = vst.msk [vmem:[#allocation3 + $0x88] sm:$0xff] %vm3505, %v3444
    %3524 = vst.msk [vmem:[#allocation3 + $0x90] sm:$0xff] %vm3505, %v3446
    %3525 = vst.msk [vmem:[#allocation3 + $0x98] sm:$0xff] %vm3505, %v3448
    %3526 = vst.msk [vmem:[#allocation3 + $0xa0] sm:$0xff] %vm3505, %v3450
    %3527 = vst.msk [vmem:[#allocation3 + $0xa8] sm:$0xff] %vm3505, %v3452
    %3528 = vst.msk [vmem:[#allocation3 + $0xb0] sm:$0xff] %vm3505, %v3454
    %3529 = vst.msk [vmem:[#allocation3 + $0xb8] sm:$0xff] %vm3505, %v3456
    %3530 = vst.msk [vmem:[#allocation3 + $0xc0] sm:$0xff] %vm3505, %v3458
    %3531 = vst.msk [vmem:[#allocation3 + $0xc8] sm:$0xff] %vm3505, %v3460
    %3532 = vst.msk [vmem:[#allocation3 + $0xd0] sm:$0xff] %vm3505, %v3462
    %3533 = vst.msk [vmem:[#allocation3 + $0xd8] sm:$0xff] %vm3505, %v3464
    %3534 = vst.msk [vmem:[#allocation3 + $0xe0] sm:$0xff] %vm3505, %v3466
    %3535 = vst.msk [vmem:[#allocation3 + $0xe8] sm:$0xff] %vm3505, %v3468
    %3536 = vst.msk [vmem:[#allocation3 + $0xf0] sm:$0xff] %vm3505, %v3470
    %3537 = vst.msk [vmem:[#allocation3 + $0xf8] sm:$0xff] %vm3505, %v3472
    %v3542 = vunpack.c.l.b16 %v1303
    %v3543 = vunpack.c.l.b16 %v1304
    %v3544 = vunpack.c.l.b16 %v1357
    %v3545 = vunpack.c.l.b16 %v1358
    %v3546 = vpack.c.b16 %v3543, %v3542
    %v3547 = vpack.c.b16 %v3545, %v3544
    %3548 = vrot.lane.b32.xlu0 %v1490, 24
    %v3549 = vpop.permute.xlu0 %3548
    %3550 = vrot.lane.b32.xlu0 %v1491, 24
    %v3551 = vpop.permute.xlu0 %3550
    %3552 = vrot.lane.b32.xlu0 %v1492, 24
    %v3553 = vpop.permute.xlu0 %3552
    %3554 = vrot.lane.b32.xlu0 %v1493, 24
    %v3555 = vpop.permute.xlu0 %3554
    %3556 = vrot.lane.b32.xlu0 %v1494, 24
    %v3557 = vpop.permute.xlu0 %3556
    %3558 = vrot.lane.b32.xlu0 %v1495, 24
    %v3559 = vpop.permute.xlu0 %3558
    %3560 = vrot.lane.b32.xlu0 %v1496, 24
    %v3561 = vpop.permute.xlu0 %3560
    %3562 = vrot.lane.b32.xlu0 %v1497, 24
    %v3563 = vpop.permute.xlu0 %3562
    %3564 = vrot.lane.b32.xlu0 %v1498, 24
    %v3565 = vpop.permute.xlu0 %3564
    %3566 = vrot.lane.b32.xlu0 %v1499, 24
    %v3567 = vpop.permute.xlu0 %3566
    %3568 = vrot.lane.b32.xlu0 %v1500, 24
    %v3569 = vpop.permute.xlu0 %3568
    %3570 = vrot.lane.b32.xlu0 %v1501, 24
    %v3571 = vpop.permute.xlu0 %3570
    %3572 = vrot.lane.b32.xlu0 %v1502, 24
    %v3573 = vpop.permute.xlu0 %3572
    %3574 = vrot.lane.b32.xlu0 %v1503, 24
    %v3575 = vpop.permute.xlu0 %3574
    %3576 = vrot.lane.b32.xlu0 %v3073, 24
    %v3577 = vpop.permute.xlu0 %3576
    %3578 = vrot.lane.b32.xlu0 %v3546, 24
    %v3579 = vpop.permute.xlu0 %3578
    %3580 = vrot.lane.b32.xlu0 %v1506, 24
    %v3581 = vpop.permute.xlu0 %3580
    %3582 = vrot.lane.b32.xlu0 %v1507, 24
    %v3583 = vpop.permute.xlu0 %3582
    %3584 = vrot.lane.b32.xlu0 %v1508, 24
    %v3585 = vpop.permute.xlu0 %3584
    %3586 = vrot.lane.b32.xlu0 %v1509, 24
    %v3587 = vpop.permute.xlu0 %3586
    %3588 = vrot.lane.b32.xlu0 %v1510, 24
    %v3589 = vpop.permute.xlu0 %3588
    %3590 = vrot.lane.b32.xlu0 %v1511, 24
    %v3591 = vpop.permute.xlu0 %3590
    %3592 = vrot.lane.b32.xlu0 %v1512, 24
    %v3593 = vpop.permute.xlu0 %3592
    %3594 = vrot.lane.b32.xlu0 %v1513, 24
    %v3595 = vpop.permute.xlu0 %3594
    %3596 = vrot.lane.b32.xlu0 %v1514, 24
    %v3597 = vpop.permute.xlu0 %3596
    %3598 = vrot.lane.b32.xlu0 %v1515, 24
    %v3599 = vpop.permute.xlu0 %3598
    %3600 = vrot.lane.b32.xlu0 %v1516, 24
    %v3601 = vpop.permute.xlu0 %3600
    %3602 = vrot.lane.b32.xlu0 %v1517, 24
    %v3603 = vpop.permute.xlu0 %3602
    %3604 = vrot.lane.b32.xlu0 %v1518, 24
    %v3605 = vpop.permute.xlu0 %3604
    %3606 = vrot.lane.b32.xlu0 %v1519, 24
    %v3607 = vpop.permute.xlu0 %3606
    %3608 = vrot.lane.b32.xlu0 %v3074, 24
    %v3609 = vpop.permute.xlu0 %3608
    %3610 = vrot.lane.b32.xlu0 %v3547, 24
    %v3611 = vpop.permute.xlu0 %3610
    %vm3644 = vcmask 228544
    %3645 = vst.msk [vmem:[#allocation3] sm:$0xff] %vm3644, %v3549
    %3646 = vst.msk [vmem:[#allocation3 + $0x8] sm:$0xff] %vm3644, %v3551
    %3647 = vst.msk [vmem:[#allocation3 + $0x10] sm:$0xff] %vm3644, %v3553
    %3648 = vst.msk [vmem:[#allocation3 + $0x18] sm:$0xff] %vm3644, %v3555
    %3649 = vst.msk [vmem:[#allocation3 + $0x20] sm:$0xff] %vm3644, %v3557
    %3650 = vst.msk [vmem:[#allocation3 + $0x28] sm:$0xff] %vm3644, %v3559
    %3651 = vst.msk [vmem:[#allocation3 + $0x30] sm:$0xff] %vm3644, %v3561
    %3652 = vst.msk [vmem:[#allocation3 + $0x38] sm:$0xff] %vm3644, %v3563
    %3653 = vst.msk [vmem:[#allocation3 + $0x40] sm:$0xff] %vm3644, %v3565
    %3654 = vst.msk [vmem:[#allocation3 + $0x48] sm:$0xff] %vm3644, %v3567
    %3655 = vst.msk [vmem:[#allocation3 + $0x50] sm:$0xff] %vm3644, %v3569
    %3656 = vst.msk [vmem:[#allocation3 + $0x58] sm:$0xff] %vm3644, %v3571
    %3657 = vst.msk [vmem:[#allocation3 + $0x60] sm:$0xff] %vm3644, %v3573
    %3658 = vst.msk [vmem:[#allocation3 + $0x68] sm:$0xff] %vm3644, %v3575
    %3659 = vst.msk [vmem:[#allocation3 + $0x70] sm:$0xff] %vm3644, %v3577
    %3660 = vst.msk [vmem:[#allocation3 + $0x78] sm:$0xff] %vm3644, %v3579
    %3661 = vst.msk [vmem:[#allocation3 + $0x80] sm:$0xff] %vm3644, %v3581
    %3662 = vst.msk [vmem:[#allocation3 + $0x88] sm:$0xff] %vm3644, %v3583
    %3663 = vst.msk [vmem:[#allocation3 + $0x90] sm:$0xff] %vm3644, %v3585
    %3664 = vst.msk [vmem:[#allocation3 + $0x98] sm:$0xff] %vm3644, %v3587
    %3665 = vst.msk [vmem:[#allocation3 + $0xa0] sm:$0xff] %vm3644, %v3589
    %3666 = vst.msk [vmem:[#allocation3 + $0xa8] sm:$0xff] %vm3644, %v3591
    %3667 = vst.msk [vmem:[#allocation3 + $0xb0] sm:$0xff] %vm3644, %v3593
    %3668 = vst.msk [vmem:[#allocation3 + $0xb8] sm:$0xff] %vm3644, %v3595
    %3669 = vst.msk [vmem:[#allocation3 + $0xc0] sm:$0xff] %vm3644, %v3597
    %3670 = vst.msk [vmem:[#allocation3 + $0xc8] sm:$0xff] %vm3644, %v3599
    %3671 = vst.msk [vmem:[#allocation3 + $0xd0] sm:$0xff] %vm3644, %v3601
    %3672 = vst.msk [vmem:[#allocation3 + $0xd8] sm:$0xff] %vm3644, %v3603
    %3673 = vst.msk [vmem:[#allocation3 + $0xe0] sm:$0xff] %vm3644, %v3605
    %3674 = vst.msk [vmem:[#allocation3 + $0xe8] sm:$0xff] %vm3644, %v3607
    %3675 = vst.msk [vmem:[#allocation3 + $0xf0] sm:$0xff] %vm3644, %v3609
    %3676 = vst.msk [vmem:[#allocation3 + $0xf8] sm:$0xff] %vm3644, %v3611
    %v3678 = vshrl.u32 %v1303, 16
    %v3680 = vrot.slane %v3678, 4
    %v3681 = vshll.u32 %v1303, 16
    %v3683 = vrot.slane %v3681, 5
    %v3684 = vor.u32 %v3680, %v3683
    %v3685 = vrot.slane %v3684, 4
    %v3687 = vshll.u32 %v1304, 16
    %v3689 = vrot.slane %v3687, 5
    %v3690 = vsel %vm1587, %v3685, %v3689
    %v3691 = vshrl.u32 %v1304, 16
    %v3693 = vrot.slane %v3691, 4
    %v3694 = vor.u32 %v3693, %v3689
    %v3695 = vrot.slane %v3694, 4
    %v3697 = vshll.u32 %v1305, 16
    %v3699 = vrot.slane %v3697, 5
    %v3700 = vsel %vm1587, %v3695, %v3699
    %v3702 = vshrl.u32 %v1357, 16
    %v3704 = vrot.slane %v3702, 4
    %v3705 = vshll.u32 %v1357, 16
    %v3707 = vrot.slane %v3705, 5
    %v3708 = vor.u32 %v3704, %v3707
    %v3709 = vrot.slane %v3708, 4
    %v3711 = vshll.u32 %v1358, 16
    %v3713 = vrot.slane %v3711, 5
    %v3714 = vsel %vm1587, %v3709, %v3713
    %v3715 = vshrl.u32 %v1358, 16
    %v3717 = vrot.slane %v3715, 4
    %v3718 = vor.u32 %v3717, %v3713
    %v3719 = vrot.slane %v3718, 4
    %v3721 = vshll.u32 %v1359, 16
    %v3723 = vrot.slane %v3721, 5
    %v3724 = vsel %vm1587, %v3719, %v3723
    %v3725 = vunpack.c.l.b16 %v3690
    %v3726 = vunpack.c.l.b16 %v3700
    %v3727 = vunpack.c.l.b16 %v3714
    %v3728 = vunpack.c.l.b16 %v3724
    %v3729 = vpack.c.b16 %v3726, %v3725
    %v3730 = vpack.c.b16 %v3728, %v3727
    %3731 = vrot.lane.b32.xlu0 %v2422, 28
    %v3732 = vpop.permute.xlu0 %3731
    %3733 = vrot.lane.b32.xlu0 %v2423, 28
    %v3734 = vpop.permute.xlu0 %3733
    %3735 = vrot.lane.b32.xlu0 %v2424, 28
    %v3736 = vpop.permute.xlu0 %3735
    %3737 = vrot.lane.b32.xlu0 %v2425, 28
    %v3738 = vpop.permute.xlu0 %3737
    %3739 = vrot.lane.b32.xlu0 %v2426, 28
    %v3740 = vpop.permute.xlu0 %3739
    %3741 = vrot.lane.b32.xlu0 %v2427, 28
    %v3742 = vpop.permute.xlu0 %3741
    %3743 = vrot.lane.b32.xlu0 %v2428, 28
    %v3744 = vpop.permute.xlu0 %3743
    %3745 = vrot.lane.b32.xlu0 %v2429, 28
    %v3746 = vpop.permute.xlu0 %3745
    %3747 = vrot.lane.b32.xlu0 %v2430, 28
    %v3748 = vpop.permute.xlu0 %3747
    %3749 = vrot.lane.b32.xlu0 %v2431, 28
    %v3750 = vpop.permute.xlu0 %3749
    %3751 = vrot.lane.b32.xlu0 %v2432, 28
    %v3752 = vpop.permute.xlu0 %3751
    %3753 = vrot.lane.b32.xlu0 %v2433, 28
    %v3754 = vpop.permute.xlu0 %3753
    %3755 = vrot.lane.b32.xlu0 %v2434, 28
    %v3756 = vpop.permute.xlu0 %3755
    %3757 = vrot.lane.b32.xlu0 %v2435, 28
    %v3758 = vpop.permute.xlu0 %3757
    %3759 = vrot.lane.b32.xlu0 %v3256, 28
    %v3760 = vpop.permute.xlu0 %3759
    %3761 = vrot.lane.b32.xlu0 %v3729, 28
    %v3762 = vpop.permute.xlu0 %3761
    %3763 = vrot.lane.b32.xlu0 %v2438, 28
    %v3764 = vpop.permute.xlu0 %3763
    %3765 = vrot.lane.b32.xlu0 %v2439, 28
    %v3766 = vpop.permute.xlu0 %3765
    %3767 = vrot.lane.b32.xlu0 %v2440, 28
    %v3768 = vpop.permute.xlu0 %3767
    %3769 = vrot.lane.b32.xlu0 %v2441, 28
    %v3770 = vpop.permute.xlu0 %3769
    %3771 = vrot.lane.b32.xlu0 %v2442, 28
    %v3772 = vpop.permute.xlu0 %3771
    %3773 = vrot.lane.b32.xlu0 %v2443, 28
    %v3774 = vpop.permute.xlu0 %3773
    %3775 = vrot.lane.b32.xlu0 %v2444, 28
    %v3776 = vpop.permute.xlu0 %3775
    %3777 = vrot.lane.b32.xlu0 %v2445, 28
    %v3778 = vpop.permute.xlu0 %3777
    %3779 = vrot.lane.b32.xlu0 %v2446, 28
    %v3780 = vpop.permute.xlu0 %3779
    %3781 = vrot.lane.b32.xlu0 %v2447, 28
    %v3782 = vpop.permute.xlu0 %3781
    %3783 = vrot.lane.b32.xlu0 %v2448, 28
    %v3784 = vpop.permute.xlu0 %3783
    %3785 = vrot.lane.b32.xlu0 %v2449, 28
    %v3786 = vpop.permute.xlu0 %3785
    %3787 = vrot.lane.b32.xlu0 %v2450, 28
    %v3788 = vpop.permute.xlu0 %3787
    %3789 = vrot.lane.b32.xlu0 %v2451, 28
    %v3790 = vpop.permute.xlu0 %3789
    %3791 = vrot.lane.b32.xlu0 %v3257, 28
    %v3792 = vpop.permute.xlu0 %3791
    %3793 = vrot.lane.b32.xlu0 %v3730, 28
    %v3794 = vpop.permute.xlu0 %3793
    %vm3827 = vcmask 261344
    %3828 = vst.msk [vmem:[#allocation3] sm:$0xff] %vm3827, %v3732
    %3829 = vst.msk [vmem:[#allocation3 + $0x8] sm:$0xff] %vm3827, %v3734
    %3830 = vst.msk [vmem:[#allocation3 + $0x10] sm:$0xff] %vm3827, %v3736
    %3831 = vst.msk [vmem:[#allocation3 + $0x18] sm:$0xff] %vm3827, %v3738
    %3832 = vst.msk [vmem:[#allocation3 + $0x20] sm:$0xff] %vm3827, %v3740
    %3833 = vst.msk [vmem:[#allocation3 + $0x28] sm:$0xff] %vm3827, %v3742
    %3834 = vst.msk [vmem:[#allocation3 + $0x30] sm:$0xff] %vm3827, %v3744
    %3835 = vst.msk [vmem:[#allocation3 + $0x38] sm:$0xff] %vm3827, %v3746
    %3836 = vst.msk [vmem:[#allocation3 + $0x40] sm:$0xff] %vm3827, %v3748
    %3837 = vst.msk [vmem:[#allocation3 + $0x48] sm:$0xff] %vm3827, %v3750
    %3838 = vst.msk [vmem:[#allocation3 + $0x50] sm:$0xff] %vm3827, %v3752
    %3839 = vst.msk [vmem:[#allocation3 + $0x58] sm:$0xff] %vm3827, %v3754
    %3840 = vst.msk [vmem:[#allocation3 + $0x60] sm:$0xff] %vm3827, %v3756
    %3841 = vst.msk [vmem:[#allocation3 + $0x68] sm:$0xff] %vm3827, %v3758
    %3842 = vst.msk [vmem:[#allocation3 + $0x70] sm:$0xff] %vm3827, %v3760
    %3843 = vst.msk [vmem:[#allocation3 + $0x78] sm:$0xff] %vm3827, %v3762
    %3844 = vst.msk [vmem:[#allocation3 + $0x80] sm:$0xff] %vm3827, %v3764
    %3845 = vst.msk [vmem:[#allocation3 + $0x88] sm:$0xff] %vm3827, %v3766
    %3846 = vst.msk [vmem:[#allocation3 + $0x90] sm:$0xff] %vm3827, %v3768
    %3847 = vst.msk [vmem:[#allocation3 + $0x98] sm:$0xff] %vm3827, %v3770
    %3848 = vst.msk [vmem:[#allocation3 + $0xa0] sm:$0xff] %vm3827, %v3772
    %3849 = vst.msk [vmem:[#allocation3 + $0xa8] sm:$0xff] %vm3827, %v3774
    %3850 = vst.msk [vmem:[#allocation3 + $0xb0] sm:$0xff] %vm3827, %v3776
    %3851 = vst.msk [vmem:[#allocation3 + $0xb8] sm:$0xff] %vm3827, %v3778
    %3852 = vst.msk [vmem:[#allocation3 + $0xc0] sm:$0xff] %vm3827, %v3780
    %3853 = vst.msk [vmem:[#allocation3 + $0xc8] sm:$0xff] %vm3827, %v3782
    %3854 = vst.msk [vmem:[#allocation3 + $0xd0] sm:$0xff] %vm3827, %v3784
    %3855 = vst.msk [vmem:[#allocation3 + $0xd8] sm:$0xff] %vm3827, %v3786
    %3856 = vst.msk [vmem:[#allocation3 + $0xe0] sm:$0xff] %vm3827, %v3788
    %3857 = vst.msk [vmem:[#allocation3 + $0xe8] sm:$0xff] %vm3827, %v3790
    %3858 = vst.msk [vmem:[#allocation3 + $0xf0] sm:$0xff] %vm3827, %v3792
    %3859 = vst.msk [vmem:[#allocation3 + $0xf8] sm:$0xff] %vm3827, %v3794
    %v3862 = vrot.slane %v1303, 5
    %v3863 = vrot.slane %v3862, 4
    %v3864 = vrot.slane %v1304, 5
    %v3865 = vsel %vm2615, %v3863, %v3864
    %v3866 = vrot.slane %v3864, 4
    %v3867 = vrot.slane %v1305, 5
    %v3868 = vsel %vm2615, %v3866, %v3867
    %v3869 = vrot.slane %v1357, 5
    %v3870 = vrot.slane %v3869, 4
    %v3871 = vrot.slane %v1358, 5
    %v3872 = vsel %vm2615, %v3870, %v3871
    %v3873 = vrot.slane %v3871, 4
    %v3874 = vrot.slane %v1359, 5
    %v3875 = vsel %vm2615, %v3873, %v3874
    %v3876 = vunpack.c.l.b16 %v3865
    %v3877 = vunpack.c.l.b16 %v3868
    %v3878 = vunpack.c.l.b16 %v3872
    %v3879 = vunpack.c.l.b16 %v3875
    %v3880 = vpack.c.b16 %v3877, %v3876
    %v3881 = vpack.c.b16 %v3879, %v3878
    %3882 = vrot.lane.b32.xlu0 %v2906, 32
    %v3883 = vpop.permute.xlu0 %3882
    %3884 = vrot.lane.b32.xlu0 %v2907, 32
    %v3885 = vpop.permute.xlu0 %3884
    %3886 = vrot.lane.b32.xlu0 %v2908, 32
    %v3887 = vpop.permute.xlu0 %3886
    %3888 = vrot.lane.b32.xlu0 %v2909, 32
    %v3889 = vpop.permute.xlu0 %3888
    %3890 = vrot.lane.b32.xlu0 %v2910, 32
    %v3891 = vpop.permute.xlu0 %3890
    %3892 = vrot.lane.b32.xlu0 %v2911, 32
    %v3893 = vpop.permute.xlu0 %3892
    %3894 = vrot.lane.b32.xlu0 %v2912, 32
    %v3895 = vpop.permute.xlu0 %3894
    %3896 = vrot.lane.b32.xlu0 %v2913, 32
    %v3897 = vpop.permute.xlu0 %3896
    %3898 = vrot.lane.b32.xlu0 %v2914, 32
    %v3899 = vpop.permute.xlu0 %3898
    %3900 = vrot.lane.b32.xlu0 %v2915, 32
    %v3901 = vpop.permute.xlu0 %3900
    %3902 = vrot.lane.b32.xlu0 %v2916, 32
    %v3903 = vpop.permute.xlu0 %3902
    %3904 = vrot.lane.b32.xlu0 %v2917, 32
    %v3905 = vpop.permute.xlu0 %3904
    %3906 = vrot.lane.b32.xlu0 %v2918, 32
    %v3907 = vpop.permute.xlu0 %3906
    %3908 = vrot.lane.b32.xlu0 %v2919, 32
    %v3909 = vpop.permute.xlu0 %3908
    %3910 = vrot.lane.b32.xlu0 %v3407, 32
    %v3911 = vpop.permute.xlu0 %3910
    %3912 = vrot.lane.b32.xlu0 %v3880, 32
    %v3913 = vpop.permute.xlu0 %3912
    %3914 = vrot.lane.b32.xlu0 %v2922, 32
    %v3915 = vpop.permute.xlu0 %3914
    %3916 = vrot.lane.b32.xlu0 %v2923, 32
    %v3917 = vpop.permute.xlu0 %3916
    %3918 = vrot.lane.b32.xlu0 %v2924, 32
    %v3919 = vpop.permute.xlu0 %3918
    %3920 = vrot.lane.b32.xlu0 %v2925, 32
    %v3921 = vpop.permute.xlu0 %3920
    %3922 = vrot.lane.b32.xlu0 %v2926, 32
    %v3923 = vpop.permute.xlu0 %3922
    %3924 = vrot.lane.b32.xlu0 %v2927, 32
    %v3925 = vpop.permute.xlu0 %3924
    %3926 = vrot.lane.b32.xlu0 %v2928, 32
    %v3927 = vpop.permute.xlu0 %3926
    %3928 = vrot.lane.b32.xlu0 %v2929, 32
    %v3929 = vpop.permute.xlu0 %3928
    %3930 = vrot.lane.b32.xlu0 %v2930, 32
    %v3931 = vpop.permute.xlu0 %3930
    %3932 = vrot.lane.b32.xlu0 %v2931, 32
    %v3933 = vpop.permute.xlu0 %3932
    %3934 = vrot.lane.b32.xlu0 %v2932, 32
    %v3935 = vpop.permute.xlu0 %3934
    %3936 = vrot.lane.b32.xlu0 %v2933, 32
    %v3937 = vpop.permute.xlu0 %3936
    %3938 = vrot.lane.b32.xlu0 %v2934, 32
    %v3939 = vpop.permute.xlu0 %3938
    %3940 = vrot.lane.b32.xlu0 %v2935, 32
    %v3941 = vpop.permute.xlu0 %3940
    %3942 = vrot.lane.b32.xlu0 %v3408, 32
    %v3943 = vpop.permute.xlu0 %3942
    %3944 = vrot.lane.b32.xlu0 %v3881, 32
    %v3945 = vpop.permute.xlu0 %3944
    %vm3978 = vcmask 294144
    %3979 = vst.msk [vmem:[#allocation3] sm:$0xff] %vm3978, %v3883
    %3980 = vst.msk [vmem:[#allocation3 + $0x8] sm:$0xff] %vm3978, %v3885
    %3981 = vst.msk [vmem:[#allocation3 + $0x10] sm:$0xff] %vm3978, %v3887
    %3982 = vst.msk [vmem:[#allocation3 + $0x18] sm:$0xff] %vm3978, %v3889
    %3983 = vst.msk [vmem:[#allocation3 + $0x20] sm:$0xff] %vm3978, %v3891
    %3984 = vst.msk [vmem:[#allocation3 + $0x28] sm:$0xff] %vm3978, %v3893
    %3985 = vst.msk [vmem:[#allocation3 + $0x30] sm:$0xff] %vm3978, %v3895
    %3986 = vst.msk [vmem:[#allocation3 + $0x38] sm:$0xff] %vm3978, %v3897
    %3987 = vst.msk [vmem:[#allocation3 + $0x40] sm:$0xff] %vm3978, %v3899
    %3988 = vst.msk [vmem:[#allocation3 + $0x48] sm:$0xff] %vm3978, %v3901
    %3989 = vst.msk [vmem:[#allocation3 + $0x50] sm:$0xff] %vm3978, %v3903
    %3990 = vst.msk [vmem:[#allocation3 + $0x58] sm:$0xff] %vm3978, %v3905
    %3991 = vst.msk [vmem:[#allocation3 + $0x60] sm:$0xff] %vm3978, %v3907
    %3992 = vst.msk [vmem:[#allocation3 + $0x68] sm:$0xff] %vm3978, %v3909
    %3993 = vst.msk [vmem:[#allocation3 + $0x70] sm:$0xff] %vm3978, %v3911
    %3994 = vst.msk [vmem:[#allocation3 + $0x78] sm:$0xff] %vm3978, %v3913
    %3995 = vst.msk [vmem:[#allocation3 + $0x80] sm:$0xff] %vm3978, %v3915
    %3996 = vst.msk [vmem:[#allocation3 + $0x88] sm:$0xff] %vm3978, %v3917
    %3997 = vst.msk [vmem:[#allocation3 + $0x90] sm:$0xff] %vm3978, %v3919
    %3998 = vst.msk [vmem:[#allocation3 + $0x98] sm:$0xff] %vm3978, %v3921
    %3999 = vst.msk [vmem:[#allocation3 + $0xa0] sm:$0xff] %vm3978, %v3923
    %4000 = vst.msk [vmem:[#allocation3 + $0xa8] sm:$0xff] %vm3978, %v3925
    %4001 = vst.msk [vmem:[#allocation3 + $0xb0] sm:$0xff] %vm3978, %v3927
    %4002 = vst.msk [vmem:[#allocation3 + $0xb8] sm:$0xff] %vm3978, %v3929
    %4003 = vst.msk [vmem:[#allocation3 + $0xc0] sm:$0xff] %vm3978, %v3931
    %4004 = vst.msk [vmem:[#allocation3 + $0xc8] sm:$0xff] %vm3978, %v3933
    %4005 = vst.msk [vmem:[#allocation3 + $0xd0] sm:$0xff] %vm3978, %v3935
    %4006 = vst.msk [vmem:[#allocation3 + $0xd8] sm:$0xff] %vm3978, %v3937
    %4007 = vst.msk [vmem:[#allocation3 + $0xe0] sm:$0xff] %vm3978, %v3939
    %4008 = vst.msk [vmem:[#allocation3 + $0xe8] sm:$0xff] %vm3978, %v3941
    %4009 = vst.msk [vmem:[#allocation3 + $0xf0] sm:$0xff] %vm3978, %v3943
    %4010 = vst.msk [vmem:[#allocation3 + $0xf8] sm:$0xff] %vm3978, %v3945
    %v4011 = vld [vmem:[#allocation3] sm:$0xff]
    %v4012 = vld [vmem:[#allocation3 + $0x8] sm:$0xff]
    %v4013 = vld [vmem:[#allocation3 + $0x10] sm:$0xff]
    %v4014 = vld [vmem:[#allocation3 + $0x18] sm:$0xff]
    %v4015 = vld [vmem:[#allocation3 + $0x20] sm:$0xff]
    %v4016 = vld [vmem:[#allocation3 + $0x28] sm:$0xff]
    %v4017 = vld [vmem:[#allocation3 + $0x30] sm:$0xff]
    %v4018 = vld [vmem:[#allocation3 + $0x38] sm:$0xff]
    %v4019 = vld [vmem:[#allocation3 + $0x40] sm:$0xff]
    %v4020 = vld [vmem:[#allocation3 + $0x48] sm:$0xff]
    %v4021 = vld [vmem:[#allocation3 + $0x50] sm:$0xff]
    %v4022 = vld [vmem:[#allocation3 + $0x58] sm:$0xff]
    %v4023 = vld [vmem:[#allocation3 + $0x60] sm:$0xff]
    %v4024 = vld [vmem:[#allocation3 + $0x68] sm:$0xff]
    %v4025 = vld [vmem:[#allocation3 + $0x70] sm:$0xff]
    %v4026 = vld [vmem:[#allocation3 + $0x78] sm:$0xff]
    %v4027 = vld [vmem:[#allocation3 + $0x80] sm:$0xff]
    %v4028 = vld [vmem:[#allocation3 + $0x88] sm:$0xff]
    %v4029 = vld [vmem:[#allocation3 + $0x90] sm:$0xff]
    %v4030 = vld [vmem:[#allocation3 + $0x98] sm:$0xff]
    %v4031 = vld [vmem:[#allocation3 + $0xa0] sm:$0xff]
    %v4032 = vld [vmem:[#allocation3 + $0xa8] sm:$0xff]
    %v4033 = vld [vmem:[#allocation3 + $0xb0] sm:$0xff]
    %v4034 = vld [vmem:[#allocation3 + $0xb8] sm:$0xff]
    %v4035 = vld [vmem:[#allocation3 + $0xc0] sm:$0xff]
    %v4036 = vld [vmem:[#allocation3 + $0xc8] sm:$0xff]
    %v4037 = vld [vmem:[#allocation3 + $0xd0] sm:$0xff]
    %v4038 = vld [vmem:[#allocation3 + $0xd8] sm:$0xff]
    %v4039 = vld [vmem:[#allocation3 + $0xe0] sm:$0xff]
    %v4040 = vld [vmem:[#allocation3 + $0xe8] sm:$0xff]
    %v4041 = vld [vmem:[#allocation3 + $0xf0] sm:$0xff]
    %v4042 = vld [vmem:[#allocation3 + $0xf8] sm:$0xff]
    %v4043 = vld [vmem:[%s1] sm:$0xf]
    %v4044 = vld [vmem:[%s1 + $0x4] sm:$0xf]
    %v4045 = vld [vmem:[%s1 + $0x8] sm:$0xf]
    %v4046 = vld [vmem:[%s1 + $0xc] sm:$0xf]
    %v4047 = vld [vmem:[%s1 + $0x10] sm:$0x3]
    %v4053 = vunpack.c.l.b16 %v4043
    %v4054 = vunpack.c.l.b16 %v4044
    %v4055 = vunpack.c.l.b16 %v4045
    %v4056 = vunpack.c.l.b16 %v4046
    %v4057 = vunpack.c.l.b16 %v4047
    %v4058 = vpack.c.b16 %v4054, %v4053
    %v4059 = vpack.c.b16 %v4056, %v4055
    %v4060 = vpack.c.b16 %v4057, %v4057
    %vm4063 = vcmask 293888
    %v4065 = vsel %vm4063, %v4011, 0
    %v4068 = vsel %vm4063, %v4012, 0
    %v4071 = vsel %vm4063, %v4013, 0
    %v4074 = vsel %vm4063, %v4014, 0
    %v4077 = vsel %vm4063, %v4015, 0
    %v4080 = vsel %vm4063, %v4016, 0
    %v4083 = vsel %vm4063, %v4017, 0
    %v4086 = vsel %vm4063, %v4018, 0
    %v4089 = vsel %vm4063, %v4019, 0
    %v4092 = vsel %vm4063, %v4020, 0
    %v4095 = vsel %vm4063, %v4021, 0
    %v4098 = vsel %vm4063, %v4022, 0
    %v4101 = vsel %vm4063, %v4023, 0
    %v4104 = vsel %vm4063, %v4024, 0
    %v4107 = vsel %vm4063, %v4025, 0
    %v4110 = vsel %vm4063, %v4026, 0
    %v4113 = vsel %vm4063, %v4027, 0
    %v4116 = vsel %vm4063, %v4028, 0
    %v4119 = vsel %vm4063, %v4029, 0
    %v4122 = vsel %vm4063, %v4030, 0
    %v4125 = vsel %vm4063, %v4031, 0
    %v4128 = vsel %vm4063, %v4032, 0
    %v4131 = vsel %vm4063, %v4033, 0
    %v4134 = vsel %vm4063, %v4034, 0
    %v4137 = vsel %vm4063, %v4035, 0
    %v4140 = vsel %vm4063, %v4036, 0
    %v4143 = vsel %vm4063, %v4037, 0
    %v4146 = vsel %vm4063, %v4038, 0
    %v4149 = vsel %vm4063, %v4039, 0
    %v4152 = vsel %vm4063, %v4040, 0
    %v4155 = vsel %vm4063, %v4041, 0
    %v4158 = vsel %vm4063, %v4042, 0
    %vm4160 = vcmask 1041408
    %v4162 = vsel %vm4160, %v4060, 0
    %4164 = vmatprep.subr.bf16.mxu0 0
    %4165 = vmatpush1.bf16.msra.mxu0 %v4058
    %4166 = vmatprep.subr.bf16.mxu0 0
    %4167 = vmatpush1.bf16.msra.mxu0 %v4059
    %4168 = vmatprep.subr.bf16.mxu0 0
    %4169 = vmatpush1.bf16.msra.mxu0 %v4162
    %4170 = vmatprep.subr.bf16.mxu0 0
    %4171 = vmatpush1.bf16.msra.mxu0 0
    %4172 = vmatprep.subr.bf16.mxu0 0
    %4173 = vmatpush1.bf16.msra.mxu0 0
    %4174 = vmatprep.subr.bf16.mxu0 0
    %4175 = vmatpush1.bf16.msra.mxu0 0
    %4176 = vmatprep.subr.bf16.mxu0 0
    %4177 = vmatpush1.bf16.msra.mxu0 0
    %4178 = vmatprep.subr.bf16.mxu0 0
    %4179 = vmatpush1.bf16.msra.mxu0 0
    %4180 = vmatprep.subr.bf16.mxu0 0
    %4181 = vmatpush1.bf16.msra.mxu0 0
    %4182 = vmatprep.subr.bf16.mxu0 0
    %4183 = vmatpush1.bf16.msra.mxu0 0
    %4184 = vmatprep.subr.bf16.mxu0 0
    %4185 = vmatpush1.bf16.msra.mxu0 0
    %4186 = vmatprep.subr.bf16.mxu0 0
    %4187 = vmatpush1.bf16.msra.mxu0 0
    %4188 = vmatprep.subr.bf16.mxu0 0
    %4189 = vmatpush1.bf16.msra.mxu0 0
    %4190 = vmatprep.subr.bf16.mxu0 0
    %4191 = vmatpush1.bf16.msra.mxu0 0
    %4192 = vmatprep.subr.bf16.mxu0 0
    %4193 = vmatpush1.bf16.msra.mxu0 0
    %4194 = vmatprep.subr.bf16.mxu0 0
    %4195 = vmatpush1.bf16.msra.mxu0 0
    %4196 = vmatprep.mubr.bf16.mxu0 0
    %4197 = vmatmul.mubr.bf16.gmra.mrb[0].mxu0 %v4065
    %v4198 = vpop.f32.mrb[0].mxu0
    %v4199 = vadd.f32 0.0, %v4198
    %v4200 = vpop.f32.mrb[0].mxu0
    %v4201 = vpop.f32.mrb[0].mxu0
    %v4202 = vadd.f32 0.0, %v4201
    %v4203 = vpop.f32.mrb[0].mxu0
    %4204 = vmatprep.mubr.bf16.mxu0 0
    %4205 = vmatmul.mubr.bf16.gmra.mrb[0].mxu0 %v4068
    %v4206 = vpop.f32.mrb[0].mxu0
    %v4207 = vadd.f32 0.0, %v4206
    %v4208 = vpop.f32.mrb[0].mxu0
    %v4209 = vpop.f32.mrb[0].mxu0
    %v4210 = vadd.f32 0.0, %v4209
    %v4211 = vpop.f32.mrb[0].mxu0
    %4212 = vmatprep.mubr.bf16.mxu0 0
    %4213 = vmatmul.mubr.bf16.gmra.mrb[0].mxu0 %v4071
    %v4214 = vpop.f32.mrb[0].mxu0
    %v4215 = vadd.f32 0.0, %v4214
    %v4216 = vpop.f32.mrb[0].mxu0
    %v4217 = vpop.f32.mrb[0].mxu0
    %v4218 = vadd.f32 0.0, %v4217
    %v4219 = vpop.f32.mrb[0].mxu0
    %4220 = vmatprep.mubr.bf16.mxu0 0
    %4221 = vmatmul.mubr.bf16.gmra.mrb[0].mxu0 %v4074
    %v4222 = vpop.f32.mrb[0].mxu0
    %v4223 = vadd.f32 0.0, %v4222
    %v4224 = vpop.f32.mrb[0].mxu0
    %v4225 = vpop.f32.mrb[0].mxu0
    %v4226 = vadd.f32 0.0, %v4225
    %v4227 = vpop.f32.mrb[0].mxu0
    %4228 = vmatprep.mubr.bf16.mxu0 0
    %4229 = vmatmul.mubr.bf16.gmra.mrb[0].mxu0 %v4077
    %v4230 = vpop.f32.mrb[0].mxu0
    %v4231 = vadd.f32 0.0, %v4230
    %v4232 = vpop.f32.mrb[0].mxu0
    %v4233 = vpop.f32.mrb[0].mxu0
    %v4234 = vadd.f32 0.0, %v4233
    %v4235 = vpop.f32.mrb[0].mxu0
    %4236 = vmatprep.mubr.bf16.mxu0 0
    %4237 = vmatmul.mubr.bf16.gmra.mrb[0].mxu0 %v4080
    %v4238 = vpop.f32.mrb[0].mxu0
    %v4239 = vadd.f32 0.0, %v4238
    %v4240 = vpop.f32.mrb[0].mxu0
    %v4241 = vpop.f32.mrb[0].mxu0
    %v4242 = vadd.f32 0.0, %v4241
    %v4243 = vpop.f32.mrb[0].mxu0
    %4244 = vmatprep.mubr.bf16.mxu0 0
    %4245 = vmatmul.mubr.bf16.gmra.mrb[0].mxu0 %v4083
    %v4246 = vpop.f32.mrb[0].mxu0
    %v4247 = vadd.f32 0.0, %v4246
    %v4248 = vpop.f32.mrb[0].mxu0
    %v4249 = vpop.f32.mrb[0].mxu0
    %v4250 = vadd.f32 0.0, %v4249
    %v4251 = vpop.f32.mrb[0].mxu0
    %4252 = vmatprep.mubr.bf16.mxu0 0
    %4253 = vmatmul.mubr.bf16.gmra.mrb[0].mxu0 %v4086
    %v4254 = vpop.f32.mrb[0].mxu0
    %v4255 = vadd.f32 0.0, %v4254
    %v4256 = vpop.f32.mrb[0].mxu0
    %v4257 = vpop.f32.mrb[0].mxu0
    %v4258 = vadd.f32 0.0, %v4257
    %v4259 = vpop.f32.mrb[0].mxu0
    %4260 = vmatprep.mubr.bf16.mxu0 0
    %4261 = vmatmul.mubr.bf16.gmra.mrb[0].mxu0 %v4089
    %v4262 = vpop.f32.mrb[0].mxu0
    %v4263 = vadd.f32 0.0, %v4262
    %v4264 = vpop.f32.mrb[0].mxu0
    %v4265 = vpop.f32.mrb[0].mxu0
    %v4266 = vadd.f32 0.0, %v4265
    %v4267 = vpop.f32.mrb[0].mxu0
    %4268 = vmatprep.mubr.bf16.mxu0 0
    %4269 = vmatmul.mubr.bf16.gmra.mrb[0].mxu0 %v4092
    %v4270 = vpop.f32.mrb[0].mxu0
    %v4271 = vadd.f32 0.0, %v4270
    %v4272 = vpop.f32.mrb[0].mxu0
    %v4273 = vpop.f32.mrb[0].mxu0
    %v4274 = vadd.f32 0.0, %v4273
    %v4275 = vpop.f32.mrb[0].mxu0
    %4276 = vmatprep.mubr.bf16.mxu0 0
    %4277 = vmatmul.mubr.bf16.gmra.mrb[0].mxu0 %v4095
    %v4278 = vpop.f32.mrb[0].mxu0
    %v4279 = vadd.f32 0.0, %v4278
    %v4280 = vpop.f32.mrb[0].mxu0
    %v4281 = vpop.f32.mrb[0].mxu0
    %v4282 = vadd.f32 0.0, %v4281
    %v4283 = vpop.f32.mrb[0].mxu0
    %4284 = vmatprep.mubr.bf16.mxu0 0
    %4285 = vmatmul.mubr.bf16.gmra.mrb[0].mxu0 %v4098
    %v4286 = vpop.f32.mrb[0].mxu0
    %v4287 = vadd.f32 0.0, %v4286
    %v4288 = vpop.f32.mrb[0].mxu0
    %v4289 = vpop.f32.mrb[0].mxu0
    %v4290 = vadd.f32 0.0, %v4289
    %v4291 = vpop.f32.mrb[0].mxu0
    %4292 = vmatprep.mubr.bf16.mxu0 0
    %4293 = vmatmul.mubr.bf16.gmra.mrb[0].mxu0 %v4101
    %v4294 = vpop.f32.mrb[0].mxu0
    %v4295 = vadd.f32 0.0, %v4294
    %v4296 = vpop.f32.mrb[0].mxu0
    %v4297 = vpop.f32.mrb[0].mxu0
    %v4298 = vadd.f32 0.0, %v4297
    %v4299 = vpop.f32.mrb[0].mxu0
    %4300 = vmatprep.mubr.bf16.mxu0 0
    %4301 = vmatmul.mubr.bf16.gmra.mrb[0].mxu0 %v4104
    %v4302 = vpop.f32.mrb[0].mxu0
    %v4303 = vadd.f32 0.0, %v4302
    %v4304 = vpop.f32.mrb[0].mxu0
    %v4305 = vpop.f32.mrb[0].mxu0
    %v4306 = vadd.f32 0.0, %v4305
    %v4307 = vpop.f32.mrb[0].mxu0
    %4308 = vmatprep.mubr.bf16.mxu0 0
    %4309 = vmatmul.mubr.bf16.gmra.mrb[0].mxu0 %v4107
    %v4310 = vpop.f32.mrb[0].mxu0
    %v4311 = vadd.f32 0.0, %v4310
    %v4312 = vpop.f32.mrb[0].mxu0
    %v4313 = vpop.f32.mrb[0].mxu0
    %v4314 = vadd.f32 0.0, %v4313
    %v4315 = vpop.f32.mrb[0].mxu0
    %4316 = vmatprep.mubr.bf16.mxu0 0
    %4317 = vmatmul.mubr.bf16.gmra.mrb[0].mxu0 %v4110
    %v4318 = vpop.f32.mrb[0].mxu0
    %v4319 = vadd.f32 0.0, %v4318
    %v4320 = vpop.f32.mrb[0].mxu0
    %v4321 = vpop.f32.mrb[0].mxu0
    %v4322 = vadd.f32 0.0, %v4321
    %v4323 = vpop.f32.mrb[0].mxu0
    %4324 = vmatprep.mubr.bf16.mxu0 0
    %4325 = vmatmul.mubr.bf16.gmra.mrb[0].mxu0 %v4113
    %v4326 = vpop.f32.mrb[0].mxu0
    %v4327 = vadd.f32 0.0, %v4326
    %v4328 = vpop.f32.mrb[0].mxu0
    %v4329 = vpop.f32.mrb[0].mxu0
    %v4330 = vadd.f32 0.0, %v4329
    %v4331 = vpop.f32.mrb[0].mxu0
    %4332 = vmatprep.mubr.bf16.mxu0 0
    %4333 = vmatmul.mubr.bf16.gmra.mrb[0].mxu0 %v4116
    %v4334 = vpop.f32.mrb[0].mxu0
    %v4335 = vadd.f32 0.0, %v4334
    %v4336 = vpop.f32.mrb[0].mxu0
    %v4337 = vpop.f32.mrb[0].mxu0
    %v4338 = vadd.f32 0.0, %v4337
    %v4339 = vpop.f32.mrb[0].mxu0
    %4340 = vmatprep.mubr.bf16.mxu0 0
    %4341 = vmatmul.mubr.bf16.gmra.mrb[0].mxu0 %v4119
    %v4342 = vpop.f32.mrb[0].mxu0
    %v4343 = vadd.f32 0.0, %v4342
    %v4344 = vpop.f32.mrb[0].mxu0
    %v4345 = vpop.f32.mrb[0].mxu0
    %v4346 = vadd.f32 0.0, %v4345
    %v4347 = vpop.f32.mrb[0].mxu0
    %4348 = vmatprep.mubr.bf16.mxu0 0
    %4349 = vmatmul.mubr.bf16.gmra.mrb[0].mxu0 %v4122
    %v4350 = vpop.f32.mrb[0].mxu0
    %v4351 = vadd.f32 0.0, %v4350
    %v4352 = vpop.f32.mrb[0].mxu0
    %v4353 = vpop.f32.mrb[0].mxu0
    %v4354 = vadd.f32 0.0, %v4353
    %v4355 = vpop.f32.mrb[0].mxu0
    %4356 = vmatprep.mubr.bf16.mxu0 0
    %4357 = vmatmul.mubr.bf16.gmra.mrb[0].mxu0 %v4125
    %v4358 = vpop.f32.mrb[0].mxu0
    %v4359 = vadd.f32 0.0, %v4358
    %v4360 = vpop.f32.mrb[0].mxu0
    %v4361 = vpop.f32.mrb[0].mxu0
    %v4362 = vadd.f32 0.0, %v4361
    %v4363 = vpop.f32.mrb[0].mxu0
    %4364 = vmatprep.mubr.bf16.mxu0 0
    %4365 = vmatmul.mubr.bf16.gmra.mrb[0].mxu0 %v4128
    %v4366 = vpop.f32.mrb[0].mxu0
    %v4367 = vadd.f32 0.0, %v4366
    %v4368 = vpop.f32.mrb[0].mxu0
    %v4369 = vpop.f32.mrb[0].mxu0
    %v4370 = vadd.f32 0.0, %v4369
    %v4371 = vpop.f32.mrb[0].mxu0
    %4372 = vmatprep.mubr.bf16.mxu0 0
    %4373 = vmatmul.mubr.bf16.gmra.mrb[0].mxu0 %v4131
    %v4374 = vpop.f32.mrb[0].mxu0
    %v4375 = vadd.f32 0.0, %v4374
    %v4376 = vpop.f32.mrb[0].mxu0
    %v4377 = vpop.f32.mrb[0].mxu0
    %v4378 = vadd.f32 0.0, %v4377
    %v4379 = vpop.f32.mrb[0].mxu0
    %4380 = vmatprep.mubr.bf16.mxu0 0
    %4381 = vmatmul.mubr.bf16.gmra.mrb[0].mxu0 %v4134
    %v4382 = vpop.f32.mrb[0].mxu0
    %v4383 = vadd.f32 0.0, %v4382
    %v4384 = vpop.f32.mrb[0].mxu0
    %v4385 = vpop.f32.mrb[0].mxu0
    %v4386 = vadd.f32 0.0, %v4385
    %v4387 = vpop.f32.mrb[0].mxu0
    %4388 = vmatprep.mubr.bf16.mxu0 0
    %4389 = vmatmul.mubr.bf16.gmra.mrb[0].mxu0 %v4137
    %v4390 = vpop.f32.mrb[0].mxu0
    %v4391 = vadd.f32 0.0, %v4390
    %v4392 = vpop.f32.mrb[0].mxu0
    %v4393 = vpop.f32.mrb[0].mxu0
    %v4394 = vadd.f32 0.0, %v4393
    %v4395 = vpop.f32.mrb[0].mxu0
    %4396 = vmatprep.mubr.bf16.mxu0 0
    %4397 = vmatmul.mubr.bf16.gmra.mrb[0].mxu0 %v4140
    %v4398 = vpop.f32.mrb[0].mxu0
    %v4399 = vadd.f32 0.0, %v4398
    %v4400 = vpop.f32.mrb[0].mxu0
    %v4401 = vpop.f32.mrb[0].mxu0
    %v4402 = vadd.f32 0.0, %v4401
    %v4403 = vpop.f32.mrb[0].mxu0
    %4404 = vmatprep.mubr.bf16.mxu0 0
    %4405 = vmatmul.mubr.bf16.gmra.mrb[0].mxu0 %v4143
    %v4406 = vpop.f32.mrb[0].mxu0
    %v4407 = vadd.f32 0.0, %v4406
    %v4408 = vpop.f32.mrb[0].mxu0
    %v4409 = vpop.f32.mrb[0].mxu0
    %v4410 = vadd.f32 0.0, %v4409
    %v4411 = vpop.f32.mrb[0].mxu0
    %4412 = vmatprep.mubr.bf16.mxu0 0
    %4413 = vmatmul.mubr.bf16.gmra.mrb[0].mxu0 %v4146
    %v4414 = vpop.f32.mrb[0].mxu0
    %v4415 = vadd.f32 0.0, %v4414
    %v4416 = vpop.f32.mrb[0].mxu0
    %v4417 = vpop.f32.mrb[0].mxu0
    %v4418 = vadd.f32 0.0, %v4417
    %v4419 = vpop.f32.mrb[0].mxu0
    %4420 = vmatprep.mubr.bf16.mxu0 0
    %4421 = vmatmul.mubr.bf16.gmra.mrb[0].mxu0 %v4149
    %v4422 = vpop.f32.mrb[0].mxu0
    %v4423 = vadd.f32 0.0, %v4422
    %v4424 = vpop.f32.mrb[0].mxu0
    %v4425 = vpop.f32.mrb[0].mxu0
    %v4426 = vadd.f32 0.0, %v4425
    %v4427 = vpop.f32.mrb[0].mxu0
    %4428 = vmatprep.mubr.bf16.mxu0 0
    %4429 = vmatmul.mubr.bf16.gmra.mrb[0].mxu0 %v4152
    %v4430 = vpop.f32.mrb[0].mxu0
    %v4431 = vadd.f32 0.0, %v4430
    %v4432 = vpop.f32.mrb[0].mxu0
    %v4433 = vpop.f32.mrb[0].mxu0
    %v4434 = vadd.f32 0.0, %v4433
    %v4435 = vpop.f32.mrb[0].mxu0
    %4436 = vmatprep.mubr.bf16.mxu0 0
    %4437 = vmatmul.mubr.bf16.gmra.mrb[0].mxu0 %v4155
    %v4438 = vpop.f32.mrb[0].mxu0
    %v4439 = vadd.f32 0.0, %v4438
    %v4440 = vpop.f32.mrb[0].mxu0
    %v4441 = vpop.f32.mrb[0].mxu0
    %v4442 = vadd.f32 0.0, %v4441
    %v4443 = vpop.f32.mrb[0].mxu0
    %4444 = vmatprep.mubr.bf16.mxu0 0
    %4445 = vmatmul.mubr.bf16.gmra.mrb[0].mxu0 %v4158
    %v4446 = vpop.f32.mrb[0].mxu0
    %v4447 = vadd.f32 0.0, %v4446
    %v4448 = vpop.f32.mrb[0].mxu0
    %v4449 = vpop.f32.mrb[0].mxu0
    %v4450 = vadd.f32 0.0, %v4449
    %v4451 = vpop.f32.mrb[0].mxu0
    %4452 = vdwg.mxu0
    %v4453 = vadd.f32 %v4199, %v4202
    %v4454 = vadd.f32 %v4453, %v4207
    %v4455 = vadd.f32 %v4454, %v4210
    %v4456 = vadd.f32 %v4455, %v4215
    %v4457 = vadd.f32 %v4456, %v4218
    %v4458 = vadd.f32 %v4457, %v4223
    %v4459 = vadd.f32 %v4458, %v4226
    %v4460 = vadd.f32 %v4459, %v4231
    %v4461 = vadd.f32 %v4460, %v4234
    %v4462 = vadd.f32 %v4461, %v4239
    %v4463 = vadd.f32 %v4462, %v4242
    %v4464 = vadd.f32 %v4463, %v4247
    %v4465 = vadd.f32 %v4464, %v4250
    %v4466 = vadd.f32 %v4465, %v4255
    %v4467 = vadd.f32 %v4466, %v4258
    %v4468 = vadd.f32 %v4467, %v4263
    %v4469 = vadd.f32 %v4468, %v4266
    %v4470 = vadd.f32 %v4469, %v4271
    %v4471 = vadd.f32 %v4470, %v4274
    %v4472 = vadd.f32 %v4471, %v4279
    %v4473 = vadd.f32 %v4472, %v4282
    %v4474 = vadd.f32 %v4473, %v4287
    %v4475 = vadd.f32 %v4474, %v4290
    %v4476 = vadd.f32 %v4475, %v4295
    %v4477 = vadd.f32 %v4476, %v4298
    %v4478 = vadd.f32 %v4477, %v4303
    %v4479 = vadd.f32 %v4478, %v4306
    %v4480 = vadd.f32 %v4479, %v4311
    %v4481 = vadd.f32 %v4480, %v4314
    %v4482 = vadd.f32 %v4481, %v4319
    %v4483 = vadd.f32 %v4482, %v4322
    %v4484 = vadd.f32 %v4483, %v4327
    %v4485 = vadd.f32 %v4484, %v4330
    %v4486 = vadd.f32 %v4485, %v4335
    %v4487 = vadd.f32 %v4486, %v4338
    %v4488 = vadd.f32 %v4487, %v4343
    %v4489 = vadd.f32 %v4488, %v4346
    %v4490 = vadd.f32 %v4489, %v4351
    %v4491 = vadd.f32 %v4490, %v4354
    %v4492 = vadd.f32 %v4491, %v4359
    %v4493 = vadd.f32 %v4492, %v4362
    %v4494 = vadd.f32 %v4493, %v4367
    %v4495 = vadd.f32 %v4494, %v4370
    %v4496 = vadd.f32 %v4495, %v4375
    %v4497 = vadd.f32 %v4496, %v4378
    %v4498 = vadd.f32 %v4497, %v4383
    %v4499 = vadd.f32 %v4498, %v4386
    %v4500 = vadd.f32 %v4499, %v4391
    %v4501 = vadd.f32 %v4500, %v4394
    %v4502 = vadd.f32 %v4501, %v4399
    %v4503 = vadd.f32 %v4502, %v4402
    %v4504 = vadd.f32 %v4503, %v4407
    %v4505 = vadd.f32 %v4504, %v4410
    %v4506 = vadd.f32 %v4505, %v4415
    %v4507 = vadd.f32 %v4506, %v4418
    %v4508 = vadd.f32 %v4507, %v4423
    %v4509 = vadd.f32 %v4508, %v4426
    %v4510 = vadd.f32 %v4509, %v4431
    %v4511 = vadd.f32 %v4510, %v4434
    %v4512 = vadd.f32 %v4511, %v4439
    %v4513 = vadd.f32 %v4512, %v4442
    %v4514 = vadd.f32 %v4513, %v4447
    %v4515 = vadd.f32 %v4514, %v4450
    %v4516 = vrot.slane %v4515, 4
    %v4517 = vadd.f32 %v4515, %v4516
    %v4518 = vrot.slane %v4517, 2
    %v4519 = vadd.f32 %v4517, %v4518
    %v4520 = vrot.slane %v4519, 1
    %v4521 = vadd.f32 %v4519, %v4520
    %v4522 = vmul.f32 %v4199, %v4199
    %v4523 = vmul.f32 %v4202, %v4202
    %v4524 = vmul.f32 %v4207, %v4207
    %v4525 = vmul.f32 %v4210, %v4210
    %v4526 = vmul.f32 %v4215, %v4215
    %v4527 = vmul.f32 %v4218, %v4218
    %v4528 = vmul.f32 %v4223, %v4223
    %v4529 = vmul.f32 %v4226, %v4226
    %v4530 = vmul.f32 %v4231, %v4231
    %v4531 = vmul.f32 %v4234, %v4234
    %v4532 = vmul.f32 %v4239, %v4239
    %v4533 = vmul.f32 %v4242, %v4242
    %v4534 = vmul.f32 %v4247, %v4247
    %v4535 = vmul.f32 %v4250, %v4250
    %v4536 = vmul.f32 %v4255, %v4255
    %v4537 = vmul.f32 %v4258, %v4258
    %v4538 = vmul.f32 %v4263, %v4263
    %v4539 = vmul.f32 %v4266, %v4266
    %v4540 = vmul.f32 %v4271, %v4271
    %v4541 = vmul.f32 %v4274, %v4274
    %v4542 = vmul.f32 %v4279, %v4279
    %v4543 = vmul.f32 %v4282, %v4282
    %v4544 = vmul.f32 %v4287, %v4287
    %v4545 = vmul.f32 %v4290, %v4290
    %v4546 = vmul.f32 %v4295, %v4295
    %v4547 = vmul.f32 %v4298, %v4298
    %v4548 = vmul.f32 %v4303, %v4303
    %v4549 = vmul.f32 %v4306, %v4306
    %v4550 = vmul.f32 %v4311, %v4311
    %v4551 = vmul.f32 %v4314, %v4314
    %v4552 = vmul.f32 %v4319, %v4319
    %v4553 = vmul.f32 %v4322, %v4322
    %v4554 = vmul.f32 %v4327, %v4327
    %v4555 = vmul.f32 %v4330, %v4330
    %v4556 = vmul.f32 %v4335, %v4335
    %v4557 = vmul.f32 %v4338, %v4338
    %v4558 = vmul.f32 %v4343, %v4343
    %v4559 = vmul.f32 %v4346, %v4346
    %v4560 = vmul.f32 %v4351, %v4351
    %v4561 = vmul.f32 %v4354, %v4354
    %v4562 = vmul.f32 %v4359, %v4359
    %v4563 = vmul.f32 %v4362, %v4362
    %v4564 = vmul.f32 %v4367, %v4367
    %v4565 = vmul.f32 %v4370, %v4370
    %v4566 = vmul.f32 %v4375, %v4375
    %v4567 = vmul.f32 %v4378, %v4378
    %v4568 = vmul.f32 %v4383, %v4383
    %v4569 = vmul.f32 %v4386, %v4386
    %v4570 = vmul.f32 %v4391, %v4391
    %v4571 = vmul.f32 %v4394, %v4394
    %v4572 = vmul.f32 %v4399, %v4399
    %v4573 = vmul.f32 %v4402, %v4402
    %v4574 = vmul.f32 %v4407, %v4407
    %v4575 = vmul.f32 %v4410, %v4410
    %v4576 = vmul.f32 %v4415, %v4415
    %v4577 = vmul.f32 %v4418, %v4418
    %v4578 = vmul.f32 %v4423, %v4423
    %v4579 = vmul.f32 %v4426, %v4426
    %v4580 = vmul.f32 %v4431, %v4431
    %v4581 = vmul.f32 %v4434, %v4434
    %v4582 = vmul.f32 %v4439, %v4439
    %v4583 = vmul.f32 %v4442, %v4442
    %v4584 = vmul.f32 %v4447, %v4447
    %v4585 = vmul.f32 %v4450, %v4450
    %v4586 = vadd.f32 %v4522, %v4523
    %v4587 = vadd.f32 %v4586, %v4524
    %v4588 = vadd.f32 %v4587, %v4525
    %v4589 = vadd.f32 %v4588, %v4526
    %v4590 = vadd.f32 %v4589, %v4527
    %v4591 = vadd.f32 %v4590, %v4528
    %v4592 = vadd.f32 %v4591, %v4529
    %v4593 = vadd.f32 %v4592, %v4530
    %v4594 = vadd.f32 %v4593, %v4531
    %v4595 = vadd.f32 %v4594, %v4532
    %v4596 = vadd.f32 %v4595, %v4533
    %v4597 = vadd.f32 %v4596, %v4534
    %v4598 = vadd.f32 %v4597, %v4535
    %v4599 = vadd.f32 %v4598, %v4536
    %v4600 = vadd.f32 %v4599, %v4537
    %v4601 = vadd.f32 %v4600, %v4538
    %v4602 = vadd.f32 %v4601, %v4539
    %v4603 = vadd.f32 %v4602, %v4540
    %v4604 = vadd.f32 %v4603, %v4541
    %v4605 = vadd.f32 %v4604, %v4542
    %v4606 = vadd.f32 %v4605, %v4543
    %v4607 = vadd.f32 %v4606, %v4544
    %v4608 = vadd.f32 %v4607, %v4545
    %v4609 = vadd.f32 %v4608, %v4546
    %v4610 = vadd.f32 %v4609, %v4547
    %v4611 = vadd.f32 %v4610, %v4548
    %v4612 = vadd.f32 %v4611, %v4549
    %v4613 = vadd.f32 %v4612, %v4550
    %v4614 = vadd.f32 %v4613, %v4551
    %v4615 = vadd.f32 %v4614, %v4552
    %v4616 = vadd.f32 %v4615, %v4553
    %v4617 = vadd.f32 %v4616, %v4554
    %v4618 = vadd.f32 %v4617, %v4555
    %v4619 = vadd.f32 %v4618, %v4556
    %v4620 = vadd.f32 %v4619, %v4557
    %v4621 = vadd.f32 %v4620, %v4558
    %v4622 = vadd.f32 %v4621, %v4559
    %v4623 = vadd.f32 %v4622, %v4560
    %v4624 = vadd.f32 %v4623, %v4561
    %v4625 = vadd.f32 %v4624, %v4562
    %v4626 = vadd.f32 %v4625, %v4563
    %v4627 = vadd.f32 %v4626, %v4564
    %v4628 = vadd.f32 %v4627, %v4565
    %v4629 = vadd.f32 %v4628, %v4566
    %v4630 = vadd.f32 %v4629, %v4567
    %v4631 = vadd.f32 %v4630, %v4568
    %v4632 = vadd.f32 %v4631, %v4569
    %v4633 = vadd.f32 %v4632, %v4570
    %v4634 = vadd.f32 %v4633, %v4571
    %v4635 = vadd.f32 %v4634, %v4572
    %v4636 = vadd.f32 %v4635, %v4573
    %v4637 = vadd.f32 %v4636, %v4574
    %v4638 = vadd.f32 %v4637, %v4575
    %v4639 = vadd.f32 %v4638, %v4576
    %v4640 = vadd.f32 %v4639, %v4577
    %v4641 = vadd.f32 %v4640, %v4578
    %v4642 = vadd.f32 %v4641, %v4579
    %v4643 = vadd.f32 %v4642, %v4580
    %v4644 = vadd.f32 %v4643, %v4581
    %v4645 = vadd.f32 %v4644, %v4582
    %v4646 = vadd.f32 %v4645, %v4583
    %v4647 = vadd.f32 %v4646, %v4584
    %v4648 = vadd.f32 %v4647, %v4585
    %v4649 = vrot.slane %v4648, 4
    %v4650 = vadd.f32 %v4648, %v4649
    %v4651 = vrot.slane %v4650, 2
    %v4652 = vadd.f32 %v4650, %v4651
    %v4653 = vrot.slane %v4652, 1
    %v4654 = vadd.f32 %v4652, %v4653
    %vm4655 = vcmask 1040384
    %v4656 = vsel %vm4655, %v4521, %v4654
    %4657 = vst [vmem:[#allocation4] sm:$0x3] %v4656
    // Predicated region
    $region10: #{tpu_custom_call.1} parent=1 // pred_check
      _
    $region11: #{tpu_custom_call.1} parent=1 // pred_check_branch
      %4659 = sbr.rel (0) target = $region13
    $region12: #{tpu_custom_call.1} parent=1 // pred_region
      %s4661 = ssub.s32 32, 32
      %4662 = vsyncadd [#allocation5], %s4661
      %s4664 = sshll.u32 [#allocation4], 4
      %s4665 = int_to_ptr.vmem [resolvable:$true] %s4664
      %4667 = dma.vmem_to_hbm [thread:$0]  %s4665, 32, %s2, [#allocation5]
    $region13: #{tpu_custom_call.1} parent=1 // pred_fallthru
      _
    // Predicated region
    $region14: #{tpu_custom_call.1} parent=1 // pred_check
      _
    $region15: #{tpu_custom_call.1} parent=1 // pred_check_branch
      %4669 = sbr.rel (0) target = $region17
    $region16: #{tpu_custom_call.1} parent=1 // pred_region
      %4670 = dma.done [#allocation5], 32
    $region17: #{tpu_custom_call.1} parent=1 // pred_fallthru
      _
    %4671 = vsyncpa [#allocation5], 1

</llo_original>
